<compile_context>
chip_gen: v5e
topology: v5e:2x2
jax: 0.10.0
libtpu: 0.0.40
codegen_flags: <defaults>
</compile_context>

<pallas_src>
import functools
import math

import jax
import jax.numpy as jnp
import numpy as np
from jax.experimental import pallas as pl
from jax.experimental.pallas import tpu as pltpu

# ----------------------------------------------------------------------------
# Small config consistent with the PyTorch module
# ----------------------------------------------------------------------------
SIZE = 16            # image size
PATCH = 4            # patch_size
N_CH = 3             # num_channels
DIM_Z = 16
DIM_H = 32
NHEAD = 4
DIM_FF = 64
N_LAYERS = 2
N_PATCH_SIDE = SIZE // PATCH           # 4
N_PATCHES = N_PATCH_SIDE ** 2          # 16  (decoder target sequence length)
PATCH_DIM = N_CH * PATCH * PATCH       # 48
DIM_HEAD = DIM_H // NHEAD              # 8
OUT_PAD = 128                          # lane-dense padded output width
LN_EPS = 1e-5
MAX_BB = 256                           # cap on batch elements fused per grid step

PREP_ORDER = ("wz_aug", "w_heads", "b_heads", "wo_heads",
              "w1_aug", "w2_aug", "wp_aug", "wvo_cross", "vecs")


# ----------------------------------------------------------------------------
# In-kernel helpers
# ----------------------------------------------------------------------------
def _layer_norm(x, g, b):
    mu = jnp.mean(x, axis=-1, keepdims=True)
    xc = x - mu
    var = jnp.mean(xc * xc, axis=-1, keepdims=True)
    return xc * jax.lax.rsqrt(var + LN_EPS) * g + b


def _fused_mha(q_heads, k_heads, v_heads, wo_heads, bb, t_q, s_kv):
    """Multi-head attention with all heads' softmax fused into one pass.

    q_heads/k_heads/v_heads: NHEAD lists of [bb*t_q, dh] / [bb*s_kv, dh] arrays
    (per-head projections at lane offset 0; scale folded into q already).
    wo_heads: NHEAD list of [dh, DIM_H] output-projection row blocks.
    Returns [bb*t_q, DIM_H] (no output bias).
    """
    dh = DIM_HEAD
    # [NHEAD*bb, t, dh] / [NHEAD*bb, s, dh]  (head-major along the batch axis)
    q = jnp.concatenate([qh.reshape(bb, t_q, dh) for qh in q_heads], axis=0)
    k = jnp.concatenate([kh.reshape(bb, s_kv, dh) for kh in k_heads], axis=0)
    v = jnp.concatenate([vh.reshape(bb, s_kv, dh) for vh in v_heads], axis=0)
    s = jnp.einsum("bqd,bkd->bqk", q, k, preferred_element_type=jnp.float32)
    # single fused softmax over all heads and batches
    m = jnp.max(s, axis=-1, keepdims=True)
    e = jnp.exp(s - m)
    p = e * pl.reciprocal(jnp.sum(e, axis=-1, keepdims=True), approx=True)
    o = jnp.einsum("bqk,bkd->bqd", p, v, preferred_element_type=jnp.float32)
    out = jnp.dot(o[:bb].reshape(bb * t_q, dh), wo_heads[0],
                  preferred_element_type=jnp.float32)
    for h in range(1, NHEAD):
        oh = o[h * bb:(h + 1) * bb].reshape(bb * t_q, dh)
        out = out + jnp.dot(oh, wo_heads[h], preferred_element_type=jnp.float32)
    return out


# ----------------------------------------------------------------------------
# The fused decoder kernel (BB batch elements per grid step)
# ----------------------------------------------------------------------------
def decoder_kernel(z_ref, pe_ref, wz_ref, wh_ref, bh_ref, woh_ref,
                   w1_ref, w2_ref, wp_ref, wvo_ref, vec_ref, out_ref,
                   *, bb, mem_len):
    D, T, H = DIM_H, N_PATCHES, NHEAD

    # z_to_h: memory for cross-attention, [bb*mem_len, D]
    z = z_ref[0]                                          # [bb*mem_len, DIM_Z]
    wz = wz_ref[...]
    mem = jnp.dot(z, wz[:DIM_Z], preferred_element_type=jnp.float32) + wz[DIM_Z:]

    # target tokens: zeros + 2D positional encoding -> just the PE, batch-fused
    pe = pe_ref[...]                                      # [T, D]
    x = jnp.broadcast_to(pe[None], (bb, T, D)).reshape(bb * T, D)

    for l in range(N_LAYERS):                             # static unroll
        # ---------------- self-attention (norm_first) ----------------
        xn = _layer_norm(x, vec_ref[l, 0], vec_ref[l, 1])
        si = 2 * l
        q_h = [jnp.dot(xn, wh_ref[si, h], preferred_element_type=jnp.float32)
               + bh_ref[si, h] for h in range(H)]
        k_h = [jnp.dot(xn, wh_ref[si, H + h], preferred_element_type=jnp.float32)
               + bh_ref[si, H + h] for h in range(H)]
        v_h = [jnp.dot(xn, wh_ref[si, 2 * H + h], preferred_element_type=jnp.float32)
               + bh_ref[si, 2 * H + h] for h in range(H)]
        wo_h = [woh_ref[si, h] for h in range(H)]
        x = x + _fused_mha(q_h, k_h, v_h, wo_h, bb, T, T) + vec_ref[l, 6]

        # ---------------- cross-attention ----------------
        ci = 2 * l + 1
        if mem_len == 1:
            # Softmax over a single key is identically 1: the attention output
            # is just the projected memory value (independent of the query, so
            # the query-side LayerNorm is skipped). V-proj, output-proj and
            # both biases were constant-folded into one [D+1, D] matrix.
            wvo = wvo_ref[l]                              # [D+1, D]
            co = jnp.dot(mem, wvo[:D], preferred_element_type=jnp.float32) + wvo[D:]
            x = x + jnp.broadcast_to(co[:, None, :], (bb, T, D)).reshape(bb * T, D)
        else:
            xn = _layer_norm(x, vec_ref[l, 2], vec_ref[l, 3])
            q_h = [jnp.dot(xn, wh_ref[ci, h], preferred_element_type=jnp.float32)
                   + bh_ref[ci, h] for h in range(H)]
            k_h = [jnp.dot(mem, wh_ref[ci, H + h], preferred_element_type=jnp.float32)
                   + bh_ref[ci, H + h] for h in range(H)]
            v_h = [jnp.dot(mem, wh_ref[ci, 2 * H + h], preferred_element_type=jnp.float32)
                   + bh_ref[ci, 2 * H + h] for h in range(H)]
            wo_h = [woh_ref[ci, h] for h in range(H)]
            x = x + _fused_mha(q_h, k_h, v_h, wo_h, bb, T, mem_len) + vec_ref[l, 7]

        # ---------------- feed-forward with SiLU ----------------
        xn = _layer_norm(x, vec_ref[l, 4], vec_ref[l, 5])
        w1 = w1_ref[l]                                    # [D+1, FF]  (last row = bias)
        h1 = jnp.dot(xn, w1[:D], preferred_element_type=jnp.float32) + w1[D:]
        h1 = h1 * jax.nn.sigmoid(h1)                      # SiLU
        w2 = w2_ref[l]                                    # [FF+1, D]
        x = x + jnp.dot(h1, w2[:DIM_FF], preferred_element_type=jnp.float32) + w2[DIM_FF:]

    # ---------------- patch_linear (lane-dense, padded to OUT_PAD) ----------------
    wp = wp_ref[...]                                      # [D+1, OUT_PAD]
    out_ref[0] = jnp.dot(x, wp[:D], preferred_element_type=jnp.float32) + wp[D:]


# ----------------------------------------------------------------------------
# JAX glue: positional encoding, parameter init, one-time packing, wrapper, ref
# ----------------------------------------------------------------------------
def positional_encoding_2d(dim, height, width):
    # TODO(synk): PositionalEncoding2D source not provided; using a standard
    # additive 2D sinusoidal encoding (concat=False semantics: out = x + pe).
    def enc_1d(n, d):
        pos = jnp.arange(n, dtype=jnp.float32)[:, None]
        i = jnp.arange(0, d, 2, dtype=jnp.float32)[None, :]
        freq = jnp.exp(-jnp.log(10000.0) * i / d)
        ang = pos * freq
        pe = jnp.zeros((n, d), jnp.float32)
        pe = pe.at[:, 0::2].set(jnp.sin(ang))
        pe = pe.at[:, 1::2].set(jnp.cos(ang))
        return pe

    c = dim // 2
    pe_y = enc_1d(height, c)
    pe_x = enc_1d(width, dim - c)
    pe = jnp.concatenate([
        jnp.broadcast_to(pe_y[:, None, :], (height, width, c)),
        jnp.broadcast_to(pe_x[None, :, :], (height, width, dim - c)),
    ], axis=-1)
    return pe.reshape(height * width, dim)          # [num_patches, dim_h]


def init_params(key):
    ks = iter(jax.random.split(key, 128))

    def dense(fan_in, fan_out):
        return jax.random.normal(next(ks), (fan_in, fan_out), jnp.float32) / math.sqrt(fan_in)

    def bias(*shape):
        return 0.1 * jax.random.normal(next(ks), shape, jnp.float32)

    def stack_w(fan_in, fan_out):
        return jnp.stack([dense(fan_in, fan_out) for _ in range(N_LAYERS)])

    def stack_b(dim):
        return jnp.stack([bias(1, dim) for _ in range(N_LAYERS)])

    p = {}
    p["wz"], p["bz"] = dense(DIM_Z, DIM_H), bias(1, DIM_H)
    p["wqkv"], p["bqkv"] = stack_w(DIM_H, 3 * DIM_H), stack_b(3 * DIM_H)
    p["wos"], p["bos"] = stack_w(DIM_H, DIM_H), stack_b(DIM_H)
    p["wqc"], p["bqc"] = stack_w(DIM_H, DIM_H), stack_b(DIM_H)
    p["wkvc"], p["bkvc"] = stack_w(DIM_H, 2 * DIM_H), stack_b(2 * DIM_H)
    p["woc"], p["boc"] = stack_w(DIM_H, DIM_H), stack_b(DIM_H)
    p["w1"], p["b1"] = stack_w(DIM_H, DIM_FF), stack_b(DIM_FF)
    p["w2"], p["b2"] = stack_w(DIM_FF, DIM_H), stack_b(DIM_H)
    for name in ("g1", "g2", "g3"):
        p[name] = 1.0 + jnp.stack([bias(1, DIM_H) for _ in range(N_LAYERS)])
    for name in ("be1", "be2", "be3"):
        p[name] = jnp.stack([bias(1, DIM_H) for _ in range(N_LAYERS)])
    p["wp"], p["bp"] = dense(DIM_H, PATCH_DIM), bias(1, PATCH_DIM)
    return p


def prepare_kernel_params(p):
    """One-time parameter packing / constant folding for the kernel:
    per-head weight splits (heads land at lane offset 0), attention scale
    folded into the q projections, biases stored as extra weight rows, patch
    head padded to a lane-dense 128-wide output, LN/bias vectors stacked, and
    the length-1-memory cross-attention (V-proj @ O-proj + biases) pre-folded
    into a single [D+1, D] matrix per layer."""
    D, dh = DIM_H, DIM_HEAD
    scale = 1.0 / math.sqrt(dh)
    hi = jax.lax.Precision.HIGHEST
    w_heads, b_heads, wo_heads, wvo_cross = [], [], [], []
    for l in range(N_LAYERS):
        wq_s, wk_s, wv_s = (p["wqkv"][l][:, :D], p["wqkv"][l][:, D:2 * D],
                            p["wqkv"][l][:, 2 * D:])
        bq_s, bk_s, bv_s = (p["bqkv"][l][0, :D], p["bqkv"][l][0, D:2 * D],
                            p["bqkv"][l][0, 2 * D:])
        wq_c, bq_c = p["wqc"][l], p["bqc"][l][0]
        wk_c, wv_c = p["wkvc"][l][:, :D], p["wkvc"][l][:, D:]
        bk_c, bv_c = p["bkvc"][l][0, :D], p["bkvc"][l][0, D:]
        for wq, wk, wv, bq, bk, bv, wo in (
                (wq_s, wk_s, wv_s, bq_s, bk_s, bv_s, p["wos"][l]),     # self
                (wq_c, wk_c, wv_c, bq_c, bk_c, bv_c, p["woc"][l])):    # cross
            w_heads.append(jnp.stack(
                [wq[:, h * dh:(h + 1) * dh] * scale for h in range(NHEAD)] +
                [wk[:, h * dh:(h + 1) * dh] for h in range(NHEAD)] +
                [wv[:, h * dh:(h + 1) * dh] for h in range(NHEAD)]))   # [3H, D, dh]
            b_heads.append(jnp.stack(
                [bq[None, h * dh:(h + 1) * dh] * scale for h in range(NHEAD)] +
                [bk[None, h * dh:(h + 1) * dh] for h in range(NHEAD)] +
                [bv[None, h * dh:(h + 1) * dh] for h in range(NHEAD)]))  # [3H, 1, dh]
            wo_heads.append(jnp.stack(
                [wo[h * dh:(h + 1) * dh, :] for h in range(NHEAD)]))   # [H, dh, D]
        # mem_len==1 cross-attn fold: (mem @ Wv + bv) @ Wo + bo
        wfold = jnp.dot(wv_c, p["woc"][l], precision=hi)               # [D, D]
        bfold = jnp.dot(bv_c, p["woc"][l], precision=hi) + p["boc"][l][0]   # [D]
        wvo_cross.append(jnp.concatenate([wfold, bfold[None]], axis=0))     # [D+1, D]

    vec_names = ("g1", "be1", "g2", "be2", "g3", "be3", "bos", "boc")
    vecs = jnp.stack([jnp.stack([p[n][l] for n in vec_names], axis=0)
                      for l in range(N_LAYERS)])                       # [L, 8, 1, D]

    wp_aug = jnp.zeros((D + 1, OUT_PAD), jnp.float32)
    wp_aug = wp_aug.at[:D, :PATCH_DIM].set(p["wp"])
    wp_aug = wp_aug.at[D, :PATCH_DIM].set(p["bp"][0])

    return {
        "wz_aug": jnp.concatenate([p["wz"], p["bz"]], axis=0),         # [DIM_Z+1, D]
        "w_heads": jnp.stack(w_heads),                                 # [2L, 3H, D, dh]
        "b_heads": jnp.stack(b_heads),                                 # [2L, 3H, 1, dh]
        "wo_heads": jnp.stack(wo_heads),                               # [2L, H, dh, D]
        "w1_aug": jnp.concatenate([p["w1"], p["b1"]], axis=1),         # [L, D+1, FF]
        "w2_aug": jnp.concatenate([p["w2"], p["b2"]], axis=1),         # [L, FF+1, D]
        "wp_aug": wp_aug,                                              # [D+1, OUT_PAD]
        "wvo_cross": jnp.stack(wvo_cross),                             # [L, D+1, D]
        "vecs": vecs,                                                  # [L, 8, 1, D]
    }


def transformer_image_decoder(z, prepared, pe):
    if z.ndim == 2:
        z = z[:, None, :]
    B, L, _ = z.shape
    T = N_PATCHES

    # Batch fusion: as few grid steps as possible (amortize ~0.35us/step), but
    # keep >=2 steps when B >= 2 so both TensorCores are used on dual-TC chips.
    n_steps = max(2 if B >= 2 else 1, -(-B // MAX_BB))
    bb = -(-B // n_steps)
    b_pad = n_steps * bb
    if b_pad != B:
        z = jnp.pad(z, ((0, b_pad - B), (0, 0), (0, 0)))
    z3 = z.reshape(n_steps, bb * L, DIM_Z)

    def _full_spec(a):
        nd = a.ndim
        return pl.BlockSpec(a.shape, lambda b, _nd=nd: (0,) * _nd)

    weights = [prepared[n] for n in PREP_ORDER]
    in_specs = ([pl.BlockSpec((1, bb * L, DIM_Z), lambda b: (b, 0, 0)),   # z per step
                 _full_spec(pe)] + [_full_spec(w) for w in weights])

    kernel = functools.partial(decoder_kernel, bb=bb, mem_len=L)
    out = pl.pallas_call(
        kernel,
        out_shape=jax.ShapeDtypeStruct((n_steps, bb * T, OUT_PAD), jnp.float32),
        grid_spec=pltpu.PrefetchScalarGridSpec(
            num_scalar_prefetch=0,
            grid=(n_steps,),
            in_specs=in_specs,
            out_specs=pl.BlockSpec((1, bb * T, OUT_PAD), lambda b: (b, 0, 0)),
        ),
        compiler_params=pltpu.CompilerParams(dimension_semantics=("parallel",)),
    )(z3, pe, *weights)

    # un-pad batch, drop lane padding, mirror the torch view/permute/reshape
    logits = out.reshape(b_pad, T, OUT_PAD)[:B, :, :PATCH_DIM]
    logits = logits.reshape(B, N_PATCHES, N_CH, PATCH, PATCH)
    logits = jnp.transpose(logits, (0, 2, 1, 3, 4)).reshape(B, N_CH, SIZE, SIZE)
    return logits


def reference_forward(z, params, pe):
    """Pure-JAX reference of the same math (different code path for checking)."""
    if z.ndim == 2:
        z = z[:, None, :]
    B = z.shape[0]
    mem = z @ params["wz"] + params["bz"]
    x = jnp.broadcast_to(pe[None], (B, N_PATCHES, DIM_H))

    def ln(x, g, b):
        mu = x.mean(-1, keepdims=True)
        var = ((x - mu) ** 2).mean(-1, keepdims=True)
        return (x - mu) / jnp.sqrt(var + LN_EPS) * g + b

    def mha(q, k, v, wo, bo):
        Bq, T, D = q.shape
        S = k.shape[1]
        dh = D // NHEAD
        qh = q.reshape(Bq, T, NHEAD, dh).transpose(0, 2, 1, 3)
        kh = k.reshape(Bq, S, NHEAD, dh).transpose(0, 2, 1, 3)
        vh = v.reshape(Bq, S, NHEAD, dh).transpose(0, 2, 1, 3)
        s = jnp.einsum("bhtd,bhsd->bhts", qh, kh) / math.sqrt(dh)
        p = jax.nn.softmax(s, axis=-1)
        o = jnp.einsum("bhts,bhsd->bhtd", p, vh)
        o = o.transpose(0, 2, 1, 3).reshape(Bq, T, D)
        return o @ wo + bo

    for l in range(N_LAYERS):
        xn = ln(x, params["g1"][l], params["be1"][l])
        qkv = xn @ params["wqkv"][l] + params["bqkv"][l]
        q, k, v = qkv[..., :DIM_H], qkv[..., DIM_H:2 * DIM_H], qkv[..., 2 * DIM_H:]
        x = x + mha(q, k, v, params["wos"][l], params["bos"][l])

        xn = ln(x, params["g2"][l], params["be2"][l])
        q = xn @ params["wqc"][l] + params["bqc"][l]
        kv = mem @ params["wkvc"][l] + params["bkvc"][l]
        k, v = kv[..., :DIM_H], kv[..., DIM_H:]
        x = x + mha(q, k, v, params["woc"][l], params["boc"][l])

        xn = ln(x, params["g3"][l], params["be3"][l])
        h1 = xn @ params["w1"][l] + params["b1"][l]
        h1 = h1 * jax.nn.sigmoid(h1)
        x = x + h1 @ params["w2"][l] + params["b2"][l]

    logits = x @ params["wp"] + params["bp"]
    logits = logits.reshape(B, N_PATCHES, N_CH, PATCH, PATCH)
    return jnp.transpose(logits, (0, 2, 1, 3, 4)).reshape(B, N_CH, SIZE, SIZE)


if __name__ == "__main__":
    key = jax.random.PRNGKey(0)
    kp, kz = jax.random.split(key)
    params = init_params(kp)
    prepared = prepare_kernel_params(params)     # one-time packing / constant fold
    pe = positional_encoding_2d(DIM_H, N_PATCH_SIDE, N_PATCH_SIDE)
    z = jax.random.normal(kz, (2, DIM_Z), jnp.float32)        # [batch, dim_z]

    out = jax.block_until_ready(transformer_image_decoder(z, prepared, pe))
    assert out.shape == (2, N_CH, SIZE, SIZE), out.shape
    assert bool(jnp.all(jnp.isfinite(out)))

    with jax.default_matmul_precision("highest"):
        ref = jax.block_until_ready(reference_forward(z, params, pe))
    max_err = float(np.max(np.abs(np.asarray(out) - np.asarray(ref))))
    assert np.allclose(np.asarray(out), np.asarray(ref), atol=2e-2, rtol=2e-2), max_err

    print("KERNEL_OK")
</pallas_src>

<mosaic_0001>
module attributes {stable_mosaic.version = 11 : i64} {
  func.func @decoder_kernel(%arg0: i32, %arg1: memref<1x1x16xf32, #tpu.memory_space<vmem>>, %arg2: memref<16x32xf32, #tpu.memory_space<vmem>>, %arg3: memref<17x32xf32, #tpu.memory_space<vmem>>, %arg4: memref<4x12x32x8xf32, #tpu.memory_space<vmem>>, %arg5: memref<4x12x1x8xf32, #tpu.memory_space<vmem>>, %arg6: memref<4x4x8x32xf32, #tpu.memory_space<vmem>>, %arg7: memref<2x33x64xf32, #tpu.memory_space<vmem>>, %arg8: memref<2x65x32xf32, #tpu.memory_space<vmem>>, %arg9: memref<33x128xf32, #tpu.memory_space<vmem>>, %arg10: memref<2x33x32xf32, #tpu.memory_space<vmem>>, %arg11: memref<2x8x1x32xf32, #tpu.memory_space<vmem>>, %arg12: memref<1x16x128xf32, #tpu.memory_space<vmem>>) attributes {dimension_semantics = [#tpu.dimension_semantics<parallel>], iteration_bounds = array<i64: 2>, scalar_prefetch = 0 : i64, scratch_operands = 0 : i64, tpu.core_type = #tpu.core_type<tc>, window_params = [{transform_indices = @transform_0, window_bounds = array<i64: 1, 1, 16>}, {pipeline_mode = #tpu.pipeline_mode<synchronous>, transform_indices = @transform_1, window_bounds = array<i64: 16, 32>}, {pipeline_mode = #tpu.pipeline_mode<synchronous>, transform_indices = @transform_2, window_bounds = array<i64: 17, 32>}, {pipeline_mode = #tpu.pipeline_mode<synchronous>, transform_indices = @transform_3, window_bounds = array<i64: 4, 12, 32, 8>}, {pipeline_mode = #tpu.pipeline_mode<synchronous>, transform_indices = @transform_4, window_bounds = array<i64: 4, 12, 1, 8>}, {pipeline_mode = #tpu.pipeline_mode<synchronous>, transform_indices = @transform_5, window_bounds = array<i64: 4, 4, 8, 32>}, {pipeline_mode = #tpu.pipeline_mode<synchronous>, transform_indices = @transform_6, window_bounds = array<i64: 2, 33, 64>}, {pipeline_mode = #tpu.pipeline_mode<synchronous>, transform_indices = @transform_7, window_bounds = array<i64: 2, 65, 32>}, {pipeline_mode = #tpu.pipeline_mode<synchronous>, transform_indices = @transform_8, window_bounds = array<i64: 33, 128>}, {pipeline_mode = #tpu.pipeline_mode<synchronous>, transform_indices = @transform_9, window_bounds = array<i64: 2, 33, 32>}, {pipeline_mode = #tpu.pipeline_mode<synchronous>, transform_indices = @transform_10, window_bounds = array<i64: 2, 8, 1, 32>}, {transform_indices = @transform_11, window_bounds = array<i64: 1, 16, 128>}]} {
    %c0 = arith.constant 0 : index
    %c0_0 = arith.constant 0 : index
    %c0_1 = arith.constant 0 : index
    %0 = vector.load %arg1[%c0, %c0_0, %c0_1] : memref<1x1x16xf32, #tpu.memory_space<vmem>>, vector<1x1x16xf32>
    %1 = vector.shape_cast %0 : vector<1x1x16xf32> to vector<1x16xf32>
    %c0_2 = arith.constant 0 : index
    %c0_3 = arith.constant 0 : index
    %2 = vector.load %arg3[%c0_2, %c0_3] : memref<17x32xf32, #tpu.memory_space<vmem>>, vector<17x32xf32>
    %3 = vector.extract_strided_slice %2 {offsets = [0, 0], sizes = [16, 32], strides = [1, 1]} : vector<17x32xf32> to vector<16x32xf32>
    %cst = arith.constant dense<0.000000e+00> : vector<1x32xf32>
    %4 = tpu.matmul %1, %3, %cst {dimension_numbers = #tpu.dot_dimension_numbers<[1], [0], [0], [1], [0, 0, 1, 1], [], []>} : vector<1x16xf32>, vector<16x32xf32>, vector<1x32xf32> -> vector<1x32xf32>
    %5 = vector.extract_strided_slice %2 {offsets = [16, 0], sizes = [1, 32], strides = [1, 1]} : vector<17x32xf32> to vector<1x32xf32>
    %6 = arith.addf %4, %5 : vector<1x32xf32>
    %c0_4 = arith.constant 0 : index
    %c0_5 = arith.constant 0 : index
    %7 = vector.load %arg2[%c0_4, %c0_5] : memref<16x32xf32, #tpu.memory_space<vmem>>, vector<16x32xf32>
    %8 = vector.shape_cast %7 : vector<16x32xf32> to vector<1x16x32xf32>
    %9 = vector.shape_cast %8 : vector<1x16x32xf32> to vector<16x32xf32>
    %c0_6 = arith.constant 0 : index
    %c0_7 = arith.constant 0 : index
    %c0_8 = arith.constant 0 : index
    %c0_9 = arith.constant 0 : index
    %10 = vector.load %arg11[%c0_6, %c0_7, %c0_8, %c0_9] : memref<2x8x1x32xf32, #tpu.memory_space<vmem>>, vector<1x1x1x32xf32>
    %11 = vector.shape_cast %10 : vector<1x1x1x32xf32> to vector<1x32xf32>
    %c0_10 = arith.constant 0 : index
    %c1 = arith.constant 1 : index
    %c0_11 = arith.constant 0 : index
    %c0_12 = arith.constant 0 : index
    %12 = vector.load %arg11[%c0_10, %c1, %c0_11, %c0_12] : memref<2x8x1x32xf32, #tpu.memory_space<vmem>>, vector<1x1x1x32xf32>
    %13 = vector.shape_cast %12 : vector<1x1x1x32xf32> to vector<1x32xf32>
    %cst_13 = arith.constant dense<0.000000e+00> : vector<16xf32>
    %14 = vector.multi_reduction <add>, %9, %cst_13 [1] : vector<16x32xf32> to vector<16xf32>
    %15 = vector.shape_cast %14 : vector<16xf32> to vector<16x1xf32>
    %cst_14 = arith.constant 3.200000e+01 : f32
    %16 = vector.broadcast %cst_14 : f32 to vector<16x1xf32>
    %17 = arith.divf %15, %16 : vector<16x1xf32>
    %18 = vector.broadcast %17 : vector<16x1xf32> to vector<16x32xf32>
    %19 = arith.subf %9, %18 : vector<16x32xf32>
    %20 = arith.mulf %19, %19 : vector<16x32xf32>
    %cst_15 = arith.constant dense<0.000000e+00> : vector<16xf32>
    %21 = vector.multi_reduction <add>, %20, %cst_15 [1] : vector<16x32xf32> to vector<16xf32>
    %22 = vector.shape_cast %21 : vector<16xf32> to vector<16x1xf32>
    %cst_16 = arith.constant 3.200000e+01 : f32
    %23 = vector.broadcast %cst_16 : f32 to vector<16x1xf32>
    %24 = arith.divf %22, %23 : vector<16x1xf32>
    %cst_17 = arith.constant 9.99999974E-6 : f32
    %25 = vector.broadcast %cst_17 : f32 to vector<16x1xf32>
    %26 = arith.addf %24, %25 : vector<16x1xf32>
    %27 = math.rsqrt %26 : vector<16x1xf32>
    %28 = vector.broadcast %27 : vector<16x1xf32> to vector<16x32xf32>
    %29 = arith.mulf %19, %28 : vector<16x32xf32>
    %30 = vector.broadcast %11 : vector<1x32xf32> to vector<16x32xf32>
    %31 = arith.mulf %29, %30 : vector<16x32xf32>
    %32 = vector.broadcast %13 : vector<1x32xf32> to vector<16x32xf32>
    %33 = arith.addf %31, %32 : vector<16x32xf32>
    %c0_18 = arith.constant 0 : index
    %c0_19 = arith.constant 0 : index
    %c0_20 = arith.constant 0 : index
    %c0_21 = arith.constant 0 : index
    %34 = vector.load %arg4[%c0_18, %c0_19, %c0_20, %c0_21] : memref<4x12x32x8xf32, #tpu.memory_space<vmem>>, vector<1x1x32x8xf32>
    %35 = vector.shape_cast %34 : vector<1x1x32x8xf32> to vector<32x8xf32>
    %cst_22 = arith.constant dense<0.000000e+00> : vector<16x8xf32>
    %36 = tpu.matmul %33, %35, %cst_22 {dimension_numbers = #tpu.dot_dimension_numbers<[1], [0], [0], [1], [0, 0, 1, 1], [], []>} : vector<16x32xf32>, vector<32x8xf32>, vector<16x8xf32> -> vector<16x8xf32>
    %c0_23 = arith.constant 0 : index
    %c0_24 = arith.constant 0 : index
    %c0_25 = arith.constant 0 : index
    %c0_26 = arith.constant 0 : index
    %37 = vector.load %arg5[%c0_23, %c0_24, %c0_25, %c0_26] : memref<4x12x1x8xf32, #tpu.memory_space<vmem>>, vector<1x1x1x8xf32>
    %38 = vector.shape_cast %37 : vector<1x1x1x8xf32> to vector<1x8xf32>
    %39 = vector.broadcast %38 : vector<1x8xf32> to vector<16x8xf32>
    %40 = arith.addf %36, %39 : vector<16x8xf32>
    %c0_27 = arith.constant 0 : index
    %c1_28 = arith.constant 1 : index
    %c0_29 = arith.constant 0 : index
    %c0_30 = arith.constant 0 : index
    %41 = vector.load %arg4[%c0_27, %c1_28, %c0_29, %c0_30] : memref<4x12x32x8xf32, #tpu.memory_space<vmem>>, vector<1x1x32x8xf32>
    %42 = vector.shape_cast %41 : vector<1x1x32x8xf32> to vector<32x8xf32>
    %cst_31 = arith.constant dense<0.000000e+00> : vector<16x8xf32>
    %43 = tpu.matmul %33, %42, %cst_31 {dimension_numbers = #tpu.dot_dimension_numbers<[1], [0], [0], [1], [0, 0, 1, 1], [], []>} : vector<16x32xf32>, vector<32x8xf32>, vector<16x8xf32> -> vector<16x8xf32>
    %c0_32 = arith.constant 0 : index
    %c1_33 = arith.constant 1 : index
    %c0_34 = arith.constant 0 : index
    %c0_35 = arith.constant 0 : index
    %44 = vector.load %arg5[%c0_32, %c1_33, %c0_34, %c0_35] : memref<4x12x1x8xf32, #tpu.memory_space<vmem>>, vector<1x1x1x8xf32>
    %45 = vector.shape_cast %44 : vector<1x1x1x8xf32> to vector<1x8xf32>
    %46 = vector.broadcast %45 : vector<1x8xf32> to vector<16x8xf32>
    %47 = arith.addf %43, %46 : vector<16x8xf32>
    %c0_36 = arith.constant 0 : index
    %c2 = arith.constant 2 : index
    %c0_37 = arith.constant 0 : index
    %c0_38 = arith.constant 0 : index
    %48 = vector.load %arg4[%c0_36, %c2, %c0_37, %c0_38] : memref<4x12x32x8xf32, #tpu.memory_space<vmem>>, vector<1x1x32x8xf32>
    %49 = vector.shape_cast %48 : vector<1x1x32x8xf32> to vector<32x8xf32>
    %cst_39 = arith.constant dense<0.000000e+00> : vector<16x8xf32>
    %50 = tpu.matmul %33, %49, %cst_39 {dimension_numbers = #tpu.dot_dimension_numbers<[1], [0], [0], [1], [0, 0, 1, 1], [], []>} : vector<16x32xf32>, vector<32x8xf32>, vector<16x8xf32> -> vector<16x8xf32>
    %c0_40 = arith.constant 0 : index
    %c2_41 = arith.constant 2 : index
    %c0_42 = arith.constant 0 : index
    %c0_43 = arith.constant 0 : index
    %51 = vector.load %arg5[%c0_40, %c2_41, %c0_42, %c0_43] : memref<4x12x1x8xf32, #tpu.memory_space<vmem>>, vector<1x1x1x8xf32>
    %52 = vector.shape_cast %51 : vector<1x1x1x8xf32> to vector<1x8xf32>
    %53 = vector.broadcast %52 : vector<1x8xf32> to vector<16x8xf32>
    %54 = arith.addf %50, %53 : vector<16x8xf32>
    %c0_44 = arith.constant 0 : index
    %c3 = arith.constant 3 : index
    %c0_45 = arith.constant 0 : index
    %c0_46 = arith.constant 0 : index
    %55 = vector.load %arg4[%c0_44, %c3, %c0_45, %c0_46] : memref<4x12x32x8xf32, #tpu.memory_space<vmem>>, vector<1x1x32x8xf32>
    %56 = vector.shape_cast %55 : vector<1x1x32x8xf32> to vector<32x8xf32>
    %cst_47 = arith.constant dense<0.000000e+00> : vector<16x8xf32>
    %57 = tpu.matmul %33, %56, %cst_47 {dimension_numbers = #tpu.dot_dimension_numbers<[1], [0], [0], [1], [0, 0, 1, 1], [], []>} : vector<16x32xf32>, vector<32x8xf32>, vector<16x8xf32> -> vector<16x8xf32>
    %c0_48 = arith.constant 0 : index
    %c3_49 = arith.constant 3 : index
    %c0_50 = arith.constant 0 : index
    %c0_51 = arith.constant 0 : index
    %58 = vector.load %arg5[%c0_48, %c3_49, %c0_50, %c0_51] : memref<4x12x1x8xf32, #tpu.memory_space<vmem>>, vector<1x1x1x8xf32>
    %59 = vector.shape_cast %58 : vector<1x1x1x8xf32> to vector<1x8xf32>
    %60 = vector.broadcast %59 : vector<1x8xf32> to vector<16x8xf32>
    %61 = arith.addf %57, %60 : vector<16x8xf32>
    %c0_52 = arith.constant 0 : index
    %c4 = arith.constant 4 : index
    %c0_53 = arith.constant 0 : index
    %c0_54 = arith.constant 0 : index
    %62 = vector.load %arg4[%c0_52, %c4, %c0_53, %c0_54] : memref<4x12x32x8xf32, #tpu.memory_space<vmem>>, vector<1x1x32x8xf32>
    %63 = vector.shape_cast %62 : vector<1x1x32x8xf32> to vector<32x8xf32>
    %cst_55 = arith.constant dense<0.000000e+00> : vector<16x8xf32>
    %64 = tpu.matmul %33, %63, %cst_55 {dimension_numbers = #tpu.dot_dimension_numbers<[1], [0], [0], [1], [0, 0, 1, 1], [], []>} : vector<16x32xf32>, vector<32x8xf32>, vector<16x8xf32> -> vector<16x8xf32>
    %c0_56 = arith.constant 0 : index
    %c4_57 = arith.constant 4 : index
    %c0_58 = arith.constant 0 : index
    %c0_59 = arith.constant 0 : index
    %65 = vector.load %arg5[%c0_56, %c4_57, %c0_58, %c0_59] : memref<4x12x1x8xf32, #tpu.memory_space<vmem>>, vector<1x1x1x8xf32>
    %66 = vector.shape_cast %65 : vector<1x1x1x8xf32> to vector<1x8xf32>
    %67 = vector.broadcast %66 : vector<1x8xf32> to vector<16x8xf32>
    %68 = arith.addf %64, %67 : vector<16x8xf32>
    %c0_60 = arith.constant 0 : index
    %c5 = arith.constant 5 : index
    %c0_61 = arith.constant 0 : index
    %c0_62 = arith.constant 0 : index
    %69 = vector.load %arg4[%c0_60, %c5, %c0_61, %c0_62] : memref<4x12x32x8xf32, #tpu.memory_space<vmem>>, vector<1x1x32x8xf32>
    %70 = vector.shape_cast %69 : vector<1x1x32x8xf32> to vector<32x8xf32>
    %cst_63 = arith.constant dense<0.000000e+00> : vector<16x8xf32>
    %71 = tpu.matmul %33, %70, %cst_63 {dimension_numbers = #tpu.dot_dimension_numbers<[1], [0], [0], [1], [0, 0, 1, 1], [], []>} : vector<16x32xf32>, vector<32x8xf32>, vector<16x8xf32> -> vector<16x8xf32>
    %c0_64 = arith.constant 0 : index
    %c5_65 = arith.constant 5 : index
    %c0_66 = arith.constant 0 : index
    %c0_67 = arith.constant 0 : index
    %72 = vector.load %arg5[%c0_64, %c5_65, %c0_66, %c0_67] : memref<4x12x1x8xf32, #tpu.memory_space<vmem>>, vector<1x1x1x8xf32>
    %73 = vector.shape_cast %72 : vector<1x1x1x8xf32> to vector<1x8xf32>
    %74 = vector.broadcast %73 : vector<1x8xf32> to vector<16x8xf32>
    %75 = arith.addf %71, %74 : vector<16x8xf32>
    %c0_68 = arith.constant 0 : index
    %c6 = arith.constant 6 : index
    %c0_69 = arith.constant 0 : index
    %c0_70 = arith.constant 0 : index
    %76 = vector.load %arg4[%c0_68, %c6, %c0_69, %c0_70] : memref<4x12x32x8xf32, #tpu.memory_space<vmem>>, vector<1x1x32x8xf32>
    %77 = vector.shape_cast %76 : vector<1x1x32x8xf32> to vector<32x8xf32>
    %cst_71 = arith.constant dense<0.000000e+00> : vector<16x8xf32>
    %78 = tpu.matmul %33, %77, %cst_71 {dimension_numbers = #tpu.dot_dimension_numbers<[1], [0], [0], [1], [0, 0, 1, 1], [], []>} : vector<16x32xf32>, vector<32x8xf32>, vector<16x8xf32> -> vector<16x8xf32>
    %c0_72 = arith.constant 0 : index
    %c6_73 = arith.constant 6 : index
    %c0_74 = arith.constant 0 : index
    %c0_75 = arith.constant 0 : index
    %79 = vector.load %arg5[%c0_72, %c6_73, %c0_74, %c0_75] : memref<4x12x1x8xf32, #tpu.memory_space<vmem>>, vector<1x1x1x8xf32>
    %80 = vector.shape_cast %79 : vector<1x1x1x8xf32> to vector<1x8xf32>
    %81 = vector.broadcast %80 : vector<1x8xf32> to vector<16x8xf32>
    %82 = arith.addf %78, %81 : vector<16x8xf32>
    %c0_76 = arith.constant 0 : index
    %c7 = arith.constant 7 : index
    %c0_77 = arith.constant 0 : index
    %c0_78 = arith.constant 0 : index
    %83 = vector.load %arg4[%c0_76, %c7, %c0_77, %c0_78] : memref<4x12x32x8xf32, #tpu.memory_space<vmem>>, vector<1x1x32x8xf32>
    %84 = vector.shape_cast %83 : vector<1x1x32x8xf32> to vector<32x8xf32>
    %cst_79 = arith.constant dense<0.000000e+00> : vector<16x8xf32>
    %85 = tpu.matmul %33, %84, %cst_79 {dimension_numbers = #tpu.dot_dimension_numbers<[1], [0], [0], [1], [0, 0, 1, 1], [], []>} : vector<16x32xf32>, vector<32x8xf32>, vector<16x8xf32> -> vector<16x8xf32>
    %c0_80 = arith.constant 0 : index
    %c7_81 = arith.constant 7 : index
    %c0_82 = arith.constant 0 : index
    %c0_83 = arith.constant 0 : index
    %86 = vector.load %arg5[%c0_80, %c7_81, %c0_82, %c0_83] : memref<4x12x1x8xf32, #tpu.memory_space<vmem>>, vector<1x1x1x8xf32>
    %87 = vector.shape_cast %86 : vector<1x1x1x8xf32> to vector<1x8xf32>
    %88 = vector.broadcast %87 : vector<1x8xf32> to vector<16x8xf32>
    %89 = arith.addf %85, %88 : vector<16x8xf32>
    %c0_84 = arith.constant 0 : index
    %c8 = arith.constant 8 : index
    %c0_85 = arith.constant 0 : index
    %c0_86 = arith.constant 0 : index
    %90 = vector.load %arg4[%c0_84, %c8, %c0_85, %c0_86] : memref<4x12x32x8xf32, #tpu.memory_space<vmem>>, vector<1x1x32x8xf32>
    %91 = vector.shape_cast %90 : vector<1x1x32x8xf32> to vector<32x8xf32>
    %cst_87 = arith.constant dense<0.000000e+00> : vector<16x8xf32>
    %92 = tpu.matmul %33, %91, %cst_87 {dimension_numbers = #tpu.dot_dimension_numbers<[1], [0], [0], [1], [0, 0, 1, 1], [], []>} : vector<16x32xf32>, vector<32x8xf32>, vector<16x8xf32> -> vector<16x8xf32>
    %c0_88 = arith.constant 0 : index
    %c8_89 = arith.constant 8 : index
    %c0_90 = arith.constant 0 : index
    %c0_91 = arith.constant 0 : index
    %93 = vector.load %arg5[%c0_88, %c8_89, %c0_90, %c0_91] : memref<4x12x1x8xf32, #tpu.memory_space<vmem>>, vector<1x1x1x8xf32>
    %94 = vector.shape_cast %93 : vector<1x1x1x8xf32> to vector<1x8xf32>
    %95 = vector.broadcast %94 : vector<1x8xf32> to vector<16x8xf32>
    %96 = arith.addf %92, %95 : vector<16x8xf32>
    %c0_92 = arith.constant 0 : index
    %c9 = arith.constant 9 : index
    %c0_93 = arith.constant 0 : index
    %c0_94 = arith.constant 0 : index
    %97 = vector.load %arg4[%c0_92, %c9, %c0_93, %c0_94] : memref<4x12x32x8xf32, #tpu.memory_space<vmem>>, vector<1x1x32x8xf32>
    %98 = vector.shape_cast %97 : vector<1x1x32x8xf32> to vector<32x8xf32>
    %cst_95 = arith.constant dense<0.000000e+00> : vector<16x8xf32>
    %99 = tpu.matmul %33, %98, %cst_95 {dimension_numbers = #tpu.dot_dimension_numbers<[1], [0], [0], [1], [0, 0, 1, 1], [], []>} : vector<16x32xf32>, vector<32x8xf32>, vector<16x8xf32> -> vector<16x8xf32>
    %c0_96 = arith.constant 0 : index
    %c9_97 = arith.constant 9 : index
    %c0_98 = arith.constant 0 : index
    %c0_99 = arith.constant 0 : index
    %100 = vector.load %arg5[%c0_96, %c9_97, %c0_98, %c0_99] : memref<4x12x1x8xf32, #tpu.memory_space<vmem>>, vector<1x1x1x8xf32>
    %101 = vector.shape_cast %100 : vector<1x1x1x8xf32> to vector<1x8xf32>
    %102 = vector.broadcast %101 : vector<1x8xf32> to vector<16x8xf32>
    %103 = arith.addf %99, %102 : vector<16x8xf32>
    %c0_100 = arith.constant 0 : index
    %c10 = arith.constant 10 : index
    %c0_101 = arith.constant 0 : index
    %c0_102 = arith.constant 0 : index
    %104 = vector.load %arg4[%c0_100, %c10, %c0_101, %c0_102] : memref<4x12x32x8xf32, #tpu.memory_space<vmem>>, vector<1x1x32x8xf32>
    %105 = vector.shape_cast %104 : vector<1x1x32x8xf32> to vector<32x8xf32>
    %cst_103 = arith.constant dense<0.000000e+00> : vector<16x8xf32>
    %106 = tpu.matmul %33, %105, %cst_103 {dimension_numbers = #tpu.dot_dimension_numbers<[1], [0], [0], [1], [0, 0, 1, 1], [], []>} : vector<16x32xf32>, vector<32x8xf32>, vector<16x8xf32> -> vector<16x8xf32>
    %c0_104 = arith.constant 0 : index
    %c10_105 = arith.constant 10 : index
    %c0_106 = arith.constant 0 : index
    %c0_107 = arith.constant 0 : index
    %107 = vector.load %arg5[%c0_104, %c10_105, %c0_106, %c0_107] : memref<4x12x1x8xf32, #tpu.memory_space<vmem>>, vector<1x1x1x8xf32>
    %108 = vector.shape_cast %107 : vector<1x1x1x8xf32> to vector<1x8xf32>
    %109 = vector.broadcast %108 : vector<1x8xf32> to vector<16x8xf32>
    %110 = arith.addf %106, %109 : vector<16x8xf32>
    %c0_108 = arith.constant 0 : index
    %c11 = arith.constant 11 : index
    %c0_109 = arith.constant 0 : index
    %c0_110 = arith.constant 0 : index
    %111 = vector.load %arg4[%c0_108, %c11, %c0_109, %c0_110] : memref<4x12x32x8xf32, #tpu.memory_space<vmem>>, vector<1x1x32x8xf32>
    %112 = vector.shape_cast %111 : vector<1x1x32x8xf32> to vector<32x8xf32>
    %cst_111 = arith.constant dense<0.000000e+00> : vector<16x8xf32>
    %113 = tpu.matmul %33, %112, %cst_111 {dimension_numbers = #tpu.dot_dimension_numbers<[1], [0], [0], [1], [0, 0, 1, 1], [], []>} : vector<16x32xf32>, vector<32x8xf32>, vector<16x8xf32> -> vector<16x8xf32>
    %c0_112 = arith.constant 0 : index
    %c11_113 = arith.constant 11 : index
    %c0_114 = arith.constant 0 : index
    %c0_115 = arith.constant 0 : index
    %114 = vector.load %arg5[%c0_112, %c11_113, %c0_114, %c0_115] : memref<4x12x1x8xf32, #tpu.memory_space<vmem>>, vector<1x1x1x8xf32>
    %115 = vector.shape_cast %114 : vector<1x1x1x8xf32> to vector<1x8xf32>
    %116 = vector.broadcast %115 : vector<1x8xf32> to vector<16x8xf32>
    %117 = arith.addf %113, %116 : vector<16x8xf32>
    %c0_116 = arith.constant 0 : index
    %c0_117 = arith.constant 0 : index
    %c0_118 = arith.constant 0 : index
    %c0_119 = arith.constant 0 : index
    %118 = vector.load %arg6[%c0_116, %c0_117, %c0_118, %c0_119] : memref<4x4x8x32xf32, #tpu.memory_space<vmem>>, vector<1x1x8x32xf32>
    %119 = vector.shape_cast %118 : vector<1x1x8x32xf32> to vector<8x32xf32>
    %c0_120 = arith.constant 0 : index
    %c1_121 = arith.constant 1 : index
    %c0_122 = arith.constant 0 : index
    %c0_123 = arith.constant 0 : index
    %120 = vector.load %arg6[%c0_120, %c1_121, %c0_122, %c0_123] : memref<4x4x8x32xf32, #tpu.memory_space<vmem>>, vector<1x1x8x32xf32>
    %121 = vector.shape_cast %120 : vector<1x1x8x32xf32> to vector<8x32xf32>
    %c0_124 = arith.constant 0 : index
    %c2_125 = arith.constant 2 : index
    %c0_126 = arith.constant 0 : index
    %c0_127 = arith.constant 0 : index
    %122 = vector.load %arg6[%c0_124, %c2_125, %c0_126, %c0_127] : memref<4x4x8x32xf32, #tpu.memory_space<vmem>>, vector<1x1x8x32xf32>
    %123 = vector.shape_cast %122 : vector<1x1x8x32xf32> to vector<8x32xf32>
    %c0_128 = arith.constant 0 : index
    %c3_129 = arith.constant 3 : index
    %c0_130 = arith.constant 0 : index
    %c0_131 = arith.constant 0 : index
    %124 = vector.load %arg6[%c0_128, %c3_129, %c0_130, %c0_131] : memref<4x4x8x32xf32, #tpu.memory_space<vmem>>, vector<1x1x8x32xf32>
    %125 = vector.shape_cast %124 : vector<1x1x8x32xf32> to vector<8x32xf32>
    %126 = vector.shape_cast %40 : vector<16x8xf32> to vector<1x16x8xf32>
    %127 = vector.shape_cast %47 : vector<16x8xf32> to vector<1x16x8xf32>
    %128 = vector.shape_cast %54 : vector<16x8xf32> to vector<1x16x8xf32>
    %129 = vector.shape_cast %61 : vector<16x8xf32> to vector<1x16x8xf32>
    %130 = tpu.concatenate %126, %127, %128, %129 in 0 : vector<1x16x8xf32>, vector<1x16x8xf32>, vector<1x16x8xf32>, vector<1x16x8xf32> -> vector<4x16x8xf32>
    %131 = vector.shape_cast %68 : vector<16x8xf32> to vector<1x16x8xf32>
    %132 = vector.shape_cast %75 : vector<16x8xf32> to vector<1x16x8xf32>
    %133 = vector.shape_cast %82 : vector<16x8xf32> to vector<1x16x8xf32>
    %134 = vector.shape_cast %89 : vector<16x8xf32> to vector<1x16x8xf32>
    %135 = tpu.concatenate %131, %132, %133, %134 in 0 : vector<1x16x8xf32>, vector<1x16x8xf32>, vector<1x16x8xf32>, vector<1x16x8xf32> -> vector<4x16x8xf32>
    %136 = vector.shape_cast %96 : vector<16x8xf32> to vector<1x16x8xf32>
    %137 = vector.shape_cast %103 : vector<16x8xf32> to vector<1x16x8xf32>
    %138 = vector.shape_cast %110 : vector<16x8xf32> to vector<1x16x8xf32>
    %139 = vector.shape_cast %117 : vector<16x8xf32> to vector<1x16x8xf32>
    %140 = tpu.concatenate %136, %137, %138, %139 in 0 : vector<1x16x8xf32>, vector<1x16x8xf32>, vector<1x16x8xf32>, vector<1x16x8xf32> -> vector<4x16x8xf32>
    "tpu.trace_start"() <{level = 10 : i32, message = "bqd,bkd->bqk"}> : () -> ()
    %cst_132 = arith.constant dense<0.000000e+00> : vector<4x16x16xf32>
    %141 = tpu.matmul %130, %135, %cst_132 {dimension_numbers = #tpu.dot_dimension_numbers<[2], [2], [1], [1], [0, 0, 0, 1, 1, 1], [0], [0]>} : vector<4x16x8xf32>, vector<4x16x8xf32>, vector<4x16x16xf32> -> vector<4x16x16xf32>
    "tpu.trace_stop"() : () -> ()
    %cst_133 = arith.constant dense<0xFF800000> : vector<4x16xf32>
    %142 = vector.multi_reduction <maximumf>, %141, %cst_133 [2] : vector<4x16x16xf32> to vector<4x16xf32>
    %143 = vector.shape_cast %142 : vector<4x16xf32> to vector<4x16x1xf32>
    %144 = vector.broadcast %143 : vector<4x16x1xf32> to vector<4x16x16xf32>
    %145 = arith.subf %141, %144 : vector<4x16x16xf32>
    %146 = math.exp %145 : vector<4x16x16xf32>
    %cst_134 = arith.constant dense<0.000000e+00> : vector<4x16xf32>
    %147 = vector.multi_reduction <add>, %146, %cst_134 [2] : vector<4x16x16xf32> to vector<4x16xf32>
    %148 = vector.shape_cast %147 : vector<4x16xf32> to vector<4x16x1xf32>
    %149 = tpu.reciprocal %148 {approx = true} : vector<4x16x1xf32> -> vector<4x16x1xf32>
    %150 = vector.broadcast %149 : vector<4x16x1xf32> to vector<4x16x16xf32>
    %151 = arith.mulf %146, %150 : vector<4x16x16xf32>
    "tpu.trace_start"() <{level = 10 : i32, message = "bqk,bkd->bqd"}> : () -> ()
    %cst_135 = arith.constant dense<0.000000e+00> : vector<4x16x8xf32>
    %152 = tpu.matmul %151, %140, %cst_135 {dimension_numbers = #tpu.dot_dimension_numbers<[2], [1], [1], [2], [0, 0, 0, 1, 1, 2], [0], [0]>} : vector<4x16x16xf32>, vector<4x16x8xf32>, vector<4x16x8xf32> -> vector<4x16x8xf32>
    "tpu.trace_stop"() : () -> ()
    %153 = vector.extract_strided_slice %152 {offsets = [0, 0, 0], sizes = [1, 16, 8], strides = [1, 1, 1]} : vector<4x16x8xf32> to vector<1x16x8xf32>
    %154 = vector.shape_cast %153 : vector<1x16x8xf32> to vector<16x8xf32>
    %cst_136 = arith.constant dense<0.000000e+00> : vector<16x32xf32>
    %155 = tpu.matmul %154, %119, %cst_136 {dimension_numbers = #tpu.dot_dimension_numbers<[1], [0], [0], [1], [0, 0, 1, 1], [], []>} : vector<16x8xf32>, vector<8x32xf32>, vector<16x32xf32> -> vector<16x32xf32>
    %156 = vector.extract_strided_slice %152 {offsets = [1, 0, 0], sizes = [1, 16, 8], strides = [1, 1, 1]} : vector<4x16x8xf32> to vector<1x16x8xf32>
    %157 = vector.shape_cast %156 : vector<1x16x8xf32> to vector<16x8xf32>
    %cst_137 = arith.constant dense<0.000000e+00> : vector<16x32xf32>
    %158 = tpu.matmul %157, %121, %cst_137 {dimension_numbers = #tpu.dot_dimension_numbers<[1], [0], [0], [1], [0, 0, 1, 1], [], []>} : vector<16x8xf32>, vector<8x32xf32>, vector<16x32xf32> -> vector<16x32xf32>
    %159 = arith.addf %155, %158 : vector<16x32xf32>
    %160 = vector.extract_strided_slice %152 {offsets = [2, 0, 0], sizes = [1, 16, 8], strides = [1, 1, 1]} : vector<4x16x8xf32> to vector<1x16x8xf32>
    %161 = vector.shape_cast %160 : vector<1x16x8xf32> to vector<16x8xf32>
    %cst_138 = arith.constant dense<0.000000e+00> : vector<16x32xf32>
    %162 = tpu.matmul %161, %123, %cst_138 {dimension_numbers = #tpu.dot_dimension_numbers<[1], [0], [0], [1], [0, 0, 1, 1], [], []>} : vector<16x8xf32>, vector<8x32xf32>, vector<16x32xf32> -> vector<16x32xf32>
    %163 = arith.addf %159, %162 : vector<16x32xf32>
    %164 = vector.extract_strided_slice %152 {offsets = [3, 0, 0], sizes = [1, 16, 8], strides = [1, 1, 1]} : vector<4x16x8xf32> to vector<1x16x8xf32>
    %165 = vector.shape_cast %164 : vector<1x16x8xf32> to vector<16x8xf32>
    %cst_139 = arith.constant dense<0.000000e+00> : vector<16x32xf32>
    %166 = tpu.matmul %165, %125, %cst_139 {dimension_numbers = #tpu.dot_dimension_numbers<[1], [0], [0], [1], [0, 0, 1, 1], [], []>} : vector<16x8xf32>, vector<8x32xf32>, vector<16x32xf32> -> vector<16x32xf32>
    %167 = arith.addf %163, %166 : vector<16x32xf32>
    %168 = arith.addf %9, %167 : vector<16x32xf32>
    %c0_140 = arith.constant 0 : index
    %c6_141 = arith.constant 6 : index
    %c0_142 = arith.constant 0 : index
    %c0_143 = arith.constant 0 : index
    %169 = vector.load %arg11[%c0_140, %c6_141, %c0_142, %c0_143] : memref<2x8x1x32xf32, #tpu.memory_space<vmem>>, vector<1x1x1x32xf32>
    %170 = vector.shape_cast %169 : vector<1x1x1x32xf32> to vector<1x32xf32>
    %171 = vector.broadcast %170 : vector<1x32xf32> to vector<16x32xf32>
    %172 = arith.addf %168, %171 : vector<16x32xf32>
    %c0_144 = arith.constant 0 : index
    %c0_145 = arith.constant 0 : index
    %c0_146 = arith.constant 0 : index
    %173 = vector.load %arg10[%c0_144, %c0_145, %c0_146] : memref<2x33x32xf32, #tpu.memory_space<vmem>>, vector<1x33x32xf32>
    %174 = vector.shape_cast %173 : vector<1x33x32xf32> to vector<33x32xf32>
    %175 = vector.extract_strided_slice %174 {offsets = [0, 0], sizes = [32, 32], strides = [1, 1]} : vector<33x32xf32> to vector<32x32xf32>
    %cst_147 = arith.constant dense<0.000000e+00> : vector<1x32xf32>
    %176 = tpu.matmul %6, %175, %cst_147 {dimension_numbers = #tpu.dot_dimension_numbers<[1], [0], [0], [1], [0, 0, 1, 1], [], []>} : vector<1x32xf32>, vector<32x32xf32>, vector<1x32xf32> -> vector<1x32xf32>
    %177 = vector.extract_strided_slice %174 {offsets = [32, 0], sizes = [1, 32], strides = [1, 1]} : vector<33x32xf32> to vector<1x32xf32>
    %178 = arith.addf %176, %177 : vector<1x32xf32>
    %179 = vector.shape_cast %178 : vector<1x32xf32> to vector<1x1x32xf32>
    %180 = vector.shape_cast %179 : vector<1x1x32xf32> to vector<1x1x32xf32>
    %181 = vector.broadcast %180 : vector<1x1x32xf32> to vector<1x16x32xf32>
    %182 = vector.shape_cast %181 : vector<1x16x32xf32> to vector<16x32xf32>
    %183 = arith.addf %172, %182 : vector<16x32xf32>
    %c0_148 = arith.constant 0 : index
    %c4_149 = arith.constant 4 : index
    %c0_150 = arith.constant 0 : index
    %c0_151 = arith.constant 0 : index
    %184 = vector.load %arg11[%c0_148, %c4_149, %c0_150, %c0_151] : memref<2x8x1x32xf32, #tpu.memory_space<vmem>>, vector<1x1x1x32xf32>
    %185 = vector.shape_cast %184 : vector<1x1x1x32xf32> to vector<1x32xf32>
    %c0_152 = arith.constant 0 : index
    %c5_153 = arith.constant 5 : index
    %c0_154 = arith.constant 0 : index
    %c0_155 = arith.constant 0 : index
    %186 = vector.load %arg11[%c0_152, %c5_153, %c0_154, %c0_155] : memref<2x8x1x32xf32, #tpu.memory_space<vmem>>, vector<1x1x1x32xf32>
    %187 = vector.shape_cast %186 : vector<1x1x1x32xf32> to vector<1x32xf32>
    %cst_156 = arith.constant dense<0.000000e+00> : vector<16xf32>
    %188 = vector.multi_reduction <add>, %183, %cst_156 [1] : vector<16x32xf32> to vector<16xf32>
    %189 = vector.shape_cast %188 : vector<16xf32> to vector<16x1xf32>
    %cst_157 = arith.constant 3.200000e+01 : f32
    %190 = vector.broadcast %cst_157 : f32 to vector<16x1xf32>
    %191 = arith.divf %189, %190 : vector<16x1xf32>
    %192 = vector.broadcast %191 : vector<16x1xf32> to vector<16x32xf32>
    %193 = arith.subf %183, %192 : vector<16x32xf32>
    %194 = arith.mulf %193, %193 : vector<16x32xf32>
    %cst_158 = arith.constant dense<0.000000e+00> : vector<16xf32>
    %195 = vector.multi_reduction <add>, %194, %cst_158 [1] : vector<16x32xf32> to vector<16xf32>
    %196 = vector.shape_cast %195 : vector<16xf32> to vector<16x1xf32>
    %cst_159 = arith.constant 3.200000e+01 : f32
    %197 = vector.broadcast %cst_159 : f32 to vector<16x1xf32>
    %198 = arith.divf %196, %197 : vector<16x1xf32>
    %cst_160 = arith.constant 9.99999974E-6 : f32
    %199 = vector.broadcast %cst_160 : f32 to vector<16x1xf32>
    %200 = arith.addf %198, %199 : vector<16x1xf32>
    %201 = math.rsqrt %200 : vector<16x1xf32>
    %202 = vector.broadcast %201 : vector<16x1xf32> to vector<16x32xf32>
    %203 = arith.mulf %193, %202 : vector<16x32xf32>
    %204 = vector.broadcast %185 : vector<1x32xf32> to vector<16x32xf32>
    %205 = arith.mulf %203, %204 : vector<16x32xf32>
    %206 = vector.broadcast %187 : vector<1x32xf32> to vector<16x32xf32>
    %207 = arith.addf %205, %206 : vector<16x32xf32>
    %c0_161 = arith.constant 0 : index
    %c0_162 = arith.constant 0 : index
    %c0_163 = arith.constant 0 : index
    %208 = vector.load %arg7[%c0_161, %c0_162, %c0_163] : memref<2x33x64xf32, #tpu.memory_space<vmem>>, vector<1x33x64xf32>
    %209 = vector.shape_cast %208 : vector<1x33x64xf32> to vector<33x64xf32>
    %210 = vector.extract_strided_slice %209 {offsets = [0, 0], sizes = [32, 64], strides = [1, 1]} : vector<33x64xf32> to vector<32x64xf32>
    %cst_164 = arith.constant dense<0.000000e+00> : vector<16x64xf32>
    %211 = tpu.matmul %207, %210, %cst_164 {dimension_numbers = #tpu.dot_dimension_numbers<[1], [0], [0], [1], [0, 0, 1, 1], [], []>} : vector<16x32xf32>, vector<32x64xf32>, vector<16x64xf32> -> vector<16x64xf32>
    %212 = vector.extract_strided_slice %209 {offsets = [32, 0], sizes = [1, 64], strides = [1, 1]} : vector<33x64xf32> to vector<1x64xf32>
    %213 = vector.broadcast %212 : vector<1x64xf32> to vector<16x64xf32>
    %214 = arith.addf %211, %213 : vector<16x64xf32>
    %215 = arith.negf %214 : vector<16x64xf32>
    %216 = math.exp %215 : vector<16x64xf32>
    %cst_165 = arith.constant 1.000000e+00 : f32
    %217 = vector.broadcast %cst_165 : f32 to vector<16x64xf32>
    %218 = arith.addf %217, %216 : vector<16x64xf32>
    %219 = arith.divf %217, %218 : vector<16x64xf32>
    %220 = arith.mulf %214, %219 : vector<16x64xf32>
    %c0_166 = arith.constant 0 : index
    %c0_167 = arith.constant 0 : index
    %c0_168 = arith.constant 0 : index
    %221 = vector.load %arg8[%c0_166, %c0_167, %c0_168] : memref<2x65x32xf32, #tpu.memory_space<vmem>>, vector<1x65x32xf32>
    %222 = vector.shape_cast %221 : vector<1x65x32xf32> to vector<65x32xf32>
    %223 = vector.extract_strided_slice %222 {offsets = [0, 0], sizes = [64, 32], strides = [1, 1]} : vector<65x32xf32> to vector<64x32xf32>
    %cst_169 = arith.constant dense<0.000000e+00> : vector<16x32xf32>
    %224 = tpu.matmul %220, %223, %cst_169 {dimension_numbers = #tpu.dot_dimension_numbers<[1], [0], [0], [1], [0, 0, 1, 1], [], []>} : vector<16x64xf32>, vector<64x32xf32>, vector<16x32xf32> -> vector<16x32xf32>
    %225 = arith.addf %183, %224 : vector<16x32xf32>
    %226 = vector.extract_strided_slice %222 {offsets = [64, 0], sizes = [1, 32], strides = [1, 1]} : vector<65x32xf32> to vector<1x32xf32>
    %227 = vector.broadcast %226 : vector<1x32xf32> to vector<16x32xf32>
    %228 = arith.addf %225, %227 : vector<16x32xf32>
    %c1_170 = arith.constant 1 : index
    %c0_171 = arith.constant 0 : index
    %c0_172 = arith.constant 0 : index
    %c0_173 = arith.constant 0 : index
    %229 = vector.load %arg11[%c1_170, %c0_171, %c0_172, %c0_173] : memref<2x8x1x32xf32, #tpu.memory_space<vmem>>, vector<1x1x1x32xf32>
    %230 = vector.shape_cast %229 : vector<1x1x1x32xf32> to vector<1x32xf32>
    %c1_174 = arith.constant 1 : index
    %c1_175 = arith.constant 1 : index
    %c0_176 = arith.constant 0 : index
    %c0_177 = arith.constant 0 : index
    %231 = vector.load %arg11[%c1_174, %c1_175, %c0_176, %c0_177] : memref<2x8x1x32xf32, #tpu.memory_space<vmem>>, vector<1x1x1x32xf32>
    %232 = vector.shape_cast %231 : vector<1x1x1x32xf32> to vector<1x32xf32>
    %cst_178 = arith.constant dense<0.000000e+00> : vector<16xf32>
    %233 = vector.multi_reduction <add>, %228, %cst_178 [1] : vector<16x32xf32> to vector<16xf32>
    %234 = vector.shape_cast %233 : vector<16xf32> to vector<16x1xf32>
    %cst_179 = arith.constant 3.200000e+01 : f32
    %235 = vector.broadcast %cst_179 : f32 to vector<16x1xf32>
    %236 = arith.divf %234, %235 : vector<16x1xf32>
    %237 = vector.broadcast %236 : vector<16x1xf32> to vector<16x32xf32>
    %238 = arith.subf %228, %237 : vector<16x32xf32>
    %239 = arith.mulf %238, %238 : vector<16x32xf32>
    %cst_180 = arith.constant dense<0.000000e+00> : vector<16xf32>
    %240 = vector.multi_reduction <add>, %239, %cst_180 [1] : vector<16x32xf32> to vector<16xf32>
    %241 = vector.shape_cast %240 : vector<16xf32> to vector<16x1xf32>
    %cst_181 = arith.constant 3.200000e+01 : f32
    %242 = vector.broadcast %cst_181 : f32 to vector<16x1xf32>
    %243 = arith.divf %241, %242 : vector<16x1xf32>
    %cst_182 = arith.constant 9.99999974E-6 : f32
    %244 = vector.broadcast %cst_182 : f32 to vector<16x1xf32>
    %245 = arith.addf %243, %244 : vector<16x1xf32>
    %246 = math.rsqrt %245 : vector<16x1xf32>
    %247 = vector.broadcast %246 : vector<16x1xf32> to vector<16x32xf32>
    %248 = arith.mulf %238, %247 : vector<16x32xf32>
    %249 = vector.broadcast %230 : vector<1x32xf32> to vector<16x32xf32>
    %250 = arith.mulf %248, %249 : vector<16x32xf32>
    %251 = vector.broadcast %232 : vector<1x32xf32> to vector<16x32xf32>
    %252 = arith.addf %250, %251 : vector<16x32xf32>
    %c2_183 = arith.constant 2 : index
    %c0_184 = arith.constant 0 : index
    %c0_185 = arith.constant 0 : index
    %c0_186 = arith.constant 0 : index
    %253 = vector.load %arg4[%c2_183, %c0_184, %c0_185, %c0_186] : memref<4x12x32x8xf32, #tpu.memory_space<vmem>>, vector<1x1x32x8xf32>
    %254 = vector.shape_cast %253 : vector<1x1x32x8xf32> to vector<32x8xf32>
    %cst_187 = arith.constant dense<0.000000e+00> : vector<16x8xf32>
    %255 = tpu.matmul %252, %254, %cst_187 {dimension_numbers = #tpu.dot_dimension_numbers<[1], [0], [0], [1], [0, 0, 1, 1], [], []>} : vector<16x32xf32>, vector<32x8xf32>, vector<16x8xf32> -> vector<16x8xf32>
    %c2_188 = arith.constant 2 : index
    %c0_189 = arith.constant 0 : index
    %c0_190 = arith.constant 0 : index
    %c0_191 = arith.constant 0 : index
    %256 = vector.load %arg5[%c2_188, %c0_189, %c0_190, %c0_191] : memref<4x12x1x8xf32, #tpu.memory_space<vmem>>, vector<1x1x1x8xf32>
    %257 = vector.shape_cast %256 : vector<1x1x1x8xf32> to vector<1x8xf32>
    %258 = vector.broadcast %257 : vector<1x8xf32> to vector<16x8xf32>
    %259 = arith.addf %255, %258 : vector<16x8xf32>
    %c2_192 = arith.constant 2 : index
    %c1_193 = arith.constant 1 : index
    %c0_194 = arith.constant 0 : index
    %c0_195 = arith.constant 0 : index
    %260 = vector.load %arg4[%c2_192, %c1_193, %c0_194, %c0_195] : memref<4x12x32x8xf32, #tpu.memory_space<vmem>>, vector<1x1x32x8xf32>
    %261 = vector.shape_cast %260 : vector<1x1x32x8xf32> to vector<32x8xf32>
    %cst_196 = arith.constant dense<0.000000e+00> : vector<16x8xf32>
    %262 = tpu.matmul %252, %261, %cst_196 {dimension_numbers = #tpu.dot_dimension_numbers<[1], [0], [0], [1], [0, 0, 1, 1], [], []>} : vector<16x32xf32>, vector<32x8xf32>, vector<16x8xf32> -> vector<16x8xf32>
    %c2_197 = arith.constant 2 : index
    %c1_198 = arith.constant 1 : index
    %c0_199 = arith.constant 0 : index
    %c0_200 = arith.constant 0 : index
    %263 = vector.load %arg5[%c2_197, %c1_198, %c0_199, %c0_200] : memref<4x12x1x8xf32, #tpu.memory_space<vmem>>, vector<1x1x1x8xf32>
    %264 = vector.shape_cast %263 : vector<1x1x1x8xf32> to vector<1x8xf32>
    %265 = vector.broadcast %264 : vector<1x8xf32> to vector<16x8xf32>
    %266 = arith.addf %262, %265 : vector<16x8xf32>
    %c2_201 = arith.constant 2 : index
    %c2_202 = arith.constant 2 : index
    %c0_203 = arith.constant 0 : index
    %c0_204 = arith.constant 0 : index
    %267 = vector.load %arg4[%c2_201, %c2_202, %c0_203, %c0_204] : memref<4x12x32x8xf32, #tpu.memory_space<vmem>>, vector<1x1x32x8xf32>
    %268 = vector.shape_cast %267 : vector<1x1x32x8xf32> to vector<32x8xf32>
    %cst_205 = arith.constant dense<0.000000e+00> : vector<16x8xf32>
    %269 = tpu.matmul %252, %268, %cst_205 {dimension_numbers = #tpu.dot_dimension_numbers<[1], [0], [0], [1], [0, 0, 1, 1], [], []>} : vector<16x32xf32>, vector<32x8xf32>, vector<16x8xf32> -> vector<16x8xf32>
    %c2_206 = arith.constant 2 : index
    %c2_207 = arith.constant 2 : index
    %c0_208 = arith.constant 0 : index
    %c0_209 = arith.constant 0 : index
    %270 = vector.load %arg5[%c2_206, %c2_207, %c0_208, %c0_209] : memref<4x12x1x8xf32, #tpu.memory_space<vmem>>, vector<1x1x1x8xf32>
    %271 = vector.shape_cast %270 : vector<1x1x1x8xf32> to vector<1x8xf32>
    %272 = vector.broadcast %271 : vector<1x8xf32> to vector<16x8xf32>
    %273 = arith.addf %269, %272 : vector<16x8xf32>
    %c2_210 = arith.constant 2 : index
    %c3_211 = arith.constant 3 : index
    %c0_212 = arith.constant 0 : index
    %c0_213 = arith.constant 0 : index
    %274 = vector.load %arg4[%c2_210, %c3_211, %c0_212, %c0_213] : memref<4x12x32x8xf32, #tpu.memory_space<vmem>>, vector<1x1x32x8xf32>
    %275 = vector.shape_cast %274 : vector<1x1x32x8xf32> to vector<32x8xf32>
    %cst_214 = arith.constant dense<0.000000e+00> : vector<16x8xf32>
    %276 = tpu.matmul %252, %275, %cst_214 {dimension_numbers = #tpu.dot_dimension_numbers<[1], [0], [0], [1], [0, 0, 1, 1], [], []>} : vector<16x32xf32>, vector<32x8xf32>, vector<16x8xf32> -> vector<16x8xf32>
    %c2_215 = arith.constant 2 : index
    %c3_216 = arith.constant 3 : index
    %c0_217 = arith.constant 0 : index
    %c0_218 = arith.constant 0 : index
    %277 = vector.load %arg5[%c2_215, %c3_216, %c0_217, %c0_218] : memref<4x12x1x8xf32, #tpu.memory_space<vmem>>, vector<1x1x1x8xf32>
    %278 = vector.shape_cast %277 : vector<1x1x1x8xf32> to vector<1x8xf32>
    %279 = vector.broadcast %278 : vector<1x8xf32> to vector<16x8xf32>
    %280 = arith.addf %276, %279 : vector<16x8xf32>
    %c2_219 = arith.constant 2 : index
    %c4_220 = arith.constant 4 : index
    %c0_221 = arith.constant 0 : index
    %c0_222 = arith.constant 0 : index
    %281 = vector.load %arg4[%c2_219, %c4_220, %c0_221, %c0_222] : memref<4x12x32x8xf32, #tpu.memory_space<vmem>>, vector<1x1x32x8xf32>
    %282 = vector.shape_cast %281 : vector<1x1x32x8xf32> to vector<32x8xf32>
    %cst_223 = arith.constant dense<0.000000e+00> : vector<16x8xf32>
    %283 = tpu.matmul %252, %282, %cst_223 {dimension_numbers = #tpu.dot_dimension_numbers<[1], [0], [0], [1], [0, 0, 1, 1], [], []>} : vector<16x32xf32>, vector<32x8xf32>, vector<16x8xf32> -> vector<16x8xf32>
    %c2_224 = arith.constant 2 : index
    %c4_225 = arith.constant 4 : index
    %c0_226 = arith.constant 0 : index
    %c0_227 = arith.constant 0 : index
    %284 = vector.load %arg5[%c2_224, %c4_225, %c0_226, %c0_227] : memref<4x12x1x8xf32, #tpu.memory_space<vmem>>, vector<1x1x1x8xf32>
    %285 = vector.shape_cast %284 : vector<1x1x1x8xf32> to vector<1x8xf32>
    %286 = vector.broadcast %285 : vector<1x8xf32> to vector<16x8xf32>
    %287 = arith.addf %283, %286 : vector<16x8xf32>
    %c2_228 = arith.constant 2 : index
    %c5_229 = arith.constant 5 : index
    %c0_230 = arith.constant 0 : index
    %c0_231 = arith.constant 0 : index
    %288 = vector.load %arg4[%c2_228, %c5_229, %c0_230, %c0_231] : memref<4x12x32x8xf32, #tpu.memory_space<vmem>>, vector<1x1x32x8xf32>
    %289 = vector.shape_cast %288 : vector<1x1x32x8xf32> to vector<32x8xf32>
    %cst_232 = arith.constant dense<0.000000e+00> : vector<16x8xf32>
    %290 = tpu.matmul %252, %289, %cst_232 {dimension_numbers = #tpu.dot_dimension_numbers<[1], [0], [0], [1], [0, 0, 1, 1], [], []>} : vector<16x32xf32>, vector<32x8xf32>, vector<16x8xf32> -> vector<16x8xf32>
    %c2_233 = arith.constant 2 : index
    %c5_234 = arith.constant 5 : index
    %c0_235 = arith.constant 0 : index
    %c0_236 = arith.constant 0 : index
    %291 = vector.load %arg5[%c2_233, %c5_234, %c0_235, %c0_236] : memref<4x12x1x8xf32, #tpu.memory_space<vmem>>, vector<1x1x1x8xf32>
    %292 = vector.shape_cast %291 : vector<1x1x1x8xf32> to vector<1x8xf32>
    %293 = vector.broadcast %292 : vector<1x8xf32> to vector<16x8xf32>
    %294 = arith.addf %290, %293 : vector<16x8xf32>
    %c2_237 = arith.constant 2 : index
    %c6_238 = arith.constant 6 : index
    %c0_239 = arith.constant 0 : index
    %c0_240 = arith.constant 0 : index
    %295 = vector.load %arg4[%c2_237, %c6_238, %c0_239, %c0_240] : memref<4x12x32x8xf32, #tpu.memory_space<vmem>>, vector<1x1x32x8xf32>
    %296 = vector.shape_cast %295 : vector<1x1x32x8xf32> to vector<32x8xf32>
    %cst_241 = arith.constant dense<0.000000e+00> : vector<16x8xf32>
    %297 = tpu.matmul %252, %296, %cst_241 {dimension_numbers = #tpu.dot_dimension_numbers<[1], [0], [0], [1], [0, 0, 1, 1], [], []>} : vector<16x32xf32>, vector<32x8xf32>, vector<16x8xf32> -> vector<16x8xf32>
    %c2_242 = arith.constant 2 : index
    %c6_243 = arith.constant 6 : index
    %c0_244 = arith.constant 0 : index
    %c0_245 = arith.constant 0 : index
    %298 = vector.load %arg5[%c2_242, %c6_243, %c0_244, %c0_245] : memref<4x12x1x8xf32, #tpu.memory_space<vmem>>, vector<1x1x1x8xf32>
    %299 = vector.shape_cast %298 : vector<1x1x1x8xf32> to vector<1x8xf32>
    %300 = vector.broadcast %299 : vector<1x8xf32> to vector<16x8xf32>
    %301 = arith.addf %297, %300 : vector<16x8xf32>
    %c2_246 = arith.constant 2 : index
    %c7_247 = arith.constant 7 : index
    %c0_248 = arith.constant 0 : index
    %c0_249 = arith.constant 0 : index
    %302 = vector.load %arg4[%c2_246, %c7_247, %c0_248, %c0_249] : memref<4x12x32x8xf32, #tpu.memory_space<vmem>>, vector<1x1x32x8xf32>
    %303 = vector.shape_cast %302 : vector<1x1x32x8xf32> to vector<32x8xf32>
    %cst_250 = arith.constant dense<0.000000e+00> : vector<16x8xf32>
    %304 = tpu.matmul %252, %303, %cst_250 {dimension_numbers = #tpu.dot_dimension_numbers<[1], [0], [0], [1], [0, 0, 1, 1], [], []>} : vector<16x32xf32>, vector<32x8xf32>, vector<16x8xf32> -> vector<16x8xf32>
    %c2_251 = arith.constant 2 : index
    %c7_252 = arith.constant 7 : index
    %c0_253 = arith.constant 0 : index
    %c0_254 = arith.constant 0 : index
    %305 = vector.load %arg5[%c2_251, %c7_252, %c0_253, %c0_254] : memref<4x12x1x8xf32, #tpu.memory_space<vmem>>, vector<1x1x1x8xf32>
    %306 = vector.shape_cast %305 : vector<1x1x1x8xf32> to vector<1x8xf32>
    %307 = vector.broadcast %306 : vector<1x8xf32> to vector<16x8xf32>
    %308 = arith.addf %304, %307 : vector<16x8xf32>
    %c2_255 = arith.constant 2 : index
    %c8_256 = arith.constant 8 : index
    %c0_257 = arith.constant 0 : index
    %c0_258 = arith.constant 0 : index
    %309 = vector.load %arg4[%c2_255, %c8_256, %c0_257, %c0_258] : memref<4x12x32x8xf32, #tpu.memory_space<vmem>>, vector<1x1x32x8xf32>
    %310 = vector.shape_cast %309 : vector<1x1x32x8xf32> to vector<32x8xf32>
    %cst_259 = arith.constant dense<0.000000e+00> : vector<16x8xf32>
    %311 = tpu.matmul %252, %310, %cst_259 {dimension_numbers = #tpu.dot_dimension_numbers<[1], [0], [0], [1], [0, 0, 1, 1], [], []>} : vector<16x32xf32>, vector<32x8xf32>, vector<16x8xf32> -> vector<16x8xf32>
    %c2_260 = arith.constant 2 : index
    %c8_261 = arith.constant 8 : index
    %c0_262 = arith.constant 0 : index
    %c0_263 = arith.constant 0 : index
    %312 = vector.load %arg5[%c2_260, %c8_261, %c0_262, %c0_263] : memref<4x12x1x8xf32, #tpu.memory_space<vmem>>, vector<1x1x1x8xf32>
    %313 = vector.shape_cast %312 : vector<1x1x1x8xf32> to vector<1x8xf32>
    %314 = vector.broadcast %313 : vector<1x8xf32> to vector<16x8xf32>
    %315 = arith.addf %311, %314 : vector<16x8xf32>
    %c2_264 = arith.constant 2 : index
    %c9_265 = arith.constant 9 : index
    %c0_266 = arith.constant 0 : index
    %c0_267 = arith.constant 0 : index
    %316 = vector.load %arg4[%c2_264, %c9_265, %c0_266, %c0_267] : memref<4x12x32x8xf32, #tpu.memory_space<vmem>>, vector<1x1x32x8xf32>
    %317 = vector.shape_cast %316 : vector<1x1x32x8xf32> to vector<32x8xf32>
    %cst_268 = arith.constant dense<0.000000e+00> : vector<16x8xf32>
    %318 = tpu.matmul %252, %317, %cst_268 {dimension_numbers = #tpu.dot_dimension_numbers<[1], [0], [0], [1], [0, 0, 1, 1], [], []>} : vector<16x32xf32>, vector<32x8xf32>, vector<16x8xf32> -> vector<16x8xf32>
    %c2_269 = arith.constant 2 : index
    %c9_270 = arith.constant 9 : index
    %c0_271 = arith.constant 0 : index
    %c0_272 = arith.constant 0 : index
    %319 = vector.load %arg5[%c2_269, %c9_270, %c0_271, %c0_272] : memref<4x12x1x8xf32, #tpu.memory_space<vmem>>, vector<1x1x1x8xf32>
    %320 = vector.shape_cast %319 : vector<1x1x1x8xf32> to vector<1x8xf32>
    %321 = vector.broadcast %320 : vector<1x8xf32> to vector<16x8xf32>
    %322 = arith.addf %318, %321 : vector<16x8xf32>
    %c2_273 = arith.constant 2 : index
    %c10_274 = arith.constant 10 : index
    %c0_275 = arith.constant 0 : index
    %c0_276 = arith.constant 0 : index
    %323 = vector.load %arg4[%c2_273, %c10_274, %c0_275, %c0_276] : memref<4x12x32x8xf32, #tpu.memory_space<vmem>>, vector<1x1x32x8xf32>
    %324 = vector.shape_cast %323 : vector<1x1x32x8xf32> to vector<32x8xf32>
    %cst_277 = arith.constant dense<0.000000e+00> : vector<16x8xf32>
    %325 = tpu.matmul %252, %324, %cst_277 {dimension_numbers = #tpu.dot_dimension_numbers<[1], [0], [0], [1], [0, 0, 1, 1], [], []>} : vector<16x32xf32>, vector<32x8xf32>, vector<16x8xf32> -> vector<16x8xf32>
    %c2_278 = arith.constant 2 : index
    %c10_279 = arith.constant 10 : index
    %c0_280 = arith.constant 0 : index
    %c0_281 = arith.constant 0 : index
    %326 = vector.load %arg5[%c2_278, %c10_279, %c0_280, %c0_281] : memref<4x12x1x8xf32, #tpu.memory_space<vmem>>, vector<1x1x1x8xf32>
    %327 = vector.shape_cast %326 : vector<1x1x1x8xf32> to vector<1x8xf32>
    %328 = vector.broadcast %327 : vector<1x8xf32> to vector<16x8xf32>
    %329 = arith.addf %325, %328 : vector<16x8xf32>
    %c2_282 = arith.constant 2 : index
    %c11_283 = arith.constant 11 : index
    %c0_284 = arith.constant 0 : index
    %c0_285 = arith.constant 0 : index
    %330 = vector.load %arg4[%c2_282, %c11_283, %c0_284, %c0_285] : memref<4x12x32x8xf32, #tpu.memory_space<vmem>>, vector<1x1x32x8xf32>
    %331 = vector.shape_cast %330 : vector<1x1x32x8xf32> to vector<32x8xf32>
    %cst_286 = arith.constant dense<0.000000e+00> : vector<16x8xf32>
    %332 = tpu.matmul %252, %331, %cst_286 {dimension_numbers = #tpu.dot_dimension_numbers<[1], [0], [0], [1], [0, 0, 1, 1], [], []>} : vector<16x32xf32>, vector<32x8xf32>, vector<16x8xf32> -> vector<16x8xf32>
    %c2_287 = arith.constant 2 : index
    %c11_288 = arith.constant 11 : index
    %c0_289 = arith.constant 0 : index
    %c0_290 = arith.constant 0 : index
    %333 = vector.load %arg5[%c2_287, %c11_288, %c0_289, %c0_290] : memref<4x12x1x8xf32, #tpu.memory_space<vmem>>, vector<1x1x1x8xf32>
    %334 = vector.shape_cast %333 : vector<1x1x1x8xf32> to vector<1x8xf32>
    %335 = vector.broadcast %334 : vector<1x8xf32> to vector<16x8xf32>
    %336 = arith.addf %332, %335 : vector<16x8xf32>
    %c2_291 = arith.constant 2 : index
    %c0_292 = arith.constant 0 : index
    %c0_293 = arith.constant 0 : index
    %c0_294 = arith.constant 0 : index
    %337 = vector.load %arg6[%c2_291, %c0_292, %c0_293, %c0_294] : memref<4x4x8x32xf32, #tpu.memory_space<vmem>>, vector<1x1x8x32xf32>
    %338 = vector.shape_cast %337 : vector<1x1x8x32xf32> to vector<8x32xf32>
    %c2_295 = arith.constant 2 : index
    %c1_296 = arith.constant 1 : index
    %c0_297 = arith.constant 0 : index
    %c0_298 = arith.constant 0 : index
    %339 = vector.load %arg6[%c2_295, %c1_296, %c0_297, %c0_298] : memref<4x4x8x32xf32, #tpu.memory_space<vmem>>, vector<1x1x8x32xf32>
    %340 = vector.shape_cast %339 : vector<1x1x8x32xf32> to vector<8x32xf32>
    %c2_299 = arith.constant 2 : index
    %c2_300 = arith.constant 2 : index
    %c0_301 = arith.constant 0 : index
    %c0_302 = arith.constant 0 : index
    %341 = vector.load %arg6[%c2_299, %c2_300, %c0_301, %c0_302] : memref<4x4x8x32xf32, #tpu.memory_space<vmem>>, vector<1x1x8x32xf32>
    %342 = vector.shape_cast %341 : vector<1x1x8x32xf32> to vector<8x32xf32>
    %c2_303 = arith.constant 2 : index
    %c3_304 = arith.constant 3 : index
    %c0_305 = arith.constant 0 : index
    %c0_306 = arith.constant 0 : index
    %343 = vector.load %arg6[%c2_303, %c3_304, %c0_305, %c0_306] : memref<4x4x8x32xf32, #tpu.memory_space<vmem>>, vector<1x1x8x32xf32>
    %344 = vector.shape_cast %343 : vector<1x1x8x32xf32> to vector<8x32xf32>
    %345 = vector.shape_cast %259 : vector<16x8xf32> to vector<1x16x8xf32>
    %346 = vector.shape_cast %266 : vector<16x8xf32> to vector<1x16x8xf32>
    %347 = vector.shape_cast %273 : vector<16x8xf32> to vector<1x16x8xf32>
    %348 = vector.shape_cast %280 : vector<16x8xf32> to vector<1x16x8xf32>
    %349 = tpu.concatenate %345, %346, %347, %348 in 0 : vector<1x16x8xf32>, vector<1x16x8xf32>, vector<1x16x8xf32>, vector<1x16x8xf32> -> vector<4x16x8xf32>
    %350 = vector.shape_cast %287 : vector<16x8xf32> to vector<1x16x8xf32>
    %351 = vector.shape_cast %294 : vector<16x8xf32> to vector<1x16x8xf32>
    %352 = vector.shape_cast %301 : vector<16x8xf32> to vector<1x16x8xf32>
    %353 = vector.shape_cast %308 : vector<16x8xf32> to vector<1x16x8xf32>
    %354 = tpu.concatenate %350, %351, %352, %353 in 0 : vector<1x16x8xf32>, vector<1x16x8xf32>, vector<1x16x8xf32>, vector<1x16x8xf32> -> vector<4x16x8xf32>
    %355 = vector.shape_cast %315 : vector<16x8xf32> to vector<1x16x8xf32>
    %356 = vector.shape_cast %322 : vector<16x8xf32> to vector<1x16x8xf32>
    %357 = vector.shape_cast %329 : vector<16x8xf32> to vector<1x16x8xf32>
    %358 = vector.shape_cast %336 : vector<16x8xf32> to vector<1x16x8xf32>
    %359 = tpu.concatenate %355, %356, %357, %358 in 0 : vector<1x16x8xf32>, vector<1x16x8xf32>, vector<1x16x8xf32>, vector<1x16x8xf32> -> vector<4x16x8xf32>
    "tpu.trace_start"() <{level = 10 : i32, message = "bqd,bkd->bqk"}> : () -> ()
    %cst_307 = arith.constant dense<0.000000e+00> : vector<4x16x16xf32>
    %360 = tpu.matmul %349, %354, %cst_307 {dimension_numbers = #tpu.dot_dimension_numbers<[2], [2], [1], [1], [0, 0, 0, 1, 1, 1], [0], [0]>} : vector<4x16x8xf32>, vector<4x16x8xf32>, vector<4x16x16xf32> -> vector<4x16x16xf32>
    "tpu.trace_stop"() : () -> ()
    %cst_308 = arith.constant dense<0xFF800000> : vector<4x16xf32>
    %361 = vector.multi_reduction <maximumf>, %360, %cst_308 [2] : vector<4x16x16xf32> to vector<4x16xf32>
    %362 = vector.shape_cast %361 : vector<4x16xf32> to vector<4x16x1xf32>
    %363 = vector.broadcast %362 : vector<4x16x1xf32> to vector<4x16x16xf32>
    %364 = arith.subf %360, %363 : vector<4x16x16xf32>
    %365 = math.exp %364 : vector<4x16x16xf32>
    %cst_309 = arith.constant dense<0.000000e+00> : vector<4x16xf32>
    %366 = vector.multi_reduction <add>, %365, %cst_309 [2] : vector<4x16x16xf32> to vector<4x16xf32>
    %367 = vector.shape_cast %366 : vector<4x16xf32> to vector<4x16x1xf32>
    %368 = tpu.reciprocal %367 {approx = true} : vector<4x16x1xf32> -> vector<4x16x1xf32>
    %369 = vector.broadcast %368 : vector<4x16x1xf32> to vector<4x16x16xf32>
    %370 = arith.mulf %365, %369 : vector<4x16x16xf32>
    "tpu.trace_start"() <{level = 10 : i32, message = "bqk,bkd->bqd"}> : () -> ()
    %cst_310 = arith.constant dense<0.000000e+00> : vector<4x16x8xf32>
    %371 = tpu.matmul %370, %359, %cst_310 {dimension_numbers = #tpu.dot_dimension_numbers<[2], [1], [1], [2], [0, 0, 0, 1, 1, 2], [0], [0]>} : vector<4x16x16xf32>, vector<4x16x8xf32>, vector<4x16x8xf32> -> vector<4x16x8xf32>
    "tpu.trace_stop"() : () -> ()
    %372 = vector.extract_strided_slice %371 {offsets = [0, 0, 0], sizes = [1, 16, 8], strides = [1, 1, 1]} : vector<4x16x8xf32> to vector<1x16x8xf32>
    %373 = vector.shape_cast %372 : vector<1x16x8xf32> to vector<16x8xf32>
    %cst_311 = arith.constant dense<0.000000e+00> : vector<16x32xf32>
    %374 = tpu.matmul %373, %338, %cst_311 {dimension_numbers = #tpu.dot_dimension_numbers<[1], [0], [0], [1], [0, 0, 1, 1], [], []>} : vector<16x8xf32>, vector<8x32xf32>, vector<16x32xf32> -> vector<16x32xf32>
    %375 = vector.extract_strided_slice %371 {offsets = [1, 0, 0], sizes = [1, 16, 8], strides = [1, 1, 1]} : vector<4x16x8xf32> to vector<1x16x8xf32>
    %376 = vector.shape_cast %375 : vector<1x16x8xf32> to vector<16x8xf32>
    %cst_312 = arith.constant dense<0.000000e+00> : vector<16x32xf32>
    %377 = tpu.matmul %376, %340, %cst_312 {dimension_numbers = #tpu.dot_dimension_numbers<[1], [0], [0], [1], [0, 0, 1, 1], [], []>} : vector<16x8xf32>, vector<8x32xf32>, vector<16x32xf32> -> vector<16x32xf32>
    %378 = arith.addf %374, %377 : vector<16x32xf32>
    %379 = vector.extract_strided_slice %371 {offsets = [2, 0, 0], sizes = [1, 16, 8], strides = [1, 1, 1]} : vector<4x16x8xf32> to vector<1x16x8xf32>
    %380 = vector.shape_cast %379 : vector<1x16x8xf32> to vector<16x8xf32>
    %cst_313 = arith.constant dense<0.000000e+00> : vector<16x32xf32>
    %381 = tpu.matmul %380, %342, %cst_313 {dimension_numbers = #tpu.dot_dimension_numbers<[1], [0], [0], [1], [0, 0, 1, 1], [], []>} : vector<16x8xf32>, vector<8x32xf32>, vector<16x32xf32> -> vector<16x32xf32>
    %382 = arith.addf %378, %381 : vector<16x32xf32>
    %383 = vector.extract_strided_slice %371 {offsets = [3, 0, 0], sizes = [1, 16, 8], strides = [1, 1, 1]} : vector<4x16x8xf32> to vector<1x16x8xf32>
    %384 = vector.shape_cast %383 : vector<1x16x8xf32> to vector<16x8xf32>
    %cst_314 = arith.constant dense<0.000000e+00> : vector<16x32xf32>
    %385 = tpu.matmul %384, %344, %cst_314 {dimension_numbers = #tpu.dot_dimension_numbers<[1], [0], [0], [1], [0, 0, 1, 1], [], []>} : vector<16x8xf32>, vector<8x32xf32>, vector<16x32xf32> -> vector<16x32xf32>
    %386 = arith.addf %382, %385 : vector<16x32xf32>
    %387 = arith.addf %228, %386 : vector<16x32xf32>
    %c1_315 = arith.constant 1 : index
    %c6_316 = arith.constant 6 : index
    %c0_317 = arith.constant 0 : index
    %c0_318 = arith.constant 0 : index
    %388 = vector.load %arg11[%c1_315, %c6_316, %c0_317, %c0_318] : memref<2x8x1x32xf32, #tpu.memory_space<vmem>>, vector<1x1x1x32xf32>
    %389 = vector.shape_cast %388 : vector<1x1x1x32xf32> to vector<1x32xf32>
    %390 = vector.broadcast %389 : vector<1x32xf32> to vector<16x32xf32>
    %391 = arith.addf %387, %390 : vector<16x32xf32>
    %c1_319 = arith.constant 1 : index
    %c0_320 = arith.constant 0 : index
    %c0_321 = arith.constant 0 : index
    %392 = vector.load %arg10[%c1_319, %c0_320, %c0_321] : memref<2x33x32xf32, #tpu.memory_space<vmem>>, vector<1x33x32xf32>
    %393 = vector.shape_cast %392 : vector<1x33x32xf32> to vector<33x32xf32>
    %394 = vector.extract_strided_slice %393 {offsets = [0, 0], sizes = [32, 32], strides = [1, 1]} : vector<33x32xf32> to vector<32x32xf32>
    %cst_322 = arith.constant dense<0.000000e+00> : vector<1x32xf32>
    %395 = tpu.matmul %6, %394, %cst_322 {dimension_numbers = #tpu.dot_dimension_numbers<[1], [0], [0], [1], [0, 0, 1, 1], [], []>} : vector<1x32xf32>, vector<32x32xf32>, vector<1x32xf32> -> vector<1x32xf32>
    %396 = vector.extract_strided_slice %393 {offsets = [32, 0], sizes = [1, 32], strides = [1, 1]} : vector<33x32xf32> to vector<1x32xf32>
    %397 = arith.addf %395, %396 : vector<1x32xf32>
    %398 = vector.shape_cast %397 : vector<1x32xf32> to vector<1x1x32xf32>
    %399 = vector.shape_cast %398 : vector<1x1x32xf32> to vector<1x1x32xf32>
    %400 = vector.broadcast %399 : vector<1x1x32xf32> to vector<1x16x32xf32>
    %401 = vector.shape_cast %400 : vector<1x16x32xf32> to vector<16x32xf32>
    %402 = arith.addf %391, %401 : vector<16x32xf32>
    %c1_323 = arith.constant 1 : index
    %c4_324 = arith.constant 4 : index
    %c0_325 = arith.constant 0 : index
    %c0_326 = arith.constant 0 : index
    %403 = vector.load %arg11[%c1_323, %c4_324, %c0_325, %c0_326] : memref<2x8x1x32xf32, #tpu.memory_space<vmem>>, vector<1x1x1x32xf32>
    %404 = vector.shape_cast %403 : vector<1x1x1x32xf32> to vector<1x32xf32>
    %c1_327 = arith.constant 1 : index
    %c5_328 = arith.constant 5 : index
    %c0_329 = arith.constant 0 : index
    %c0_330 = arith.constant 0 : index
    %405 = vector.load %arg11[%c1_327, %c5_328, %c0_329, %c0_330] : memref<2x8x1x32xf32, #tpu.memory_space<vmem>>, vector<1x1x1x32xf32>
    %406 = vector.shape_cast %405 : vector<1x1x1x32xf32> to vector<1x32xf32>
    %cst_331 = arith.constant dense<0.000000e+00> : vector<16xf32>
    %407 = vector.multi_reduction <add>, %402, %cst_331 [1] : vector<16x32xf32> to vector<16xf32>
    %408 = vector.shape_cast %407 : vector<16xf32> to vector<16x1xf32>
    %cst_332 = arith.constant 3.200000e+01 : f32
    %409 = vector.broadcast %cst_332 : f32 to vector<16x1xf32>
    %410 = arith.divf %408, %409 : vector<16x1xf32>
    %411 = vector.broadcast %410 : vector<16x1xf32> to vector<16x32xf32>
    %412 = arith.subf %402, %411 : vector<16x32xf32>
    %413 = arith.mulf %412, %412 : vector<16x32xf32>
    %cst_333 = arith.constant dense<0.000000e+00> : vector<16xf32>
    %414 = vector.multi_reduction <add>, %413, %cst_333 [1] : vector<16x32xf32> to vector<16xf32>
    %415 = vector.shape_cast %414 : vector<16xf32> to vector<16x1xf32>
    %cst_334 = arith.constant 3.200000e+01 : f32
    %416 = vector.broadcast %cst_334 : f32 to vector<16x1xf32>
    %417 = arith.divf %415, %416 : vector<16x1xf32>
    %cst_335 = arith.constant 9.99999974E-6 : f32
    %418 = vector.broadcast %cst_335 : f32 to vector<16x1xf32>
    %419 = arith.addf %417, %418 : vector<16x1xf32>
    %420 = math.rsqrt %419 : vector<16x1xf32>
    %421 = vector.broadcast %420 : vector<16x1xf32> to vector<16x32xf32>
    %422 = arith.mulf %412, %421 : vector<16x32xf32>
    %423 = vector.broadcast %404 : vector<1x32xf32> to vector<16x32xf32>
    %424 = arith.mulf %422, %423 : vector<16x32xf32>
    %425 = vector.broadcast %406 : vector<1x32xf32> to vector<16x32xf32>
    %426 = arith.addf %424, %425 : vector<16x32xf32>
    %c1_336 = arith.constant 1 : index
    %c0_337 = arith.constant 0 : index
    %c0_338 = arith.constant 0 : index
    %427 = vector.load %arg7[%c1_336, %c0_337, %c0_338] : memref<2x33x64xf32, #tpu.memory_space<vmem>>, vector<1x33x64xf32>
    %428 = vector.shape_cast %427 : vector<1x33x64xf32> to vector<33x64xf32>
    %429 = vector.extract_strided_slice %428 {offsets = [0, 0], sizes = [32, 64], strides = [1, 1]} : vector<33x64xf32> to vector<32x64xf32>
    %cst_339 = arith.constant dense<0.000000e+00> : vector<16x64xf32>
    %430 = tpu.matmul %426, %429, %cst_339 {dimension_numbers = #tpu.dot_dimension_numbers<[1], [0], [0], [1], [0, 0, 1, 1], [], []>} : vector<16x32xf32>, vector<32x64xf32>, vector<16x64xf32> -> vector<16x64xf32>
    %431 = vector.extract_strided_slice %428 {offsets = [32, 0], sizes = [1, 64], strides = [1, 1]} : vector<33x64xf32> to vector<1x64xf32>
    %432 = vector.broadcast %431 : vector<1x64xf32> to vector<16x64xf32>
    %433 = arith.addf %430, %432 : vector<16x64xf32>
    %434 = arith.negf %433 : vector<16x64xf32>
    %435 = math.exp %434 : vector<16x64xf32>
    %cst_340 = arith.constant 1.000000e+00 : f32
    %436 = vector.broadcast %cst_340 : f32 to vector<16x64xf32>
    %437 = arith.addf %436, %435 : vector<16x64xf32>
    %438 = arith.divf %436, %437 : vector<16x64xf32>
    %439 = arith.mulf %433, %438 : vector<16x64xf32>
    %c1_341 = arith.constant 1 : index
    %c0_342 = arith.constant 0 : index
    %c0_343 = arith.constant 0 : index
    %440 = vector.load %arg8[%c1_341, %c0_342, %c0_343] : memref<2x65x32xf32, #tpu.memory_space<vmem>>, vector<1x65x32xf32>
    %441 = vector.shape_cast %440 : vector<1x65x32xf32> to vector<65x32xf32>
    %442 = vector.extract_strided_slice %441 {offsets = [0, 0], sizes = [64, 32], strides = [1, 1]} : vector<65x32xf32> to vector<64x32xf32>
    %cst_344 = arith.constant dense<0.000000e+00> : vector<16x32xf32>
    %443 = tpu.matmul %439, %442, %cst_344 {dimension_numbers = #tpu.dot_dimension_numbers<[1], [0], [0], [1], [0, 0, 1, 1], [], []>} : vector<16x64xf32>, vector<64x32xf32>, vector<16x32xf32> -> vector<16x32xf32>
    %444 = arith.addf %402, %443 : vector<16x32xf32>
    %445 = vector.extract_strided_slice %441 {offsets = [64, 0], sizes = [1, 32], strides = [1, 1]} : vector<65x32xf32> to vector<1x32xf32>
    %446 = vector.broadcast %445 : vector<1x32xf32> to vector<16x32xf32>
    %447 = arith.addf %444, %446 : vector<16x32xf32>
    %c0_345 = arith.constant 0 : index
    %c0_346 = arith.constant 0 : index
    %448 = vector.load %arg9[%c0_345, %c0_346] : memref<33x128xf32, #tpu.memory_space<vmem>>, vector<33x128xf32>
    %449 = vector.extract_strided_slice %448 {offsets = [0, 0], sizes = [32, 128], strides = [1, 1]} : vector<33x128xf32> to vector<32x128xf32>
    %cst_347 = arith.constant dense<0.000000e+00> : vector<16x128xf32>
    %450 = tpu.matmul %447, %449, %cst_347 {dimension_numbers = #tpu.dot_dimension_numbers<[1], [0], [0], [1], [0, 0, 1, 1], [], []>} : vector<16x32xf32>, vector<32x128xf32>, vector<16x128xf32> -> vector<16x128xf32>
    %451 = vector.extract_strided_slice %448 {offsets = [32, 0], sizes = [1, 128], strides = [1, 1]} : vector<33x128xf32> to vector<1x128xf32>
    %452 = vector.broadcast %451 : vector<1x128xf32> to vector<16x128xf32>
    %453 = arith.addf %450, %452 : vector<16x128xf32>
    %c0_348 = arith.constant 0 : index
    %c0_349 = arith.constant 0 : index
    %c0_350 = arith.constant 0 : index
    %454 = vector.load %arg12[%c0_348, %c0_349, %c0_350] : memref<1x16x128xf32, #tpu.memory_space<vmem>>, vector<1x16x128xf32>
    %455 = vector.shape_cast %454 : vector<1x16x128xf32> to vector<16x128xf32>
    %456 = vector.shape_cast %453 : vector<16x128xf32> to vector<1x16x128xf32>
    tpu.vector_store %arg12[%c0_348, %c0_349, %c0_350], %456 {strides = array<i32>} : memref<1x16x128xf32, #tpu.memory_space<vmem>>, vector<1x16x128xf32>,
    return
  }
  func.func @transform_0(%arg0: i32) -> (i32, i32, i32) {
    %c0_i32 = arith.constant 0 : i32
    %c0_i32_0 = arith.constant 0 : i32
    %c0_i32_1 = arith.constant 0 : i32
    return %arg0, %c0_i32, %c0_i32_0 : i32, i32, i32
  }
  func.func @transform_1(%arg0: i32) -> (i32, i32) {
    %c0_i32 = arith.constant 0 : i32
    %c0_i32_0 = arith.constant 0 : i32
    %c0_i32_1 = arith.constant 0 : i32
    return %c0_i32, %c0_i32_0 : i32, i32
  }
  func.func @transform_2(%arg0: i32) -> (i32, i32) {
    %c0_i32 = arith.constant 0 : i32
    %c0_i32_0 = arith.constant 0 : i32
    %c0_i32_1 = arith.constant 0 : i32
    return %c0_i32, %c0_i32_0 : i32, i32
  }
  func.func @transform_3(%arg0: i32) -> (i32, i32, i32, i32) {
    %c0_i32 = arith.constant 0 : i32
    %c0_i32_0 = arith.constant 0 : i32
    %c0_i32_1 = arith.constant 0 : i32
    %c0_i32_2 = arith.constant 0 : i32
    %c0_i32_3 = arith.constant 0 : i32
    return %c0_i32, %c0_i32_0, %c0_i32_1, %c0_i32_2 : i32, i32, i32, i32
  }
  func.func @transform_4(%arg0: i32) -> (i32, i32, i32, i32) {
    %c0_i32 = arith.constant 0 : i32
    %c0_i32_0 = arith.constant 0 : i32
    %c0_i32_1 = arith.constant 0 : i32
    %c0_i32_2 = arith.constant 0 : i32
    %c0_i32_3 = arith.constant 0 : i32
    return %c0_i32, %c0_i32_0, %c0_i32_1, %c0_i32_2 : i32, i32, i32, i32
  }
  func.func @transform_5(%arg0: i32) -> (i32, i32, i32, i32) {
    %c0_i32 = arith.constant 0 : i32
    %c0_i32_0 = arith.constant 0 : i32
    %c0_i32_1 = arith.constant 0 : i32
    %c0_i32_2 = arith.constant 0 : i32
    %c0_i32_3 = arith.constant 0 : i32
    return %c0_i32, %c0_i32_0, %c0_i32_1, %c0_i32_2 : i32, i32, i32, i32
  }
  func.func @transform_6(%arg0: i32) -> (i32, i32, i32) {
    %c0_i32 = arith.constant 0 : i32
    %c0_i32_0 = arith.constant 0 : i32
    %c0_i32_1 = arith.constant 0 : i32
    %c0_i32_2 = arith.constant 0 : i32
    return %c0_i32, %c0_i32_0, %c0_i32_1 : i32, i32, i32
  }
  func.func @transform_7(%arg0: i32) -> (i32, i32, i32) {
    %c0_i32 = arith.constant 0 : i32
    %c0_i32_0 = arith.constant 0 : i32
    %c0_i32_1 = arith.constant 0 : i32
    %c0_i32_2 = arith.constant 0 : i32
    return %c0_i32, %c0_i32_0, %c0_i32_1 : i32, i32, i32
  }
  func.func @transform_8(%arg0: i32) -> (i32, i32) {
    %c0_i32 = arith.constant 0 : i32
    %c0_i32_0 = arith.constant 0 : i32
    %c0_i32_1 = arith.constant 0 : i32
    return %c0_i32, %c0_i32_0 : i32, i32
  }
  func.func @transform_9(%arg0: i32) -> (i32, i32, i32) {
    %c0_i32 = arith.constant 0 : i32
    %c0_i32_0 = arith.constant 0 : i32
    %c0_i32_1 = arith.constant 0 : i32
    %c0_i32_2 = arith.constant 0 : i32
    return %c0_i32, %c0_i32_0, %c0_i32_1 : i32, i32, i32
  }
  func.func @transform_10(%arg0: i32) -> (i32, i32, i32, i32) {
    %c0_i32 = arith.constant 0 : i32
    %c0_i32_0 = arith.constant 0 : i32
    %c0_i32_1 = arith.constant 0 : i32
    %c0_i32_2 = arith.constant 0 : i32
    %c0_i32_3 = arith.constant 0 : i32
    return %c0_i32, %c0_i32_0, %c0_i32_1, %c0_i32_2 : i32, i32, i32, i32
  }
  func.func @transform_11(%arg0: i32) -> (i32, i32, i32) {
    %c0_i32 = arith.constant 0 : i32
    %c0_i32_0 = arith.constant 0 : i32
    %c0_i32_1 = arith.constant 0 : i32
    return %arg0, %c0_i32, %c0_i32_0 : i32, i32, i32
  }
}

</mosaic_0001>

<llo_original>
// kernel: tpu_custom_call.1
$region0: #{tpu_custom_call.1}
  #allocation0 [shape = 'u32[]', space=smem, size = 0x4, offset = 0x4, fixed_abs, tag = 'smem constant byte address 0x4 - core index']
  #allocation1 [shape = 'u32[72,128]{1,0:T(1,128)}', space=vmem, size = 0x9000, scoped, tag = 'internal scratch']
  %s0 = inlined_call_operand.vmem [shape: f32[2,1,16], index: 0, kind: input, shape index: {}]
  %s1 = inlined_call_operand.vmem [shape: f32[16,32], index: 1, kind: input, shape index: {}]
  %s2 = inlined_call_operand.vmem [shape: f32[17,32], index: 2, kind: input, shape index: {}]
  %s3 = inlined_call_operand.vmem [shape: f32[4,12,32,8], index: 3, kind: input, shape index: {}]
  %s4 = inlined_call_operand.vmem [shape: f32[4,12,1,8], index: 4, kind: input, shape index: {}]
  %s5 = inlined_call_operand.vmem [shape: f32[4,4,8,32], index: 5, kind: input, shape index: {}]
  %s6 = inlined_call_operand.vmem [shape: f32[2,33,64], index: 6, kind: input, shape index: {}]
  %s7 = inlined_call_operand.vmem [shape: f32[2,65,32], index: 7, kind: input, shape index: {}]
  %s8 = inlined_call_operand.vmem [shape: f32[33,128], index: 8, kind: input, shape index: {}]
  %s9 = inlined_call_operand.vmem [shape: f32[2,33,32], index: 9, kind: input, shape index: {}]
  %s10 = inlined_call_operand.vmem [shape: f32[2,8,1,32], index: 10, kind: input, shape index: {}]
  %s11 = inlined_call_operand.hbm [shape: f32[2,16,128], index: 11, kind: output, shape index: {}]
  %s12 = sld [smem:[#allocation0]]
  $region77: #{tpu_custom_call.1} parent=0
    _
  %s14 = ssub.s32 1, %s12
  %s15 = scalar_select 0, %s14, %s12
  $region1: #{tpu_custom_call.1} parent=0
    #allocation2 [shape = 'u8[16384]{0}', space=vmem, size = 0x4000, scoped, tag = 'output window, operand 0']
    #allocation3 [shape = 's32[2]{0}', space=sflag, size = 0x8, scoped, tag = 'scoped memory for tpu_custom_call.1']
    %16 = vsyncpa [#allocation3], 0
    %s17 = scalar_lea.sflag [#allocation3], 1
    %18 = vsyncpa %s17, 0
    loop: start=0, step=1, limit=4
    $region2: #{tpu_custom_call.1} parent=1 // loop_pre_header
      _
    $region3: #{tpu_custom_call.1} parent=1 // loop_header
      %s20 = sphi 0, %s24
      %p21 = scmp.ge.s32.totalorder %s20, 4
      %s30 = sphi 0, %s32
      %s33 = sphi 0, %s30
      %s34 = sphi 0, %s33
      %s50 = sphi 0, %s34
      %s54 = sphi 0, %s54
      %s56 = sphi 0, %s54
      %s57 = sphi 0, %s56
      %s71 = sphi 0, %s57
      %s75 = sphi 0, %s75
      %s77 = sphi 0, %s75
      %s78 = sphi 0, %s77
      %s92 = sphi 0, %s78
      %s96 = sphi 0, %s96
      %s98 = sphi 0, %s96
      %s99 = sphi 0, %s98
      %s113 = sphi 0, %s99
      %s117 = sphi 0, %s117
      %s119 = sphi 0, %s117
      %s120 = sphi 0, %s119
      %s134 = sphi 0, %s120
      %s138 = sphi 0, %s138
      %s140 = sphi 0, %s138
      %s141 = sphi 0, %s140
      %s155 = sphi 0, %s141
      %s159 = sphi 0, %s159
      %s161 = sphi 0, %s159
      %s162 = sphi 0, %s161
      %s176 = sphi 0, %s162
      %s180 = sphi 0, %s180
      %s182 = sphi 0, %s180
      %s183 = sphi 0, %s182
      %s197 = sphi 0, %s183
      %s201 = sphi 0, %s201
      %s203 = sphi 0, %s201
      %s204 = sphi 0, %s203
      %s218 = sphi 0, %s204
      %s222 = sphi 0, %s222
      %s224 = sphi 0, %s222
      %s225 = sphi 0, %s224
      %s239 = sphi 0, %s225
      %s243 = sphi 0, %s243
      %s245 = sphi 0, %s243
      %s246 = sphi 0, %s245
      %s260 = sphi 0, %s246
      %s266 = sphi 0, %s268
      %s269 = sphi 0, %s266
      %s270 = sphi 0, %s269
      %s286 = sphi 0, %s270
    $region4: #{tpu_custom_call.1} parent=1 // loop_header_branch
      %23 = sbr.rel (%p21) target = $region8
    $region5: #{tpu_custom_call.1} parent=1 // loop_body
      %s25 = ssub.s32 %s20, 1
      %s26 = ssub.s32 %s20, 2
      %s27 = sadd.s32 %s20, 1
      %s28 = ssub.s32 %s20, %s27
      %p29 = scmp.eq.s32.totalorder %s28, 0
      %s31 = sadd.s32 %s30, 1
      %s32 = scalar_select %p29, %s30, %s31
      %p35 = pneg %p29
      %p36 = scmp.eq.s32.totalorder %s20, 1
      %p37 = por %p35, %p36
      %p38 = scmp.ne.s32.totalorder %s30, %s33
      %p39 = scmp.eq.s32.totalorder %s20, 0
      %p40 = por %p38, %p39
      %p41 = scmp.ne.s32.totalorder %s30, %s33
      %p42 = scmp.eq.s32.totalorder %s25, 1
      %p43 = por %p41, %p42
      %p44 = scmp.ne.s32.totalorder %s33, %s34
      %p45 = scmp.eq.s32.totalorder %s25, 0
      %p46 = por %p44, %p45
      %p47 = scmp.ne.s32.totalorder %s33, %s34
      %p48 = scmp.eq.s32.totalorder %s26, 1
      %p49 = por %p47, %p48
      %p51 = scmp.ne.s32.totalorder %s34, %s50
      %p52 = scmp.eq.s32.totalorder %s26, 0
      %p53 = por %p51, %p52
      %s55 = sadd.s32 %s54, 1
      %p58 = scmp.eq.s32.totalorder %s20, 1
      %p59 = scmp.ne.s32.totalorder %s54, %s56
      %p60 = scmp.eq.s32.totalorder %s20, 0
      %p61 = por %p59, %p60
      %p62 = scmp.ne.s32.totalorder %s54, %s56
      %p63 = scmp.eq.s32.totalorder %s25, 1
      %p64 = por %p62, %p63
      %p65 = scmp.ne.s32.totalorder %s56, %s57
      %p66 = scmp.eq.s32.totalorder %s25, 0
      %p67 = por %p65, %p66
      %p68 = scmp.ne.s32.totalorder %s56, %s57
      %p69 = scmp.eq.s32.totalorder %s26, 1
      %p70 = por %p68, %p69
      %p72 = scmp.ne.s32.totalorder %s57, %s71
      %p73 = scmp.eq.s32.totalorder %s26, 0
      %p74 = por %p72, %p73
      %s76 = sadd.s32 %s75, 1
      %p79 = scmp.eq.s32.totalorder %s20, 1
      %p80 = scmp.ne.s32.totalorder %s75, %s77
      %p81 = scmp.eq.s32.totalorder %s20, 0
      %p82 = por %p80, %p81
      %p83 = scmp.ne.s32.totalorder %s75, %s77
      %p84 = scmp.eq.s32.totalorder %s25, 1
      %p85 = por %p83, %p84
      %p86 = scmp.ne.s32.totalorder %s77, %s78
      %p87 = scmp.eq.s32.totalorder %s25, 0
      %p88 = por %p86, %p87
      %p89 = scmp.ne.s32.totalorder %s77, %s78
      %p90 = scmp.eq.s32.totalorder %s26, 1
      %p91 = por %p89, %p90
      %p93 = scmp.ne.s32.totalorder %s78, %s92
      %p94 = scmp.eq.s32.totalorder %s26, 0
      %p95 = por %p93, %p94
      %s97 = sadd.s32 %s96, 1
      %p100 = scmp.eq.s32.totalorder %s20, 1
      %p101 = scmp.ne.s32.totalorder %s96, %s98
      %p102 = scmp.eq.s32.totalorder %s20, 0
      %p103 = por %p101, %p102
      %p104 = scmp.ne.s32.totalorder %s96, %s98
      %p105 = scmp.eq.s32.totalorder %s25, 1
      %p106 = por %p104, %p105
      %p107 = scmp.ne.s32.totalorder %s98, %s99
      %p108 = scmp.eq.s32.totalorder %s25, 0
      %p109 = por %p107, %p108
      %p110 = scmp.ne.s32.totalorder %s98, %s99
      %p111 = scmp.eq.s32.totalorder %s26, 1
      %p112 = por %p110, %p111
      %p114 = scmp.ne.s32.totalorder %s99, %s113
      %p115 = scmp.eq.s32.totalorder %s26, 0
      %p116 = por %p114, %p115
      %s118 = sadd.s32 %s117, 1
      %p121 = scmp.eq.s32.totalorder %s20, 1
      %p122 = scmp.ne.s32.totalorder %s117, %s119
      %p123 = scmp.eq.s32.totalorder %s20, 0
      %p124 = por %p122, %p123
      %p125 = scmp.ne.s32.totalorder %s117, %s119
      %p126 = scmp.eq.s32.totalorder %s25, 1
      %p127 = por %p125, %p126
      %p128 = scmp.ne.s32.totalorder %s119, %s120
      %p129 = scmp.eq.s32.totalorder %s25, 0
      %p130 = por %p128, %p129
      %p131 = scmp.ne.s32.totalorder %s119, %s120
      %p132 = scmp.eq.s32.totalorder %s26, 1
      %p133 = por %p131, %p132
      %p135 = scmp.ne.s32.totalorder %s120, %s134
      %p136 = scmp.eq.s32.totalorder %s26, 0
      %p137 = por %p135, %p136
      %s139 = sadd.s32 %s138, 1
      %p142 = scmp.eq.s32.totalorder %s20, 1
      %p143 = scmp.ne.s32.totalorder %s138, %s140
      %p144 = scmp.eq.s32.totalorder %s20, 0
      %p145 = por %p143, %p144
      %p146 = scmp.ne.s32.totalorder %s138, %s140
      %p147 = scmp.eq.s32.totalorder %s25, 1
      %p148 = por %p146, %p147
      %p149 = scmp.ne.s32.totalorder %s140, %s141
      %p150 = scmp.eq.s32.totalorder %s25, 0
      %p151 = por %p149, %p150
      %p152 = scmp.ne.s32.totalorder %s140, %s141
      %p153 = scmp.eq.s32.totalorder %s26, 1
      %p154 = por %p152, %p153
      %p156 = scmp.ne.s32.totalorder %s141, %s155
      %p157 = scmp.eq.s32.totalorder %s26, 0
      %p158 = por %p156, %p157
      %s160 = sadd.s32 %s159, 1
      %p163 = scmp.eq.s32.totalorder %s20, 1
      %p164 = scmp.ne.s32.totalorder %s159, %s161
      %p165 = scmp.eq.s32.totalorder %s20, 0
      %p166 = por %p164, %p165
      %p167 = scmp.ne.s32.totalorder %s159, %s161
      %p168 = scmp.eq.s32.totalorder %s25, 1
      %p169 = por %p167, %p168
      %p170 = scmp.ne.s32.totalorder %s161, %s162
      %p171 = scmp.eq.s32.totalorder %s25, 0
      %p172 = por %p170, %p171
      %p173 = scmp.ne.s32.totalorder %s161, %s162
      %p174 = scmp.eq.s32.totalorder %s26, 1
      %p175 = por %p173, %p174
      %p177 = scmp.ne.s32.totalorder %s162, %s176
      %p178 = scmp.eq.s32.totalorder %s26, 0
      %p179 = por %p177, %p178
      %s181 = sadd.s32 %s180, 1
      %p184 = scmp.eq.s32.totalorder %s20, 1
      %p185 = scmp.ne.s32.totalorder %s180, %s182
      %p186 = scmp.eq.s32.totalorder %s20, 0
      %p187 = por %p185, %p186
      %p188 = scmp.ne.s32.totalorder %s180, %s182
      %p189 = scmp.eq.s32.totalorder %s25, 1
      %p190 = por %p188, %p189
      %p191 = scmp.ne.s32.totalorder %s182, %s183
      %p192 = scmp.eq.s32.totalorder %s25, 0
      %p193 = por %p191, %p192
      %p194 = scmp.ne.s32.totalorder %s182, %s183
      %p195 = scmp.eq.s32.totalorder %s26, 1
      %p196 = por %p194, %p195
      %p198 = scmp.ne.s32.totalorder %s183, %s197
      %p199 = scmp.eq.s32.totalorder %s26, 0
      %p200 = por %p198, %p199
      %s202 = sadd.s32 %s201, 1
      %p205 = scmp.eq.s32.totalorder %s20, 1
      %p206 = scmp.ne.s32.totalorder %s201, %s203
      %p207 = scmp.eq.s32.totalorder %s20, 0
      %p208 = por %p206, %p207
      %p209 = scmp.ne.s32.totalorder %s201, %s203
      %p210 = scmp.eq.s32.totalorder %s25, 1
      %p211 = por %p209, %p210
      %p212 = scmp.ne.s32.totalorder %s203, %s204
      %p213 = scmp.eq.s32.totalorder %s25, 0
      %p214 = por %p212, %p213
      %p215 = scmp.ne.s32.totalorder %s203, %s204
      %p216 = scmp.eq.s32.totalorder %s26, 1
      %p217 = por %p215, %p216
      %p219 = scmp.ne.s32.totalorder %s204, %s218
      %p220 = scmp.eq.s32.totalorder %s26, 0
      %p221 = por %p219, %p220
      %s223 = sadd.s32 %s222, 1
      %p226 = scmp.eq.s32.totalorder %s20, 1
      %p227 = scmp.ne.s32.totalorder %s222, %s224
      %p228 = scmp.eq.s32.totalorder %s20, 0
      %p229 = por %p227, %p228
      %p230 = scmp.ne.s32.totalorder %s222, %s224
      %p231 = scmp.eq.s32.totalorder %s25, 1
      %p232 = por %p230, %p231
      %p233 = scmp.ne.s32.totalorder %s224, %s225
      %p234 = scmp.eq.s32.totalorder %s25, 0
      %p235 = por %p233, %p234
      %p236 = scmp.ne.s32.totalorder %s224, %s225
      %p237 = scmp.eq.s32.totalorder %s26, 1
      %p238 = por %p236, %p237
      %p240 = scmp.ne.s32.totalorder %s225, %s239
      %p241 = scmp.eq.s32.totalorder %s26, 0
      %p242 = por %p240, %p241
      %s244 = sadd.s32 %s243, 1
      %p247 = scmp.eq.s32.totalorder %s20, 1
      %p248 = scmp.ne.s32.totalorder %s243, %s245
      %p249 = scmp.eq.s32.totalorder %s20, 0
      %p250 = por %p248, %p249
      %p251 = scmp.ne.s32.totalorder %s243, %s245
      %p252 = scmp.eq.s32.totalorder %s25, 1
      %p253 = por %p251, %p252
      %p254 = scmp.ne.s32.totalorder %s245, %s246
      %p255 = scmp.eq.s32.totalorder %s25, 0
      %p256 = por %p254, %p255
      %p257 = scmp.ne.s32.totalorder %s245, %s246
      %p258 = scmp.eq.s32.totalorder %s26, 1
      %p259 = por %p257, %p258
      %p261 = scmp.ne.s32.totalorder %s246, %s260
      %p262 = scmp.eq.s32.totalorder %s26, 0
      %p263 = por %p261, %p262
      %s264 = ssub.s32 %s20, %s27
      %p265 = scmp.eq.s32.totalorder %s264, 0
      %s267 = sadd.s32 %s266, 1
      %s268 = scalar_select %p265, %s266, %s267
      %p271 = pneg %p265
      %p272 = scmp.eq.s32.totalorder %s20, 1
      %p273 = por %p271, %p272
      %p274 = scmp.ne.s32.totalorder %s266, %s269
      %p275 = scmp.eq.s32.totalorder %s20, 0
      %p276 = por %p274, %p275
      %p277 = scmp.ne.s32.totalorder %s266, %s269
      %p278 = scmp.eq.s32.totalorder %s25, 1
      %p279 = por %p277, %p278
      %p280 = scmp.ne.s32.totalorder %s269, %s270
      %p281 = scmp.eq.s32.totalorder %s25, 0
      %p282 = por %p280, %p281
      %p283 = scmp.ne.s32.totalorder %s269, %s270
      %p284 = scmp.eq.s32.totalorder %s26, 1
      %p285 = por %p283, %p284
      %p287 = scmp.ne.s32.totalorder %s270, %s286
      %p288 = scmp.eq.s32.totalorder %s26, 0
      %p289 = por %p287, %p288
      %p290 = scmp.le.s32.totalorder 1, %s20
      %p291 = scmp.lt.s32.totalorder %s20, 3
      %p292 = pnand %p290, %p291
      %p293 = pneg %p292
      // Predicated region
      $region9: #{tpu_custom_call.1} parent=5 // pred_check
        _
      $region10: #{tpu_custom_call.1} parent=5 // pred_check_branch
        %295 = sbr.rel (%p292) target = $region12
      $region11: #{tpu_custom_call.1} parent=5 // pred_region
        %s296 = ssub.s32 %s20, 1
        // Predicated region
        $region13: #{tpu_custom_call.1} parent=11 // pred_check
          %p297 = pneg %p67
        $region14: #{tpu_custom_call.1} parent=11 // pred_check_branch
          %299 = sbr.rel (%p297) target = $region16
        $region15: #{tpu_custom_call.1} parent=11 // pred_region
          _
        $region16: #{tpu_custom_call.1} parent=11 // pred_fallthru
          _
        // Predicated region
        $region17: #{tpu_custom_call.1} parent=11 // pred_check
          %p300 = pneg %p88
        $region18: #{tpu_custom_call.1} parent=11 // pred_check_branch
          %302 = sbr.rel (%p300) target = $region20
        $region19: #{tpu_custom_call.1} parent=11 // pred_region
          _
        $region20: #{tpu_custom_call.1} parent=11 // pred_fallthru
          _
        // Predicated region
        $region21: #{tpu_custom_call.1} parent=11 // pred_check
          %p303 = pneg %p109
        $region22: #{tpu_custom_call.1} parent=11 // pred_check_branch
          %305 = sbr.rel (%p303) target = $region24
        $region23: #{tpu_custom_call.1} parent=11 // pred_region
          _
        $region24: #{tpu_custom_call.1} parent=11 // pred_fallthru
          _
        // Predicated region
        $region25: #{tpu_custom_call.1} parent=11 // pred_check
          %p306 = pneg %p130
        $region26: #{tpu_custom_call.1} parent=11 // pred_check_branch
          %308 = sbr.rel (%p306) target = $region28
        $region27: #{tpu_custom_call.1} parent=11 // pred_region
          _
        $region28: #{tpu_custom_call.1} parent=11 // pred_fallthru
          _
        // Predicated region
        $region29: #{tpu_custom_call.1} parent=11 // pred_check
          %p309 = pneg %p151
        $region30: #{tpu_custom_call.1} parent=11 // pred_check_branch
          %311 = sbr.rel (%p309) target = $region32
        $region31: #{tpu_custom_call.1} parent=11 // pred_region
          _
        $region32: #{tpu_custom_call.1} parent=11 // pred_fallthru
          _
        // Predicated region
        $region33: #{tpu_custom_call.1} parent=11 // pred_check
          %p312 = pneg %p172
        $region34: #{tpu_custom_call.1} parent=11 // pred_check_branch
          %314 = sbr.rel (%p312) target = $region36
        $region35: #{tpu_custom_call.1} parent=11 // pred_region
          _
        $region36: #{tpu_custom_call.1} parent=11 // pred_fallthru
          _
        // Predicated region
        $region37: #{tpu_custom_call.1} parent=11 // pred_check
          %p315 = pneg %p193
        $region38: #{tpu_custom_call.1} parent=11 // pred_check_branch
          %317 = sbr.rel (%p315) target = $region40
        $region39: #{tpu_custom_call.1} parent=11 // pred_region
          _
        $region40: #{tpu_custom_call.1} parent=11 // pred_fallthru
          _
        // Predicated region
        $region41: #{tpu_custom_call.1} parent=11 // pred_check
          %p318 = pneg %p214
        $region42: #{tpu_custom_call.1} parent=11 // pred_check_branch
          %320 = sbr.rel (%p318) target = $region44
        $region43: #{tpu_custom_call.1} parent=11 // pred_region
          _
        $region44: #{tpu_custom_call.1} parent=11 // pred_fallthru
          _
        // Predicated region
        $region45: #{tpu_custom_call.1} parent=11 // pred_check
          %p321 = pneg %p235
        $region46: #{tpu_custom_call.1} parent=11 // pred_check_branch
          %323 = sbr.rel (%p321) target = $region48
        $region47: #{tpu_custom_call.1} parent=11 // pred_region
          _
        $region48: #{tpu_custom_call.1} parent=11 // pred_fallthru
          _
        // Predicated region
        $region49: #{tpu_custom_call.1} parent=11 // pred_check
          %p324 = pneg %p256
        $region50: #{tpu_custom_call.1} parent=11 // pred_check_branch
          %326 = sbr.rel (%p324) target = $region52
        $region51: #{tpu_custom_call.1} parent=11 // pred_region
          _
        $region52: #{tpu_custom_call.1} parent=11 // pred_fallthru
          _
      $region12: #{tpu_custom_call.1} parent=5 // pred_fallthru
        _
      %p327 = scmp.lt.s32.totalorder %s20, 2
      // Predicated region
      $region53: #{tpu_custom_call.1} parent=5 // pred_check
        %p328 = pneg %p327
      $region54: #{tpu_custom_call.1} parent=5 // pred_check_branch
        %330 = sbr.rel (%p328) target = $region56
      $region55: #{tpu_custom_call.1} parent=5 // pred_region
        // Predicated region
        $region57: #{tpu_custom_call.1} parent=55 // pred_check
          %p331 = pneg %p40
        $region58: #{tpu_custom_call.1} parent=55 // pred_check_branch
          %333 = sbr.rel (%p331) target = $region60
        $region59: #{tpu_custom_call.1} parent=55 // pred_region
          %p334 = scmp.lt.s32.totalorder %s20, 1
          %s335 = scalar_select %p334, %s20, 1
          %s336 = scalar_lea.vmem %s0, %s335
        $region60: #{tpu_custom_call.1} parent=55 // pred_fallthru
          _
      $region56: #{tpu_custom_call.1} parent=5 // pred_fallthru
        _
      %p337 = scmp.le.s32.totalorder 1, %s20
      %p338 = scmp.lt.s32.totalorder %s20, 3
      %p339 = pnand %p337, %p338
      %p340 = pneg %p339
      // Predicated region
      $region61: #{tpu_custom_call.1} parent=5 // pred_check
        _
      $region62: #{tpu_custom_call.1} parent=5 // pred_check_branch
        %342 = sbr.rel (%p339) target = $region64
      $region63: #{tpu_custom_call.1} parent=5 // pred_region
        %s343 = ssub.s32 %s20, 1
        %p344 = scmp.lt.s32.totalorder %s25, 1
        %s345 = scalar_select %p344, %s25, 1
        %s346 = scalar_lea.vmem %s0, %s345
        %p347 = pneg %p46
        %p348 = pneg %p43
        %p349 = pneg %p67
        %p350 = pneg %p64
        %p351 = pneg %p88
        %p352 = pneg %p85
        %p353 = pneg %p109
        %p354 = pneg %p106
        %p355 = pneg %p130
        %p356 = pneg %p127
        %p357 = pneg %p151
        %p358 = pneg %p148
        %p359 = pneg %p172
        %p360 = pneg %p169
        %p361 = pneg %p193
        %p362 = pneg %p190
        %p363 = pneg %p214
        %p364 = pneg %p211
        %p365 = pneg %p235
        %p366 = pneg %p232
        %p367 = pneg %p256
        %p368 = pneg %p253
        %p369 = pneg %p282
        %p370 = pneg %p279
        %s371 = sand.u32 %s269, 1
        %s372 = scalar_lea.sflag [#allocation3], %s371
        %s373 = sand.u32 %s269, 1
        %s374 = smul.addr %s373, 16
        %s375 = scalar_lea.vmem [#allocation2], %s374
        %p376 = scmp.lt.s32.totalorder %s25, 1
        %s377 = scalar_select %p376, %s25, 1
        %s378 = scalar_lea.vmem %s0, %s377
        %v379 = vld [vmem:[%s378] sm:$0x1]
        %v380 = vld [vmem:[%s2] sm:$0xff]
        %v381 = vld [vmem:[%s2 + $0x8] sm:$0xff]
        %v382 = vld [vmem:[%s2 + $0x10] sm:$0x1]
        %vm383 = vcmask 130048
        %v385 = vsel %vm383, %v379, 0
        %387 = vmatpush.msra.mxu0 0.0
        %388 = vmatpush.msra.mxu0 0.0
        %389 = vmatpush.msra.mxu0 0.0
        %390 = vmatpush.msra.mxu0 0.0
        %391 = vmatpush.msra.mxu0 0.0
        %392 = vmatpush.msra.mxu0 0.0
        %393 = vmatpush.msra.mxu0 0.0
        %394 = vmatpush.msra.mxu0 0.0
        %395 = vmatpush.msra.mxu0 0.0
        %396 = vmatpush.msra.mxu0 0.0
        %397 = vmatpush.msra.mxu0 0.0
        %398 = vmatpush.msra.mxu0 0.0
        %399 = vmatpush.msra.mxu0 0.0
        %400 = vmatpush.msra.mxu0 0.0
        %401 = vmatpush.msra.mxu0 %v381
        %402 = vmatpush.msra.mxu0 %v380
        %403 = vmatmul.f32.gmra.mxu0 %v385
        %v404 = vpop.f32.mrf.mxu0
        %v405 = vadd.f32 %v382, %v404
        %406 = vdwg.mxu0
        %v407 = vld [vmem:[%s1] sm:$0xff]
        %v408 = vld [vmem:[%s1 + $0x8] sm:$0xff]
        %v409 = vld [vmem:[%s10] sm:$0x1]
        %s410 = scalar_lea.vmem %s10, 1
        %v411 = vld [vmem:[%s410] sm:$0x1]
        %vm412 = vcmask 261120
        %v413 = vsel %vm412, %v407, 0.0
        %414 = vadd.xlane.f32.xlu0 %v413
        %v415 = vpop.xlane.xlu0 %414
        %v416 = vsel %vm412, %v408, 0.0
        %417 = vadd.xlane.f32.xlu0 %v416
        %v418 = vpop.xlane.xlu0 %417
        %v419 = vrcp.pop 32.0
        %v420 = vmul.f32 32.0, %v419
        %v421 = vsub.f32 1.0, %v420
        %v422 = vmul.f32 %v419, %v421
        %v423 = vadd.f32 %v419, %v422
        %vm424 = vweird.f32 %v419
        %v425 = vsel %vm424, %v419, %v423
        %v426 = vmul.f32 %v415, %v425
        %v427 = vmul.f32 %v418, %v425
        %v428 = vsub.f32 %v407, %v426
        %v429 = vsub.f32 %v408, %v427
        %v430 = vmul.f32 %v428, %v428
        %v431 = vmul.f32 %v429, %v429
        %v432 = vsel %vm412, %v430, 0.0
        %433 = vadd.xlane.f32.xlu0 %v432
        %v434 = vpop.xlane.xlu0 %433
        %v435 = vsel %vm412, %v431, 0.0
        %436 = vadd.xlane.f32.xlu0 %v435
        %v437 = vpop.xlane.xlu0 %436
        %v438 = vmul.f32 %v434, %v425
        %v439 = vmul.f32 %v437, %v425
        %v440 = vadd.f32 %v438, 1e-05
        %v441 = vadd.f32 %v439, 1e-05
        %v442 = vrsqrt.pop %v440
        %v443 = vmul.f32 %v442, %v440
        %v444 = vmul.f32 %v443, %v442
        %v445 = vmul.f32 0.5, %v444
        %v446 = vsub.f32 1.5, %v445
        %v447 = vmul.f32 %v442, %v446
        %vm448 = vweird.f32 %v440
        %vm449 = vweird.f32 %v442
        %vm450 = vmor %vm448, %vm449
        %v451 = vsel %vm450, %v442, %v447
        %v452 = vrsqrt.pop %v441
        %v453 = vmul.f32 %v452, %v441
        %v454 = vmul.f32 %v453, %v452
        %v455 = vmul.f32 0.5, %v454
        %v456 = vsub.f32 1.5, %v455
        %v457 = vmul.f32 %v452, %v456
        %vm458 = vweird.f32 %v441
        %vm459 = vweird.f32 %v452
        %vm460 = vmor %vm458, %vm459
        %v461 = vsel %vm460, %v452, %v457
        %v462 = vmul.f32 %v428, %v451
        %v463 = vmul.f32 %v429, %v461
        %v465 = vperm.slane %v409, 0
        %v467 = vmul.f32 %v462, %v465
        %v468 = vmul.f32 %v463, %v465
        %v470 = vperm.slane %v411, 0
        %v472 = vadd.f32 %v467, %v470
        %v473 = vadd.f32 %v468, %v470
        %v474 = vld [vmem:[%s3] sm:$0xff]
        %v475 = vld [vmem:[%s3 + $0x8] sm:$0xff]
        %v476 = vld [vmem:[%s3 + $0x10] sm:$0xff]
        %v477 = vld [vmem:[%s3 + $0x18] sm:$0xff]
        %v478 = vld [vmem:[%s4] sm:$0x1]
        %v480 = vperm.slane %v478, 0
        %v483 = vsel %vm412, %v472, 0
        %v486 = vsel %vm412, %v473, 0
        %488 = vmatpush.msra.mxu0 0.0
        %489 = vmatpush.msra.mxu0 0.0
        %490 = vmatpush.msra.mxu0 0.0
        %491 = vmatpush.msra.mxu0 0.0
        %492 = vmatpush.msra.mxu0 0.0
        %493 = vmatpush.msra.mxu0 0.0
        %494 = vmatpush.msra.mxu0 0.0
        %495 = vmatpush.msra.mxu0 0.0
        %496 = vmatpush.msra.mxu0 0.0
        %497 = vmatpush.msra.mxu0 0.0
        %498 = vmatpush.msra.mxu0 0.0
        %499 = vmatpush.msra.mxu0 0.0
        %500 = vmatpush.msra.mxu0 %v477
        %501 = vmatpush.msra.mxu0 %v476
        %502 = vmatpush.msra.mxu0 %v475
        %503 = vmatpush.msra.mxu0 %v474
        %504 = vmatmul.f32.gmra.mxu0 %v483
        %v505 = vpop.f32.mrf.mxu0
        %v506 = vadd.f32 %v480, %v505
        %507 = vmatmul.f32.gmra.mxu0 %v486
        %v508 = vpop.f32.mrf.mxu0
        %v509 = vadd.f32 %v480, %v508
        %510 = vdwg.mxu0
        %s511 = scalar_lea.vmem %s3, 32
        %v512 = vld [vmem:[%s511] sm:$0xff]
        %v513 = vld [vmem:[%s511 + $0x8] sm:$0xff]
        %v514 = vld [vmem:[%s511 + $0x10] sm:$0xff]
        %v515 = vld [vmem:[%s511 + $0x18] sm:$0xff]
        %s516 = scalar_lea.vmem %s4, 1
        %v517 = vld [vmem:[%s516] sm:$0x1]
        %v519 = vperm.slane %v517, 0
        %521 = vmatpush.msra.mxu0 0.0
        %522 = vmatpush.msra.mxu0 0.0
        %523 = vmatpush.msra.mxu0 0.0
        %524 = vmatpush.msra.mxu0 0.0
        %525 = vmatpush.msra.mxu0 0.0
        %526 = vmatpush.msra.mxu0 0.0
        %527 = vmatpush.msra.mxu0 0.0
        %528 = vmatpush.msra.mxu0 0.0
        %529 = vmatpush.msra.mxu0 0.0
        %530 = vmatpush.msra.mxu0 0.0
        %531 = vmatpush.msra.mxu0 0.0
        %532 = vmatpush.msra.mxu0 0.0
        %533 = vmatpush.msra.mxu0 %v515
        %534 = vmatpush.msra.mxu0 %v514
        %535 = vmatpush.msra.mxu0 %v513
        %536 = vmatpush.msra.mxu0 %v512
        %537 = vmatmul.f32.gmra.mxu0 %v483
        %v538 = vpop.f32.mrf.mxu0
        %v539 = vadd.f32 %v519, %v538
        %540 = vmatmul.f32.gmra.mxu0 %v486
        %v541 = vpop.f32.mrf.mxu0
        %v542 = vadd.f32 %v519, %v541
        %543 = vdwg.mxu0
        %s544 = scalar_lea.vmem %s3, 64
        %v545 = vld [vmem:[%s544] sm:$0xff]
        %v546 = vld [vmem:[%s544 + $0x8] sm:$0xff]
        %v547 = vld [vmem:[%s544 + $0x10] sm:$0xff]
        %v548 = vld [vmem:[%s544 + $0x18] sm:$0xff]
        %s549 = scalar_lea.vmem %s4, 2
        %v550 = vld [vmem:[%s549] sm:$0x1]
        %v552 = vperm.slane %v550, 0
        %554 = vmatpush.msra.mxu0 0.0
        %555 = vmatpush.msra.mxu0 0.0
        %556 = vmatpush.msra.mxu0 0.0
        %557 = vmatpush.msra.mxu0 0.0
        %558 = vmatpush.msra.mxu0 0.0
        %559 = vmatpush.msra.mxu0 0.0
        %560 = vmatpush.msra.mxu0 0.0
        %561 = vmatpush.msra.mxu0 0.0
        %562 = vmatpush.msra.mxu0 0.0
        %563 = vmatpush.msra.mxu0 0.0
        %564 = vmatpush.msra.mxu0 0.0
        %565 = vmatpush.msra.mxu0 0.0
        %566 = vmatpush.msra.mxu0 %v548
        %567 = vmatpush.msra.mxu0 %v547
        %568 = vmatpush.msra.mxu0 %v546
        %569 = vmatpush.msra.mxu0 %v545
        %570 = vmatmul.f32.gmra.mxu0 %v483
        %v571 = vpop.f32.mrf.mxu0
        %v572 = vadd.f32 %v552, %v571
        %573 = vmatmul.f32.gmra.mxu0 %v486
        %v574 = vpop.f32.mrf.mxu0
        %v575 = vadd.f32 %v552, %v574
        %576 = vdwg.mxu0
        %s577 = scalar_lea.vmem %s3, 96
        %v578 = vld [vmem:[%s577] sm:$0xff]
        %v579 = vld [vmem:[%s577 + $0x8] sm:$0xff]
        %v580 = vld [vmem:[%s577 + $0x10] sm:$0xff]
        %v581 = vld [vmem:[%s577 + $0x18] sm:$0xff]
        %s582 = scalar_lea.vmem %s4, 3
        %v583 = vld [vmem:[%s582] sm:$0x1]
        %v585 = vperm.slane %v583, 0
        %587 = vmatpush.msra.mxu0 0.0
        %588 = vmatpush.msra.mxu0 0.0
        %589 = vmatpush.msra.mxu0 0.0
        %590 = vmatpush.msra.mxu0 0.0
        %591 = vmatpush.msra.mxu0 0.0
        %592 = vmatpush.msra.mxu0 0.0
        %593 = vmatpush.msra.mxu0 0.0
        %594 = vmatpush.msra.mxu0 0.0
        %595 = vmatpush.msra.mxu0 0.0
        %596 = vmatpush.msra.mxu0 0.0
        %597 = vmatpush.msra.mxu0 0.0
        %598 = vmatpush.msra.mxu0 0.0
        %599 = vmatpush.msra.mxu0 %v581
        %600 = vmatpush.msra.mxu0 %v580
        %601 = vmatpush.msra.mxu0 %v579
        %602 = vmatpush.msra.mxu0 %v578
        %603 = vmatmul.f32.gmra.mxu0 %v483
        %v604 = vpop.f32.mrf.mxu0
        %v605 = vadd.f32 %v585, %v604
        %606 = vmatmul.f32.gmra.mxu0 %v486
        %v607 = vpop.f32.mrf.mxu0
        %v608 = vadd.f32 %v585, %v607
        %609 = vdwg.mxu0
        %s610 = scalar_lea.vmem %s3, 128
        %v611 = vld [vmem:[%s610] sm:$0xff]
        %v612 = vld [vmem:[%s610 + $0x8] sm:$0xff]
        %v613 = vld [vmem:[%s610 + $0x10] sm:$0xff]
        %v614 = vld [vmem:[%s610 + $0x18] sm:$0xff]
        %s615 = scalar_lea.vmem %s4, 4
        %v616 = vld [vmem:[%s615] sm:$0x1]
        %v618 = vperm.slane %v616, 0
        %620 = vmatpush.msra.mxu0 0.0
        %621 = vmatpush.msra.mxu0 0.0
        %622 = vmatpush.msra.mxu0 0.0
        %623 = vmatpush.msra.mxu0 0.0
        %624 = vmatpush.msra.mxu0 0.0
        %625 = vmatpush.msra.mxu0 0.0
        %626 = vmatpush.msra.mxu0 0.0
        %627 = vmatpush.msra.mxu0 0.0
        %628 = vmatpush.msra.mxu0 0.0
        %629 = vmatpush.msra.mxu0 0.0
        %630 = vmatpush.msra.mxu0 0.0
        %631 = vmatpush.msra.mxu0 0.0
        %632 = vmatpush.msra.mxu0 %v614
        %633 = vmatpush.msra.mxu0 %v613
        %634 = vmatpush.msra.mxu0 %v612
        %635 = vmatpush.msra.mxu0 %v611
        %636 = vmatmul.f32.gmra.mxu0 %v483
        %v637 = vpop.f32.mrf.mxu0
        %v638 = vadd.f32 %v618, %v637
        %639 = vmatmul.f32.gmra.mxu0 %v486
        %v640 = vpop.f32.mrf.mxu0
        %v641 = vadd.f32 %v618, %v640
        %642 = vdwg.mxu0
        %s643 = scalar_lea.vmem %s3, 160
        %v644 = vld [vmem:[%s643] sm:$0xff]
        %v645 = vld [vmem:[%s643 + $0x8] sm:$0xff]
        %v646 = vld [vmem:[%s643 + $0x10] sm:$0xff]
        %v647 = vld [vmem:[%s643 + $0x18] sm:$0xff]
        %s648 = scalar_lea.vmem %s4, 5
        %v649 = vld [vmem:[%s648] sm:$0x1]
        %v651 = vperm.slane %v649, 0
        %653 = vmatpush.msra.mxu0 0.0
        %654 = vmatpush.msra.mxu0 0.0
        %655 = vmatpush.msra.mxu0 0.0
        %656 = vmatpush.msra.mxu0 0.0
        %657 = vmatpush.msra.mxu0 0.0
        %658 = vmatpush.msra.mxu0 0.0
        %659 = vmatpush.msra.mxu0 0.0
        %660 = vmatpush.msra.mxu0 0.0
        %661 = vmatpush.msra.mxu0 0.0
        %662 = vmatpush.msra.mxu0 0.0
        %663 = vmatpush.msra.mxu0 0.0
        %664 = vmatpush.msra.mxu0 0.0
        %665 = vmatpush.msra.mxu0 %v647
        %666 = vmatpush.msra.mxu0 %v646
        %667 = vmatpush.msra.mxu0 %v645
        %668 = vmatpush.msra.mxu0 %v644
        %669 = vmatmul.f32.gmra.mxu0 %v483
        %v670 = vpop.f32.mrf.mxu0
        %v671 = vadd.f32 %v651, %v670
        %672 = vmatmul.f32.gmra.mxu0 %v486
        %v673 = vpop.f32.mrf.mxu0
        %v674 = vadd.f32 %v651, %v673
        %675 = vdwg.mxu0
        %s676 = scalar_lea.vmem %s3, 192
        %v677 = vld [vmem:[%s676] sm:$0xff]
        %v678 = vld [vmem:[%s676 + $0x8] sm:$0xff]
        %v679 = vld [vmem:[%s676 + $0x10] sm:$0xff]
        %v680 = vld [vmem:[%s676 + $0x18] sm:$0xff]
        %s681 = scalar_lea.vmem %s4, 6
        %v682 = vld [vmem:[%s681] sm:$0x1]
        %v684 = vperm.slane %v682, 0
        %686 = vmatpush.msra.mxu0 0.0
        %687 = vmatpush.msra.mxu0 0.0
        %688 = vmatpush.msra.mxu0 0.0
        %689 = vmatpush.msra.mxu0 0.0
        %690 = vmatpush.msra.mxu0 0.0
        %691 = vmatpush.msra.mxu0 0.0
        %692 = vmatpush.msra.mxu0 0.0
        %693 = vmatpush.msra.mxu0 0.0
        %694 = vmatpush.msra.mxu0 0.0
        %695 = vmatpush.msra.mxu0 0.0
        %696 = vmatpush.msra.mxu0 0.0
        %697 = vmatpush.msra.mxu0 0.0
        %698 = vmatpush.msra.mxu0 %v680
        %699 = vmatpush.msra.mxu0 %v679
        %700 = vmatpush.msra.mxu0 %v678
        %701 = vmatpush.msra.mxu0 %v677
        %702 = vmatmul.f32.gmra.mxu0 %v483
        %v703 = vpop.f32.mrf.mxu0
        %v704 = vadd.f32 %v684, %v703
        %705 = vmatmul.f32.gmra.mxu0 %v486
        %v706 = vpop.f32.mrf.mxu0
        %v707 = vadd.f32 %v684, %v706
        %708 = vdwg.mxu0
        %s709 = scalar_lea.vmem %s3, 224
        %v710 = vld [vmem:[%s709] sm:$0xff]
        %v711 = vld [vmem:[%s709 + $0x8] sm:$0xff]
        %v712 = vld [vmem:[%s709 + $0x10] sm:$0xff]
        %v713 = vld [vmem:[%s709 + $0x18] sm:$0xff]
        %s714 = scalar_lea.vmem %s4, 7
        %v715 = vld [vmem:[%s714] sm:$0x1]
        %v717 = vperm.slane %v715, 0
        %719 = vmatpush.msra.mxu0 0.0
        %720 = vmatpush.msra.mxu0 0.0
        %721 = vmatpush.msra.mxu0 0.0
        %722 = vmatpush.msra.mxu0 0.0
        %723 = vmatpush.msra.mxu0 0.0
        %724 = vmatpush.msra.mxu0 0.0
        %725 = vmatpush.msra.mxu0 0.0
        %726 = vmatpush.msra.mxu0 0.0
        %727 = vmatpush.msra.mxu0 0.0
        %728 = vmatpush.msra.mxu0 0.0
        %729 = vmatpush.msra.mxu0 0.0
        %730 = vmatpush.msra.mxu0 0.0
        %731 = vmatpush.msra.mxu0 %v713
        %732 = vmatpush.msra.mxu0 %v712
        %733 = vmatpush.msra.mxu0 %v711
        %734 = vmatpush.msra.mxu0 %v710
        %735 = vmatmul.f32.gmra.mxu0 %v483
        %v736 = vpop.f32.mrf.mxu0
        %v737 = vadd.f32 %v717, %v736
        %738 = vmatmul.f32.gmra.mxu0 %v486
        %v739 = vpop.f32.mrf.mxu0
        %v740 = vadd.f32 %v717, %v739
        %741 = vdwg.mxu0
        %s742 = scalar_lea.vmem %s3, 256
        %v743 = vld [vmem:[%s742] sm:$0xff]
        %v744 = vld [vmem:[%s742 + $0x8] sm:$0xff]
        %v745 = vld [vmem:[%s742 + $0x10] sm:$0xff]
        %v746 = vld [vmem:[%s742 + $0x18] sm:$0xff]
        %s747 = scalar_lea.vmem %s4, 8
        %v748 = vld [vmem:[%s747] sm:$0x1]
        %v750 = vperm.slane %v748, 0
        %752 = vmatpush.msra.mxu0 0.0
        %753 = vmatpush.msra.mxu0 0.0
        %754 = vmatpush.msra.mxu0 0.0
        %755 = vmatpush.msra.mxu0 0.0
        %756 = vmatpush.msra.mxu0 0.0
        %757 = vmatpush.msra.mxu0 0.0
        %758 = vmatpush.msra.mxu0 0.0
        %759 = vmatpush.msra.mxu0 0.0
        %760 = vmatpush.msra.mxu0 0.0
        %761 = vmatpush.msra.mxu0 0.0
        %762 = vmatpush.msra.mxu0 0.0
        %763 = vmatpush.msra.mxu0 0.0
        %764 = vmatpush.msra.mxu0 %v746
        %765 = vmatpush.msra.mxu0 %v745
        %766 = vmatpush.msra.mxu0 %v744
        %767 = vmatpush.msra.mxu0 %v743
        %768 = vmatmul.f32.gmra.mxu0 %v483
        %v769 = vpop.f32.mrf.mxu0
        %v770 = vadd.f32 %v750, %v769
        %771 = vmatmul.f32.gmra.mxu0 %v486
        %v772 = vpop.f32.mrf.mxu0
        %v773 = vadd.f32 %v750, %v772
        %774 = vdwg.mxu0
        %s775 = scalar_lea.vmem %s3, 288
        %v776 = vld [vmem:[%s775] sm:$0xff]
        %v777 = vld [vmem:[%s775 + $0x8] sm:$0xff]
        %v778 = vld [vmem:[%s775 + $0x10] sm:$0xff]
        %v779 = vld [vmem:[%s775 + $0x18] sm:$0xff]
        %s780 = scalar_lea.vmem %s4, 9
        %v781 = vld [vmem:[%s780] sm:$0x1]
        %v783 = vperm.slane %v781, 0
        %785 = vmatpush.msra.mxu0 0.0
        %786 = vmatpush.msra.mxu0 0.0
        %787 = vmatpush.msra.mxu0 0.0
        %788 = vmatpush.msra.mxu0 0.0
        %789 = vmatpush.msra.mxu0 0.0
        %790 = vmatpush.msra.mxu0 0.0
        %791 = vmatpush.msra.mxu0 0.0
        %792 = vmatpush.msra.mxu0 0.0
        %793 = vmatpush.msra.mxu0 0.0
        %794 = vmatpush.msra.mxu0 0.0
        %795 = vmatpush.msra.mxu0 0.0
        %796 = vmatpush.msra.mxu0 0.0
        %797 = vmatpush.msra.mxu0 %v779
        %798 = vmatpush.msra.mxu0 %v778
        %799 = vmatpush.msra.mxu0 %v777
        %800 = vmatpush.msra.mxu0 %v776
        %801 = vmatmul.f32.gmra.mxu0 %v483
        %v802 = vpop.f32.mrf.mxu0
        %v803 = vadd.f32 %v783, %v802
        %804 = vmatmul.f32.gmra.mxu0 %v486
        %v805 = vpop.f32.mrf.mxu0
        %v806 = vadd.f32 %v783, %v805
        %807 = vdwg.mxu0
        %s808 = scalar_lea.vmem %s3, 320
        %v809 = vld [vmem:[%s808] sm:$0xff]
        %v810 = vld [vmem:[%s808 + $0x8] sm:$0xff]
        %v811 = vld [vmem:[%s808 + $0x10] sm:$0xff]
        %v812 = vld [vmem:[%s808 + $0x18] sm:$0xff]
        %s813 = scalar_lea.vmem %s4, 10
        %v814 = vld [vmem:[%s813] sm:$0x1]
        %v816 = vperm.slane %v814, 0
        %818 = vmatpush.msra.mxu0 0.0
        %819 = vmatpush.msra.mxu0 0.0
        %820 = vmatpush.msra.mxu0 0.0
        %821 = vmatpush.msra.mxu0 0.0
        %822 = vmatpush.msra.mxu0 0.0
        %823 = vmatpush.msra.mxu0 0.0
        %824 = vmatpush.msra.mxu0 0.0
        %825 = vmatpush.msra.mxu0 0.0
        %826 = vmatpush.msra.mxu0 0.0
        %827 = vmatpush.msra.mxu0 0.0
        %828 = vmatpush.msra.mxu0 0.0
        %829 = vmatpush.msra.mxu0 0.0
        %830 = vmatpush.msra.mxu0 %v812
        %831 = vmatpush.msra.mxu0 %v811
        %832 = vmatpush.msra.mxu0 %v810
        %833 = vmatpush.msra.mxu0 %v809
        %834 = vmatmul.f32.gmra.mxu0 %v483
        %v835 = vpop.f32.mrf.mxu0
        %v836 = vadd.f32 %v816, %v835
        %837 = vmatmul.f32.gmra.mxu0 %v486
        %v838 = vpop.f32.mrf.mxu0
        %v839 = vadd.f32 %v816, %v838
        %840 = vdwg.mxu0
        %s841 = scalar_lea.vmem %s3, 352
        %v842 = vld [vmem:[%s841] sm:$0xff]
        %v843 = vld [vmem:[%s841 + $0x8] sm:$0xff]
        %v844 = vld [vmem:[%s841 + $0x10] sm:$0xff]
        %v845 = vld [vmem:[%s841 + $0x18] sm:$0xff]
        %s846 = scalar_lea.vmem %s4, 11
        %v847 = vld [vmem:[%s846] sm:$0x1]
        %v849 = vperm.slane %v847, 0
        %851 = vmatpush.msra.mxu0 0.0
        %852 = vmatpush.msra.mxu0 0.0
        %853 = vmatpush.msra.mxu0 0.0
        %854 = vmatpush.msra.mxu0 0.0
        %855 = vmatpush.msra.mxu0 0.0
        %856 = vmatpush.msra.mxu0 0.0
        %857 = vmatpush.msra.mxu0 0.0
        %858 = vmatpush.msra.mxu0 0.0
        %859 = vmatpush.msra.mxu0 0.0
        %860 = vmatpush.msra.mxu0 0.0
        %861 = vmatpush.msra.mxu0 0.0
        %862 = vmatpush.msra.mxu0 0.0
        %863 = vmatpush.msra.mxu0 %v845
        %864 = vmatpush.msra.mxu0 %v844
        %865 = vmatpush.msra.mxu0 %v843
        %866 = vmatpush.msra.mxu0 %v842
        %867 = vmatmul.f32.gmra.mxu0 %v483
        %v868 = vpop.f32.mrf.mxu0
        %v869 = vadd.f32 %v849, %v868
        %870 = vmatmul.f32.gmra.mxu0 %v486
        %v871 = vpop.f32.mrf.mxu0
        %v872 = vadd.f32 %v849, %v871
        %873 = vdwg.mxu0
        %v874 = vld [vmem:[%s5] sm:$0xff]
        %s875 = scalar_lea.vmem %s5, 8
        %v876 = vld [vmem:[%s875] sm:$0xff]
        %s877 = scalar_lea.vmem %s5, 16
        %v878 = vld [vmem:[%s877] sm:$0xff]
        %s879 = scalar_lea.vmem %s5, 24
        %v880 = vld [vmem:[%s879] sm:$0xff]
        %vm881 = vcmask 64512
        %v883 = vsel %vm881, %v506, 0
        %v886 = vsel %vm881, %v509, 0
        %v889 = vsel %vm881, %v638, 0
        %v892 = vsel %vm881, %v641, 0
        %894 = vmatpush.xpose.msra.mxu0 0.0
        %895 = vmatpush.xpose.msra.mxu0 0.0
        %896 = vmatpush.xpose.msra.mxu0 0.0
        %897 = vmatpush.xpose.msra.mxu0 0.0
        %898 = vmatpush.xpose.msra.mxu0 0.0
        %899 = vmatpush.xpose.msra.mxu0 0.0
        %900 = vmatpush.xpose.msra.mxu0 0.0
        %901 = vmatpush.xpose.msra.mxu0 0.0
        %902 = vmatpush.xpose.msra.mxu0 0.0
        %903 = vmatpush.xpose.msra.mxu0 0.0
        %904 = vmatpush.xpose.msra.mxu0 0.0
        %905 = vmatpush.xpose.msra.mxu0 0.0
        %906 = vmatpush.xpose.msra.mxu0 0.0
        %907 = vmatpush.xpose.msra.mxu0 0.0
        %908 = vmatpush.xpose.msra.mxu0 %v892
        %909 = vmatpush.xpose.msra.mxu0 %v889
        %910 = vmatmul.f32.gmra.mxu0 %v883
        %v911 = vpop.f32.mrf.mxu0
        %v912 = vadd.f32 0.0, %v911
        %913 = vmatmul.f32.gmra.mxu0 %v886
        %v914 = vpop.f32.mrf.mxu0
        %v915 = vadd.f32 0.0, %v914
        %916 = vdwg.mxu0
        %v918 = vsel %vm881, %v539, 0
        %v921 = vsel %vm881, %v542, 0
        %v924 = vsel %vm881, %v671, 0
        %v927 = vsel %vm881, %v674, 0
        %929 = vmatpush.xpose.msra.mxu0 0.0
        %930 = vmatpush.xpose.msra.mxu0 0.0
        %931 = vmatpush.xpose.msra.mxu0 0.0
        %932 = vmatpush.xpose.msra.mxu0 0.0
        %933 = vmatpush.xpose.msra.mxu0 0.0
        %934 = vmatpush.xpose.msra.mxu0 0.0
        %935 = vmatpush.xpose.msra.mxu0 0.0
        %936 = vmatpush.xpose.msra.mxu0 0.0
        %937 = vmatpush.xpose.msra.mxu0 0.0
        %938 = vmatpush.xpose.msra.mxu0 0.0
        %939 = vmatpush.xpose.msra.mxu0 0.0
        %940 = vmatpush.xpose.msra.mxu0 0.0
        %941 = vmatpush.xpose.msra.mxu0 0.0
        %942 = vmatpush.xpose.msra.mxu0 0.0
        %943 = vmatpush.xpose.msra.mxu0 %v927
        %944 = vmatpush.xpose.msra.mxu0 %v924
        %945 = vmatmul.f32.gmra.mxu0 %v918
        %v946 = vpop.f32.mrf.mxu0
        %v947 = vadd.f32 0.0, %v946
        %948 = vmatmul.f32.gmra.mxu0 %v921
        %v949 = vpop.f32.mrf.mxu0
        %v950 = vadd.f32 0.0, %v949
        %951 = vdwg.mxu0
        %v953 = vsel %vm881, %v572, 0
        %v956 = vsel %vm881, %v575, 0
        %v959 = vsel %vm881, %v704, 0
        %v962 = vsel %vm881, %v707, 0
        %964 = vmatpush.xpose.msra.mxu0 0.0
        %965 = vmatpush.xpose.msra.mxu0 0.0
        %966 = vmatpush.xpose.msra.mxu0 0.0
        %967 = vmatpush.xpose.msra.mxu0 0.0
        %968 = vmatpush.xpose.msra.mxu0 0.0
        %969 = vmatpush.xpose.msra.mxu0 0.0
        %970 = vmatpush.xpose.msra.mxu0 0.0
        %971 = vmatpush.xpose.msra.mxu0 0.0
        %972 = vmatpush.xpose.msra.mxu0 0.0
        %973 = vmatpush.xpose.msra.mxu0 0.0
        %974 = vmatpush.xpose.msra.mxu0 0.0
        %975 = vmatpush.xpose.msra.mxu0 0.0
        %976 = vmatpush.xpose.msra.mxu0 0.0
        %977 = vmatpush.xpose.msra.mxu0 0.0
        %978 = vmatpush.xpose.msra.mxu0 %v962
        %979 = vmatpush.xpose.msra.mxu0 %v959
        %980 = vmatmul.f32.gmra.mxu0 %v953
        %v981 = vpop.f32.mrf.mxu0
        %v982 = vadd.f32 0.0, %v981
        %983 = vmatmul.f32.gmra.mxu0 %v956
        %v984 = vpop.f32.mrf.mxu0
        %v985 = vadd.f32 0.0, %v984
        %986 = vdwg.mxu0
        %v988 = vsel %vm881, %v605, 0
        %v991 = vsel %vm881, %v608, 0
        %v994 = vsel %vm881, %v737, 0
        %v997 = vsel %vm881, %v740, 0
        %999 = vmatpush.xpose.msra.mxu0 0.0
        %1000 = vmatpush.xpose.msra.mxu0 0.0
        %1001 = vmatpush.xpose.msra.mxu0 0.0
        %1002 = vmatpush.xpose.msra.mxu0 0.0
        %1003 = vmatpush.xpose.msra.mxu0 0.0
        %1004 = vmatpush.xpose.msra.mxu0 0.0
        %1005 = vmatpush.xpose.msra.mxu0 0.0
        %1006 = vmatpush.xpose.msra.mxu0 0.0
        %1007 = vmatpush.xpose.msra.mxu0 0.0
        %1008 = vmatpush.xpose.msra.mxu0 0.0
        %1009 = vmatpush.xpose.msra.mxu0 0.0
        %1010 = vmatpush.xpose.msra.mxu0 0.0
        %1011 = vmatpush.xpose.msra.mxu0 0.0
        %1012 = vmatpush.xpose.msra.mxu0 0.0
        %1013 = vmatpush.xpose.msra.mxu0 %v997
        %1014 = vmatpush.xpose.msra.mxu0 %v994
        %1015 = vmatmul.f32.gmra.mxu0 %v988
        %v1016 = vpop.f32.mrf.mxu0
        %v1017 = vadd.f32 0.0, %v1016
        %1018 = vmatmul.f32.gmra.mxu0 %v991
        %v1019 = vpop.f32.mrf.mxu0
        %v1020 = vadd.f32 0.0, %v1019
        %1021 = vdwg.mxu0
        %v1022 = vsel %vm383, %v912, -inf
        %1023 = vmax.xlane.f32.xlu0 %v1022
        %v1024 = vpop.xlane.xlu0 %1023
        %v1025 = vsel %vm383, %v915, -inf
        %1026 = vmax.xlane.f32.xlu0 %v1025
        %v1027 = vpop.xlane.xlu0 %1026
        %v1028 = vsel %vm383, %v947, -inf
        %1029 = vmax.xlane.f32.xlu0 %v1028
        %v1030 = vpop.xlane.xlu0 %1029
        %v1031 = vsel %vm383, %v950, -inf
        %1032 = vmax.xlane.f32.xlu0 %v1031
        %v1033 = vpop.xlane.xlu0 %1032
        %v1034 = vsel %vm383, %v982, -inf
        %1035 = vmax.xlane.f32.xlu0 %v1034
        %v1036 = vpop.xlane.xlu0 %1035
        %v1037 = vsel %vm383, %v985, -inf
        %1038 = vmax.xlane.f32.xlu0 %v1037
        %v1039 = vpop.xlane.xlu0 %1038
        %v1040 = vsel %vm383, %v1017, -inf
        %1041 = vmax.xlane.f32.xlu0 %v1040
        %v1042 = vpop.xlane.xlu0 %1041
        %v1043 = vsel %vm383, %v1020, -inf
        %1044 = vmax.xlane.f32.xlu0 %v1043
        %v1045 = vpop.xlane.xlu0 %1044
        %v1046 = vsub.f32 %v912, %v1024
        %v1047 = vsub.f32 %v915, %v1027
        %v1048 = vsub.f32 %v947, %v1030
        %v1049 = vsub.f32 %v950, %v1033
        %v1050 = vsub.f32 %v982, %v1036
        %v1051 = vsub.f32 %v985, %v1039
        %v1052 = vsub.f32 %v1017, %v1042
        %v1053 = vsub.f32 %v1020, %v1045
        %v1054 = vmul.f32 %v1046, 1.442695
        %v1055 = vpow.pop %v1054
        %v1056 = vmul.f32 %v1047, 1.442695
        %v1057 = vpow.pop %v1056
        %v1058 = vmul.f32 %v1048, 1.442695
        %v1059 = vpow.pop %v1058
        %v1060 = vmul.f32 %v1049, 1.442695
        %v1061 = vpow.pop %v1060
        %v1062 = vmul.f32 %v1050, 1.442695
        %v1063 = vpow.pop %v1062
        %v1064 = vmul.f32 %v1051, 1.442695
        %v1065 = vpow.pop %v1064
        %v1066 = vmul.f32 %v1052, 1.442695
        %v1067 = vpow.pop %v1066
        %v1068 = vmul.f32 %v1053, 1.442695
        %v1069 = vpow.pop %v1068
        %v1070 = vsel %vm383, %v1055, 0.0
        %1071 = vadd.xlane.f32.xlu0 %v1070
        %v1072 = vpop.xlane.xlu0 %1071
        %v1073 = vsel %vm383, %v1057, 0.0
        %1074 = vadd.xlane.f32.xlu0 %v1073
        %v1075 = vpop.xlane.xlu0 %1074
        %v1076 = vsel %vm383, %v1059, 0.0
        %1077 = vadd.xlane.f32.xlu0 %v1076
        %v1078 = vpop.xlane.xlu0 %1077
        %v1079 = vsel %vm383, %v1061, 0.0
        %1080 = vadd.xlane.f32.xlu0 %v1079
        %v1081 = vpop.xlane.xlu0 %1080
        %v1082 = vsel %vm383, %v1063, 0.0
        %1083 = vadd.xlane.f32.xlu0 %v1082
        %v1084 = vpop.xlane.xlu0 %1083
        %v1085 = vsel %vm383, %v1065, 0.0
        %1086 = vadd.xlane.f32.xlu0 %v1085
        %v1087 = vpop.xlane.xlu0 %1086
        %v1088 = vsel %vm383, %v1067, 0.0
        %1089 = vadd.xlane.f32.xlu0 %v1088
        %v1090 = vpop.xlane.xlu0 %1089
        %v1091 = vsel %vm383, %v1069, 0.0
        %1092 = vadd.xlane.f32.xlu0 %v1091
        %v1093 = vpop.xlane.xlu0 %1092
        %v1094 = vrcp.pop %v1072
        %v1095 = vrcp.pop %v1075
        %v1096 = vrcp.pop %v1078
        %v1097 = vrcp.pop %v1081
        %v1098 = vrcp.pop %v1084
        %v1099 = vrcp.pop %v1087
        %v1100 = vrcp.pop %v1090
        %v1101 = vrcp.pop %v1093
        %v1102 = vmul.f32 %v1055, %v1094
        %v1103 = vmul.f32 %v1057, %v1095
        %v1104 = vmul.f32 %v1059, %v1096
        %v1105 = vmul.f32 %v1061, %v1097
        %v1106 = vmul.f32 %v1063, %v1098
        %v1107 = vmul.f32 %v1065, %v1099
        %v1108 = vmul.f32 %v1067, %v1100
        %v1109 = vmul.f32 %v1069, %v1101
        %v1111 = vsel %vm383, %v1102, 0
        %v1114 = vsel %vm383, %v1103, 0
        %1116 = vmatpush.msra.mxu0 0.0
        %1117 = vmatpush.msra.mxu0 0.0
        %1118 = vmatpush.msra.mxu0 0.0
        %1119 = vmatpush.msra.mxu0 0.0
        %1120 = vmatpush.msra.mxu0 0.0
        %1121 = vmatpush.msra.mxu0 0.0
        %1122 = vmatpush.msra.mxu0 0.0
        %1123 = vmatpush.msra.mxu0 0.0
        %1124 = vmatpush.msra.mxu0 0.0
        %1125 = vmatpush.msra.mxu0 0.0
        %1126 = vmatpush.msra.mxu0 0.0
        %1127 = vmatpush.msra.mxu0 0.0
        %1128 = vmatpush.msra.mxu0 0.0
        %1129 = vmatpush.msra.mxu0 0.0
        %1130 = vmatpush.msra.mxu0 %v773
        %1131 = vmatpush.msra.mxu0 %v770
        %1132 = vmatmul.f32.gmra.mxu0 %v1111
        %v1133 = vpop.f32.mrf.mxu0
        %v1134 = vadd.f32 0.0, %v1133
        %1135 = vmatmul.f32.gmra.mxu0 %v1114
        %v1136 = vpop.f32.mrf.mxu0
        %v1137 = vadd.f32 0.0, %v1136
        %1138 = vdwg.mxu0
        %v1140 = vsel %vm383, %v1104, 0
        %v1143 = vsel %vm383, %v1105, 0
        %1145 = vmatpush.msra.mxu0 0.0
        %1146 = vmatpush.msra.mxu0 0.0
        %1147 = vmatpush.msra.mxu0 0.0
        %1148 = vmatpush.msra.mxu0 0.0
        %1149 = vmatpush.msra.mxu0 0.0
        %1150 = vmatpush.msra.mxu0 0.0
        %1151 = vmatpush.msra.mxu0 0.0
        %1152 = vmatpush.msra.mxu0 0.0
        %1153 = vmatpush.msra.mxu0 0.0
        %1154 = vmatpush.msra.mxu0 0.0
        %1155 = vmatpush.msra.mxu0 0.0
        %1156 = vmatpush.msra.mxu0 0.0
        %1157 = vmatpush.msra.mxu0 0.0
        %1158 = vmatpush.msra.mxu0 0.0
        %1159 = vmatpush.msra.mxu0 %v806
        %1160 = vmatpush.msra.mxu0 %v803
        %1161 = vmatmul.f32.gmra.mxu0 %v1140
        %v1162 = vpop.f32.mrf.mxu0
        %v1163 = vadd.f32 0.0, %v1162
        %1164 = vmatmul.f32.gmra.mxu0 %v1143
        %v1165 = vpop.f32.mrf.mxu0
        %v1166 = vadd.f32 0.0, %v1165
        %1167 = vdwg.mxu0
        %v1169 = vsel %vm383, %v1106, 0
        %v1172 = vsel %vm383, %v1107, 0
        %1174 = vmatpush.msra.mxu0 0.0
        %1175 = vmatpush.msra.mxu0 0.0
        %1176 = vmatpush.msra.mxu0 0.0
        %1177 = vmatpush.msra.mxu0 0.0
        %1178 = vmatpush.msra.mxu0 0.0
        %1179 = vmatpush.msra.mxu0 0.0
        %1180 = vmatpush.msra.mxu0 0.0
        %1181 = vmatpush.msra.mxu0 0.0
        %1182 = vmatpush.msra.mxu0 0.0
        %1183 = vmatpush.msra.mxu0 0.0
        %1184 = vmatpush.msra.mxu0 0.0
        %1185 = vmatpush.msra.mxu0 0.0
        %1186 = vmatpush.msra.mxu0 0.0
        %1187 = vmatpush.msra.mxu0 0.0
        %1188 = vmatpush.msra.mxu0 %v839
        %1189 = vmatpush.msra.mxu0 %v836
        %1190 = vmatmul.f32.gmra.mxu0 %v1169
        %v1191 = vpop.f32.mrf.mxu0
        %v1192 = vadd.f32 0.0, %v1191
        %1193 = vmatmul.f32.gmra.mxu0 %v1172
        %v1194 = vpop.f32.mrf.mxu0
        %v1195 = vadd.f32 0.0, %v1194
        %1196 = vdwg.mxu0
        %v1198 = vsel %vm383, %v1108, 0
        %v1201 = vsel %vm383, %v1109, 0
        %1203 = vmatpush.msra.mxu0 0.0
        %1204 = vmatpush.msra.mxu0 0.0
        %1205 = vmatpush.msra.mxu0 0.0
        %1206 = vmatpush.msra.mxu0 0.0
        %1207 = vmatpush.msra.mxu0 0.0
        %1208 = vmatpush.msra.mxu0 0.0
        %1209 = vmatpush.msra.mxu0 0.0
        %1210 = vmatpush.msra.mxu0 0.0
        %1211 = vmatpush.msra.mxu0 0.0
        %1212 = vmatpush.msra.mxu0 0.0
        %1213 = vmatpush.msra.mxu0 0.0
        %1214 = vmatpush.msra.mxu0 0.0
        %1215 = vmatpush.msra.mxu0 0.0
        %1216 = vmatpush.msra.mxu0 0.0
        %1217 = vmatpush.msra.mxu0 %v872
        %1218 = vmatpush.msra.mxu0 %v869
        %1219 = vmatmul.f32.gmra.mxu0 %v1198
        %v1220 = vpop.f32.mrf.mxu0
        %v1221 = vadd.f32 0.0, %v1220
        %1222 = vmatmul.f32.gmra.mxu0 %v1201
        %v1223 = vpop.f32.mrf.mxu0
        %v1224 = vadd.f32 0.0, %v1223
        %1225 = vdwg.mxu0
        %v1227 = vsel %vm881, %v1163, 0
        %v1230 = vsel %vm881, %v1166, 0
        %1232 = vmatpush.msra.mxu0 0.0
        %1233 = vmatpush.msra.mxu0 0.0
        %1234 = vmatpush.msra.mxu0 0.0
        %1235 = vmatpush.msra.mxu0 0.0
        %1236 = vmatpush.msra.mxu0 0.0
        %1237 = vmatpush.msra.mxu0 0.0
        %1238 = vmatpush.msra.mxu0 0.0
        %1239 = vmatpush.msra.mxu0 0.0
        %1240 = vmatpush.msra.mxu0 0.0
        %1241 = vmatpush.msra.mxu0 0.0
        %1242 = vmatpush.msra.mxu0 0.0
        %1243 = vmatpush.msra.mxu0 0.0
        %1244 = vmatpush.msra.mxu0 0.0
        %1245 = vmatpush.msra.mxu0 0.0
        %1246 = vmatpush.msra.mxu0 0.0
        %1247 = vmatpush.msra.mxu0 %v876
        %1248 = vmatmul.f32.gmra.mxu0 %v1227
        %v1249 = vpop.f32.mrf.mxu0
        %v1250 = vadd.f32 0.0, %v1249
        %1251 = vmatmul.f32.gmra.mxu0 %v1230
        %v1252 = vpop.f32.mrf.mxu0
        %v1253 = vadd.f32 0.0, %v1252
        %1254 = vdwg.mxu0
        %v1256 = vsel %vm881, %v1134, 0
        %v1259 = vsel %vm881, %v1137, 0
        %1261 = vmatpush.msra.mxu0 0.0
        %1262 = vmatpush.msra.mxu0 0.0
        %1263 = vmatpush.msra.mxu0 0.0
        %1264 = vmatpush.msra.mxu0 0.0
        %1265 = vmatpush.msra.mxu0 0.0
        %1266 = vmatpush.msra.mxu0 0.0
        %1267 = vmatpush.msra.mxu0 0.0
        %1268 = vmatpush.msra.mxu0 0.0
        %1269 = vmatpush.msra.mxu0 0.0
        %1270 = vmatpush.msra.mxu0 0.0
        %1271 = vmatpush.msra.mxu0 0.0
        %1272 = vmatpush.msra.mxu0 0.0
        %1273 = vmatpush.msra.mxu0 0.0
        %1274 = vmatpush.msra.mxu0 0.0
        %1275 = vmatpush.msra.mxu0 0.0
        %1276 = vmatpush.msra.mxu0 %v874
        %1277 = vmatmul.f32.gmra.mxu0 %v1256
        %v1278 = vpop.f32.mrf.mxu0
        %v1279 = vadd.f32 %v1250, %v1278
        %1280 = vmatmul.f32.gmra.mxu0 %v1259
        %v1281 = vpop.f32.mrf.mxu0
        %v1282 = vadd.f32 %v1253, %v1281
        %1283 = vdwg.mxu0
        %v1285 = vsel %vm881, %v1192, 0
        %v1288 = vsel %vm881, %v1195, 0
        %1290 = vmatpush.msra.mxu0 0.0
        %1291 = vmatpush.msra.mxu0 0.0
        %1292 = vmatpush.msra.mxu0 0.0
        %1293 = vmatpush.msra.mxu0 0.0
        %1294 = vmatpush.msra.mxu0 0.0
        %1295 = vmatpush.msra.mxu0 0.0
        %1296 = vmatpush.msra.mxu0 0.0
        %1297 = vmatpush.msra.mxu0 0.0
        %1298 = vmatpush.msra.mxu0 0.0
        %1299 = vmatpush.msra.mxu0 0.0
        %1300 = vmatpush.msra.mxu0 0.0
        %1301 = vmatpush.msra.mxu0 0.0
        %1302 = vmatpush.msra.mxu0 0.0
        %1303 = vmatpush.msra.mxu0 0.0
        %1304 = vmatpush.msra.mxu0 0.0
        %1305 = vmatpush.msra.mxu0 %v878
        %1306 = vmatmul.f32.gmra.mxu0 %v1285
        %v1307 = vpop.f32.mrf.mxu0
        %v1308 = vadd.f32 0.0, %v1307
        %1309 = vmatmul.f32.gmra.mxu0 %v1288
        %v1310 = vpop.f32.mrf.mxu0
        %v1311 = vadd.f32 0.0, %v1310
        %1312 = vdwg.mxu0
        %v1313 = vadd.f32 %v1279, %v1308
        %v1314 = vadd.f32 %v1282, %v1311
        %v1316 = vsel %vm881, %v1221, 0
        %v1319 = vsel %vm881, %v1224, 0
        %1321 = vmatpush.msra.mxu0 0.0
        %1322 = vmatpush.msra.mxu0 0.0
        %1323 = vmatpush.msra.mxu0 0.0
        %1324 = vmatpush.msra.mxu0 0.0
        %1325 = vmatpush.msra.mxu0 0.0
        %1326 = vmatpush.msra.mxu0 0.0
        %1327 = vmatpush.msra.mxu0 0.0
        %1328 = vmatpush.msra.mxu0 0.0
        %1329 = vmatpush.msra.mxu0 0.0
        %1330 = vmatpush.msra.mxu0 0.0
        %1331 = vmatpush.msra.mxu0 0.0
        %1332 = vmatpush.msra.mxu0 0.0
        %1333 = vmatpush.msra.mxu0 0.0
        %1334 = vmatpush.msra.mxu0 0.0
        %1335 = vmatpush.msra.mxu0 0.0
        %1336 = vmatpush.msra.mxu0 %v880
        %1337 = vmatmul.f32.gmra.mxu0 %v1316
        %v1338 = vpop.f32.mrf.mxu0
        %v1339 = vadd.f32 0.0, %v1338
        %1340 = vmatmul.f32.gmra.mxu0 %v1319
        %v1341 = vpop.f32.mrf.mxu0
        %v1342 = vadd.f32 0.0, %v1341
        %1343 = vdwg.mxu0
        %v1344 = vadd.f32 %v1313, %v1339
        %v1345 = vadd.f32 %v1314, %v1342
        %v1346 = vadd.f32 %v407, %v1344
        %v1347 = vadd.f32 %v408, %v1345
        %s1348 = scalar_lea.vmem %s10, 6
        %v1349 = vld [vmem:[%s1348] sm:$0x1]
        %v1351 = vperm.slane %v1349, 0
        %v1353 = vadd.f32 %v1346, %v1351
        %v1354 = vadd.f32 %v1347, %v1351
        %v1355 = vld [vmem:[%s9] sm:$0xff]
        %v1356 = vld [vmem:[%s9 + $0x8] sm:$0xff]
        %v1357 = vld [vmem:[%s9 + $0x10] sm:$0xff]
        %v1358 = vld [vmem:[%s9 + $0x18] sm:$0xff]
        %v1359 = vld [vmem:[%s9 + $0x20] sm:$0x1]
        %v1361 = vsel %vm412, %v405, 0
        %1363 = vmatpush.msra.mxu0 0.0
        %1364 = vmatpush.msra.mxu0 0.0
        %1365 = vmatpush.msra.mxu0 0.0
        %1366 = vmatpush.msra.mxu0 0.0
        %1367 = vmatpush.msra.mxu0 0.0
        %1368 = vmatpush.msra.mxu0 0.0
        %1369 = vmatpush.msra.mxu0 0.0
        %1370 = vmatpush.msra.mxu0 0.0
        %1371 = vmatpush.msra.mxu0 0.0
        %1372 = vmatpush.msra.mxu0 0.0
        %1373 = vmatpush.msra.mxu0 0.0
        %1374 = vmatpush.msra.mxu0 0.0
        %1375 = vmatpush.msra.mxu0 %v1358
        %1376 = vmatpush.msra.mxu0 %v1357
        %1377 = vmatpush.msra.mxu0 %v1356
        %1378 = vmatpush.msra.mxu0 %v1355
        %1379 = vmatmul.f32.gmra.mxu0 %v1361
        %v1380 = vpop.f32.mrf.mxu0
        %v1381 = vadd.f32 %v1359, %v1380
        %1382 = vdwg.mxu0
        %v1383 = vperm.slane %v1381, 0
        %v1384 = vadd.f32 %v1353, %v1383
        %v1385 = vadd.f32 %v1354, %v1383
        %s1386 = scalar_lea.vmem %s10, 4
        %v1387 = vld [vmem:[%s1386] sm:$0x1]
        %s1388 = scalar_lea.vmem %s10, 5
        %v1389 = vld [vmem:[%s1388] sm:$0x1]
        %v1390 = vsel %vm412, %v1384, 0.0
        %1391 = vadd.xlane.f32.xlu0 %v1390
        %v1392 = vpop.xlane.xlu0 %1391
        %v1393 = vsel %vm412, %v1385, 0.0
        %1394 = vadd.xlane.f32.xlu0 %v1393
        %v1395 = vpop.xlane.xlu0 %1394
        %v1396 = vmul.f32 %v1392, %v425
        %v1397 = vmul.f32 %v1395, %v425
        %v1398 = vsub.f32 %v1384, %v1396
        %v1399 = vsub.f32 %v1385, %v1397
        %v1400 = vmul.f32 %v1398, %v1398
        %v1401 = vmul.f32 %v1399, %v1399
        %v1402 = vsel %vm412, %v1400, 0.0
        %1403 = vadd.xlane.f32.xlu0 %v1402
        %v1404 = vpop.xlane.xlu0 %1403
        %v1405 = vsel %vm412, %v1401, 0.0
        %1406 = vadd.xlane.f32.xlu0 %v1405
        %v1407 = vpop.xlane.xlu0 %1406
        %v1408 = vmul.f32 %v1404, %v425
        %v1409 = vmul.f32 %v1407, %v425
        %v1410 = vadd.f32 %v1408, 1e-05
        %v1411 = vadd.f32 %v1409, 1e-05
        %v1412 = vrsqrt.pop %v1410
        %v1413 = vmul.f32 %v1412, %v1410
        %v1414 = vmul.f32 %v1413, %v1412
        %v1415 = vmul.f32 0.5, %v1414
        %v1416 = vsub.f32 1.5, %v1415
        %v1417 = vmul.f32 %v1412, %v1416
        %vm1418 = vweird.f32 %v1410
        %vm1419 = vweird.f32 %v1412
        %vm1420 = vmor %vm1418, %vm1419
        %v1421 = vsel %vm1420, %v1412, %v1417
        %v1422 = vrsqrt.pop %v1411
        %v1423 = vmul.f32 %v1422, %v1411
        %v1424 = vmul.f32 %v1423, %v1422
        %v1425 = vmul.f32 0.5, %v1424
        %v1426 = vsub.f32 1.5, %v1425
        %v1427 = vmul.f32 %v1422, %v1426
        %vm1428 = vweird.f32 %v1411
        %vm1429 = vweird.f32 %v1422
        %vm1430 = vmor %vm1428, %vm1429
        %v1431 = vsel %vm1430, %v1422, %v1427
        %v1432 = vmul.f32 %v1398, %v1421
        %v1433 = vmul.f32 %v1399, %v1431
        %v1435 = vperm.slane %v1387, 0
        %v1437 = vmul.f32 %v1432, %v1435
        %v1438 = vmul.f32 %v1433, %v1435
        %v1440 = vperm.slane %v1389, 0
        %v1442 = vadd.f32 %v1437, %v1440
        %v1443 = vadd.f32 %v1438, %v1440
        %v1444 = vld [vmem:[%s6] sm:$0xff]
        %v1445 = vld [vmem:[%s6 + $0x8] sm:$0xff]
        %v1446 = vld [vmem:[%s6 + $0x10] sm:$0xff]
        %v1447 = vld [vmem:[%s6 + $0x18] sm:$0xff]
        %v1448 = vld [vmem:[%s6 + $0x20] sm:$0x1]
        %v1449 = vperm.slane %v1448, 0
        %v1451 = vsel %vm412, %v1442, 0
        %v1454 = vsel %vm412, %v1443, 0
        %1456 = vmatpush.msra.mxu0 0.0
        %1457 = vmatpush.msra.mxu0 0.0
        %1458 = vmatpush.msra.mxu0 0.0
        %1459 = vmatpush.msra.mxu0 0.0
        %1460 = vmatpush.msra.mxu0 0.0
        %1461 = vmatpush.msra.mxu0 0.0
        %1462 = vmatpush.msra.mxu0 0.0
        %1463 = vmatpush.msra.mxu0 0.0
        %1464 = vmatpush.msra.mxu0 0.0
        %1465 = vmatpush.msra.mxu0 0.0
        %1466 = vmatpush.msra.mxu0 0.0
        %1467 = vmatpush.msra.mxu0 0.0
        %1468 = vmatpush.msra.mxu0 %v1447
        %1469 = vmatpush.msra.mxu0 %v1446
        %1470 = vmatpush.msra.mxu0 %v1445
        %1471 = vmatpush.msra.mxu0 %v1444
        %1472 = vmatmul.f32.gmra.mxu0 %v1451
        %v1473 = vpop.f32.mrf.mxu0
        %v1474 = vadd.f32 %v1449, %v1473
        %1475 = vmatmul.f32.gmra.mxu0 %v1454
        %v1476 = vpop.f32.mrf.mxu0
        %v1477 = vadd.f32 %v1449, %v1476
        %1478 = vdwg.mxu0
        %v1479 = vxor.u32 %v1474, 2147483648
        %v1480 = vxor.u32 %v1477, 2147483648
        %v1481 = vmul.f32 %v1479, 1.442695
        %v1482 = vpow.pop %v1481
        %v1483 = vmul.f32 %v1480, 1.442695
        %v1484 = vpow.pop %v1483
        %v1485 = vadd.f32 %v1482, 1.0
        %v1486 = vadd.f32 %v1484, 1.0
        %v1487 = vrcp.pop %v1485
        %v1488 = vmul.f32 %v1485, %v1487
        %v1489 = vsub.f32 1.0, %v1488
        %v1490 = vmul.f32 %v1487, %v1489
        %v1491 = vadd.f32 %v1487, %v1490
        %vm1492 = vweird.f32 %v1485
        %vm1493 = vweird.f32 %v1487
        %vm1494 = vmor %vm1492, %vm1493
        %v1495 = vsel %vm1494, %v1487, %v1491
        %v1496 = vand.u32 2147483647, %v1485
        %vm1497 = vcmp.eq.f32.partialorder %v1496, 8.507059e+37
        %v1498 = vand.u32 %v1485, 2147483648
        %v1499 = vor.u32 1.1754944e-38, %v1498
        %v1500 = vsel %vm1497, %v1499, %v1495
        %v1501 = vmul.f32 1.0, %v1500
        %v1502 = vrcp.pop %v1486
        %v1503 = vmul.f32 %v1486, %v1502
        %v1504 = vsub.f32 1.0, %v1503
        %v1505 = vmul.f32 %v1502, %v1504
        %v1506 = vadd.f32 %v1502, %v1505
        %vm1507 = vweird.f32 %v1486
        %vm1508 = vweird.f32 %v1502
        %vm1509 = vmor %vm1507, %vm1508
        %v1510 = vsel %vm1509, %v1502, %v1506
        %v1511 = vand.u32 2147483647, %v1486
        %vm1512 = vcmp.eq.f32.partialorder %v1511, 8.507059e+37
        %v1513 = vand.u32 %v1486, 2147483648
        %v1514 = vor.u32 1.1754944e-38, %v1513
        %v1515 = vsel %vm1512, %v1514, %v1510
        %v1516 = vmul.f32 1.0, %v1515
        %v1517 = vmul.f32 %v1474, %v1501
        %v1518 = vmul.f32 %v1477, %v1516
        %v1519 = vld [vmem:[%s7] sm:$0xff]
        %v1520 = vld [vmem:[%s7 + $0x8] sm:$0xff]
        %v1521 = vld [vmem:[%s7 + $0x10] sm:$0xff]
        %v1522 = vld [vmem:[%s7 + $0x18] sm:$0xff]
        %v1523 = vld [vmem:[%s7 + $0x20] sm:$0xff]
        %v1524 = vld [vmem:[%s7 + $0x28] sm:$0xff]
        %v1525 = vld [vmem:[%s7 + $0x30] sm:$0xff]
        %v1526 = vld [vmem:[%s7 + $0x38] sm:$0xff]
        %v1527 = vld [vmem:[%s7 + $0x40] sm:$0x1]
        %vm1528 = vcmask 523264
        %v1530 = vsel %vm1528, %v1517, 0
        %v1533 = vsel %vm1528, %v1518, 0
        %1535 = vmatpush.msra.mxu0 0.0
        %1536 = vmatpush.msra.mxu0 0.0
        %1537 = vmatpush.msra.mxu0 0.0
        %1538 = vmatpush.msra.mxu0 0.0
        %1539 = vmatpush.msra.mxu0 0.0
        %1540 = vmatpush.msra.mxu0 0.0
        %1541 = vmatpush.msra.mxu0 0.0
        %1542 = vmatpush.msra.mxu0 0.0
        %1543 = vmatpush.msra.mxu0 %v1526
        %1544 = vmatpush.msra.mxu0 %v1525
        %1545 = vmatpush.msra.mxu0 %v1524
        %1546 = vmatpush.msra.mxu0 %v1523
        %1547 = vmatpush.msra.mxu0 %v1522
        %1548 = vmatpush.msra.mxu0 %v1521
        %1549 = vmatpush.msra.mxu0 %v1520
        %1550 = vmatpush.msra.mxu0 %v1519
        %1551 = vmatmul.f32.gmra.mxu0 %v1530
        %v1552 = vpop.f32.mrf.mxu0
        %v1553 = vadd.f32 0.0, %v1552
        %1554 = vmatmul.f32.gmra.mxu0 %v1533
        %v1555 = vpop.f32.mrf.mxu0
        %v1556 = vadd.f32 0.0, %v1555
        %1557 = vdwg.mxu0
        %v1558 = vadd.f32 %v1384, %v1553
        %v1559 = vadd.f32 %v1385, %v1556
        %v1560 = vperm.slane %v1527, 0
        %v1561 = vadd.f32 %v1558, %v1560
        %v1562 = vadd.f32 %v1559, %v1560
        %s1563 = scalar_lea.vmem %s10, 8
        %v1564 = vld [vmem:[%s1563] sm:$0x1]
        %s1565 = scalar_lea.vmem %s10, 9
        %v1566 = vld [vmem:[%s1565] sm:$0x1]
        %v1567 = vsel %vm412, %v1561, 0.0
        %1568 = vadd.xlane.f32.xlu0 %v1567
        %v1569 = vpop.xlane.xlu0 %1568
        %v1570 = vsel %vm412, %v1562, 0.0
        %1571 = vadd.xlane.f32.xlu0 %v1570
        %v1572 = vpop.xlane.xlu0 %1571
        %v1573 = vmul.f32 %v1569, %v425
        %v1574 = vmul.f32 %v1572, %v425
        %v1575 = vsub.f32 %v1561, %v1573
        %v1576 = vsub.f32 %v1562, %v1574
        %v1577 = vmul.f32 %v1575, %v1575
        %v1578 = vmul.f32 %v1576, %v1576
        %v1579 = vsel %vm412, %v1577, 0.0
        %1580 = vadd.xlane.f32.xlu0 %v1579
        %v1581 = vpop.xlane.xlu0 %1580
        %v1582 = vsel %vm412, %v1578, 0.0
        %1583 = vadd.xlane.f32.xlu0 %v1582
        %v1584 = vpop.xlane.xlu0 %1583
        %v1585 = vmul.f32 %v1581, %v425
        %v1586 = vmul.f32 %v1584, %v425
        %v1587 = vadd.f32 %v1585, 1e-05
        %v1588 = vadd.f32 %v1586, 1e-05
        %v1589 = vrsqrt.pop %v1587
        %v1590 = vmul.f32 %v1589, %v1587
        %v1591 = vmul.f32 %v1590, %v1589
        %v1592 = vmul.f32 0.5, %v1591
        %v1593 = vsub.f32 1.5, %v1592
        %v1594 = vmul.f32 %v1589, %v1593
        %vm1595 = vweird.f32 %v1587
        %vm1596 = vweird.f32 %v1589
        %vm1597 = vmor %vm1595, %vm1596
        %v1598 = vsel %vm1597, %v1589, %v1594
        %v1599 = vrsqrt.pop %v1588
        %v1600 = vmul.f32 %v1599, %v1588
        %v1601 = vmul.f32 %v1600, %v1599
        %v1602 = vmul.f32 0.5, %v1601
        %v1603 = vsub.f32 1.5, %v1602
        %v1604 = vmul.f32 %v1599, %v1603
        %vm1605 = vweird.f32 %v1588
        %vm1606 = vweird.f32 %v1599
        %vm1607 = vmor %vm1605, %vm1606
        %v1608 = vsel %vm1607, %v1599, %v1604
        %v1609 = vmul.f32 %v1575, %v1598
        %v1610 = vmul.f32 %v1576, %v1608
        %v1612 = vperm.slane %v1564, 0
        %v1614 = vmul.f32 %v1609, %v1612
        %v1615 = vmul.f32 %v1610, %v1612
        %v1617 = vperm.slane %v1566, 0
        %v1619 = vadd.f32 %v1614, %v1617
        %v1620 = vadd.f32 %v1615, %v1617
        %s1621 = scalar_lea.vmem %s3, 768
        %v1622 = vld [vmem:[%s1621] sm:$0xff]
        %v1623 = vld [vmem:[%s1621 + $0x8] sm:$0xff]
        %v1624 = vld [vmem:[%s1621 + $0x10] sm:$0xff]
        %v1625 = vld [vmem:[%s1621 + $0x18] sm:$0xff]
        %s1626 = scalar_lea.vmem %s4, 24
        %v1627 = vld [vmem:[%s1626] sm:$0x1]
        %v1629 = vperm.slane %v1627, 0
        %v1632 = vsel %vm412, %v1619, 0
        %v1635 = vsel %vm412, %v1620, 0
        %1637 = vmatpush.msra.mxu0 0.0
        %1638 = vmatpush.msra.mxu0 0.0
        %1639 = vmatpush.msra.mxu0 0.0
        %1640 = vmatpush.msra.mxu0 0.0
        %1641 = vmatpush.msra.mxu0 0.0
        %1642 = vmatpush.msra.mxu0 0.0
        %1643 = vmatpush.msra.mxu0 0.0
        %1644 = vmatpush.msra.mxu0 0.0
        %1645 = vmatpush.msra.mxu0 0.0
        %1646 = vmatpush.msra.mxu0 0.0
        %1647 = vmatpush.msra.mxu0 0.0
        %1648 = vmatpush.msra.mxu0 0.0
        %1649 = vmatpush.msra.mxu0 %v1625
        %1650 = vmatpush.msra.mxu0 %v1624
        %1651 = vmatpush.msra.mxu0 %v1623
        %1652 = vmatpush.msra.mxu0 %v1622
        %1653 = vmatmul.f32.gmra.mxu0 %v1632
        %v1654 = vpop.f32.mrf.mxu0
        %v1655 = vadd.f32 %v1629, %v1654
        %1656 = vmatmul.f32.gmra.mxu0 %v1635
        %v1657 = vpop.f32.mrf.mxu0
        %v1658 = vadd.f32 %v1629, %v1657
        %1659 = vdwg.mxu0
        %s1660 = scalar_lea.vmem %s3, 800
        %v1661 = vld [vmem:[%s1660] sm:$0xff]
        %v1662 = vld [vmem:[%s1660 + $0x8] sm:$0xff]
        %v1663 = vld [vmem:[%s1660 + $0x10] sm:$0xff]
        %v1664 = vld [vmem:[%s1660 + $0x18] sm:$0xff]
        %s1665 = scalar_lea.vmem %s4, 25
        %v1666 = vld [vmem:[%s1665] sm:$0x1]
        %v1668 = vperm.slane %v1666, 0
        %1670 = vmatpush.msra.mxu0 0.0
        %1671 = vmatpush.msra.mxu0 0.0
        %1672 = vmatpush.msra.mxu0 0.0
        %1673 = vmatpush.msra.mxu0 0.0
        %1674 = vmatpush.msra.mxu0 0.0
        %1675 = vmatpush.msra.mxu0 0.0
        %1676 = vmatpush.msra.mxu0 0.0
        %1677 = vmatpush.msra.mxu0 0.0
        %1678 = vmatpush.msra.mxu0 0.0
        %1679 = vmatpush.msra.mxu0 0.0
        %1680 = vmatpush.msra.mxu0 0.0
        %1681 = vmatpush.msra.mxu0 0.0
        %1682 = vmatpush.msra.mxu0 %v1664
        %1683 = vmatpush.msra.mxu0 %v1663
        %1684 = vmatpush.msra.mxu0 %v1662
        %1685 = vmatpush.msra.mxu0 %v1661
        %1686 = vmatmul.f32.gmra.mxu0 %v1632
        %v1687 = vpop.f32.mrf.mxu0
        %v1688 = vadd.f32 %v1668, %v1687
        %1689 = vmatmul.f32.gmra.mxu0 %v1635
        %v1690 = vpop.f32.mrf.mxu0
        %v1691 = vadd.f32 %v1668, %v1690
        %1692 = vdwg.mxu0
        %s1693 = scalar_lea.vmem %s3, 832
        %v1694 = vld [vmem:[%s1693] sm:$0xff]
        %v1695 = vld [vmem:[%s1693 + $0x8] sm:$0xff]
        %v1696 = vld [vmem:[%s1693 + $0x10] sm:$0xff]
        %v1697 = vld [vmem:[%s1693 + $0x18] sm:$0xff]
        %s1698 = scalar_lea.vmem %s4, 26
        %v1699 = vld [vmem:[%s1698] sm:$0x1]
        %v1701 = vperm.slane %v1699, 0
        %1703 = vmatpush.msra.mxu0 0.0
        %1704 = vmatpush.msra.mxu0 0.0
        %1705 = vmatpush.msra.mxu0 0.0
        %1706 = vmatpush.msra.mxu0 0.0
        %1707 = vmatpush.msra.mxu0 0.0
        %1708 = vmatpush.msra.mxu0 0.0
        %1709 = vmatpush.msra.mxu0 0.0
        %1710 = vmatpush.msra.mxu0 0.0
        %1711 = vmatpush.msra.mxu0 0.0
        %1712 = vmatpush.msra.mxu0 0.0
        %1713 = vmatpush.msra.mxu0 0.0
        %1714 = vmatpush.msra.mxu0 0.0
        %1715 = vmatpush.msra.mxu0 %v1697
        %1716 = vmatpush.msra.mxu0 %v1696
        %1717 = vmatpush.msra.mxu0 %v1695
        %1718 = vmatpush.msra.mxu0 %v1694
        %1719 = vmatmul.f32.gmra.mxu0 %v1632
        %v1720 = vpop.f32.mrf.mxu0
        %v1721 = vadd.f32 %v1701, %v1720
        %1722 = vmatmul.f32.gmra.mxu0 %v1635
        %v1723 = vpop.f32.mrf.mxu0
        %v1724 = vadd.f32 %v1701, %v1723
        %1725 = vdwg.mxu0
        %s1726 = scalar_lea.vmem %s3, 864
        %v1727 = vld [vmem:[%s1726] sm:$0xff]
        %v1728 = vld [vmem:[%s1726 + $0x8] sm:$0xff]
        %v1729 = vld [vmem:[%s1726 + $0x10] sm:$0xff]
        %v1730 = vld [vmem:[%s1726 + $0x18] sm:$0xff]
        %s1731 = scalar_lea.vmem %s4, 27
        %v1732 = vld [vmem:[%s1731] sm:$0x1]
        %v1734 = vperm.slane %v1732, 0
        %1736 = vmatpush.msra.mxu0 0.0
        %1737 = vmatpush.msra.mxu0 0.0
        %1738 = vmatpush.msra.mxu0 0.0
        %1739 = vmatpush.msra.mxu0 0.0
        %1740 = vmatpush.msra.mxu0 0.0
        %1741 = vmatpush.msra.mxu0 0.0
        %1742 = vmatpush.msra.mxu0 0.0
        %1743 = vmatpush.msra.mxu0 0.0
        %1744 = vmatpush.msra.mxu0 0.0
        %1745 = vmatpush.msra.mxu0 0.0
        %1746 = vmatpush.msra.mxu0 0.0
        %1747 = vmatpush.msra.mxu0 0.0
        %1748 = vmatpush.msra.mxu0 %v1730
        %1749 = vmatpush.msra.mxu0 %v1729
        %1750 = vmatpush.msra.mxu0 %v1728
        %1751 = vmatpush.msra.mxu0 %v1727
        %1752 = vmatmul.f32.gmra.mxu0 %v1632
        %v1753 = vpop.f32.mrf.mxu0
        %v1754 = vadd.f32 %v1734, %v1753
        %1755 = vmatmul.f32.gmra.mxu0 %v1635
        %v1756 = vpop.f32.mrf.mxu0
        %v1757 = vadd.f32 %v1734, %v1756
        %1758 = vdwg.mxu0
        %s1759 = scalar_lea.vmem %s3, 896
        %v1760 = vld [vmem:[%s1759] sm:$0xff]
        %v1761 = vld [vmem:[%s1759 + $0x8] sm:$0xff]
        %v1762 = vld [vmem:[%s1759 + $0x10] sm:$0xff]
        %v1763 = vld [vmem:[%s1759 + $0x18] sm:$0xff]
        %s1764 = scalar_lea.vmem %s4, 28
        %v1765 = vld [vmem:[%s1764] sm:$0x1]
        %v1767 = vperm.slane %v1765, 0
        %1769 = vmatpush.msra.mxu0 0.0
        %1770 = vmatpush.msra.mxu0 0.0
        %1771 = vmatpush.msra.mxu0 0.0
        %1772 = vmatpush.msra.mxu0 0.0
        %1773 = vmatpush.msra.mxu0 0.0
        %1774 = vmatpush.msra.mxu0 0.0
        %1775 = vmatpush.msra.mxu0 0.0
        %1776 = vmatpush.msra.mxu0 0.0
        %1777 = vmatpush.msra.mxu0 0.0
        %1778 = vmatpush.msra.mxu0 0.0
        %1779 = vmatpush.msra.mxu0 0.0
        %1780 = vmatpush.msra.mxu0 0.0
        %1781 = vmatpush.msra.mxu0 %v1763
        %1782 = vmatpush.msra.mxu0 %v1762
        %1783 = vmatpush.msra.mxu0 %v1761
        %1784 = vmatpush.msra.mxu0 %v1760
        %1785 = vmatmul.f32.gmra.mxu0 %v1632
        %v1786 = vpop.f32.mrf.mxu0
        %v1787 = vadd.f32 %v1767, %v1786
        %1788 = vmatmul.f32.gmra.mxu0 %v1635
        %v1789 = vpop.f32.mrf.mxu0
        %v1790 = vadd.f32 %v1767, %v1789
        %1791 = vdwg.mxu0
        %s1792 = scalar_lea.vmem %s3, 928
        %v1793 = vld [vmem:[%s1792] sm:$0xff]
        %v1794 = vld [vmem:[%s1792 + $0x8] sm:$0xff]
        %v1795 = vld [vmem:[%s1792 + $0x10] sm:$0xff]
        %v1796 = vld [vmem:[%s1792 + $0x18] sm:$0xff]
        %s1797 = scalar_lea.vmem %s4, 29
        %v1798 = vld [vmem:[%s1797] sm:$0x1]
        %v1800 = vperm.slane %v1798, 0
        %1802 = vmatpush.msra.mxu0 0.0
        %1803 = vmatpush.msra.mxu0 0.0
        %1804 = vmatpush.msra.mxu0 0.0
        %1805 = vmatpush.msra.mxu0 0.0
        %1806 = vmatpush.msra.mxu0 0.0
        %1807 = vmatpush.msra.mxu0 0.0
        %1808 = vmatpush.msra.mxu0 0.0
        %1809 = vmatpush.msra.mxu0 0.0
        %1810 = vmatpush.msra.mxu0 0.0
        %1811 = vmatpush.msra.mxu0 0.0
        %1812 = vmatpush.msra.mxu0 0.0
        %1813 = vmatpush.msra.mxu0 0.0
        %1814 = vmatpush.msra.mxu0 %v1796
        %1815 = vmatpush.msra.mxu0 %v1795
        %1816 = vmatpush.msra.mxu0 %v1794
        %1817 = vmatpush.msra.mxu0 %v1793
        %1818 = vmatmul.f32.gmra.mxu0 %v1632
        %v1819 = vpop.f32.mrf.mxu0
        %v1820 = vadd.f32 %v1800, %v1819
        %1821 = vmatmul.f32.gmra.mxu0 %v1635
        %v1822 = vpop.f32.mrf.mxu0
        %v1823 = vadd.f32 %v1800, %v1822
        %1824 = vdwg.mxu0
        %s1825 = scalar_lea.vmem %s3, 960
        %v1826 = vld [vmem:[%s1825] sm:$0xff]
        %v1827 = vld [vmem:[%s1825 + $0x8] sm:$0xff]
        %v1828 = vld [vmem:[%s1825 + $0x10] sm:$0xff]
        %v1829 = vld [vmem:[%s1825 + $0x18] sm:$0xff]
        %s1830 = scalar_lea.vmem %s4, 30
        %v1831 = vld [vmem:[%s1830] sm:$0x1]
        %v1833 = vperm.slane %v1831, 0
        %1835 = vmatpush.msra.mxu0 0.0
        %1836 = vmatpush.msra.mxu0 0.0
        %1837 = vmatpush.msra.mxu0 0.0
        %1838 = vmatpush.msra.mxu0 0.0
        %1839 = vmatpush.msra.mxu0 0.0
        %1840 = vmatpush.msra.mxu0 0.0
        %1841 = vmatpush.msra.mxu0 0.0
        %1842 = vmatpush.msra.mxu0 0.0
        %1843 = vmatpush.msra.mxu0 0.0
        %1844 = vmatpush.msra.mxu0 0.0
        %1845 = vmatpush.msra.mxu0 0.0
        %1846 = vmatpush.msra.mxu0 0.0
        %1847 = vmatpush.msra.mxu0 %v1829
        %1848 = vmatpush.msra.mxu0 %v1828
        %1849 = vmatpush.msra.mxu0 %v1827
        %1850 = vmatpush.msra.mxu0 %v1826
        %1851 = vmatmul.f32.gmra.mxu0 %v1632
        %v1852 = vpop.f32.mrf.mxu0
        %v1853 = vadd.f32 %v1833, %v1852
        %1854 = vmatmul.f32.gmra.mxu0 %v1635
        %v1855 = vpop.f32.mrf.mxu0
        %v1856 = vadd.f32 %v1833, %v1855
        %1857 = vdwg.mxu0
        %s1858 = scalar_lea.vmem %s3, 992
        %v1859 = vld [vmem:[%s1858] sm:$0xff]
        %v1860 = vld [vmem:[%s1858 + $0x8] sm:$0xff]
        %v1861 = vld [vmem:[%s1858 + $0x10] sm:$0xff]
        %v1862 = vld [vmem:[%s1858 + $0x18] sm:$0xff]
        %s1863 = scalar_lea.vmem %s4, 31
        %v1864 = vld [vmem:[%s1863] sm:$0x1]
        %v1866 = vperm.slane %v1864, 0
        %1868 = vmatpush.msra.mxu0 0.0
        %1869 = vmatpush.msra.mxu0 0.0
        %1870 = vmatpush.msra.mxu0 0.0
        %1871 = vmatpush.msra.mxu0 0.0
        %1872 = vmatpush.msra.mxu0 0.0
        %1873 = vmatpush.msra.mxu0 0.0
        %1874 = vmatpush.msra.mxu0 0.0
        %1875 = vmatpush.msra.mxu0 0.0
        %1876 = vmatpush.msra.mxu0 0.0
        %1877 = vmatpush.msra.mxu0 0.0
        %1878 = vmatpush.msra.mxu0 0.0
        %1879 = vmatpush.msra.mxu0 0.0
        %1880 = vmatpush.msra.mxu0 %v1862
        %1881 = vmatpush.msra.mxu0 %v1861
        %1882 = vmatpush.msra.mxu0 %v1860
        %1883 = vmatpush.msra.mxu0 %v1859
        %1884 = vmatmul.f32.gmra.mxu0 %v1632
        %v1885 = vpop.f32.mrf.mxu0
        %v1886 = vadd.f32 %v1866, %v1885
        %1887 = vmatmul.f32.gmra.mxu0 %v1635
        %v1888 = vpop.f32.mrf.mxu0
        %v1889 = vadd.f32 %v1866, %v1888
        %1890 = vdwg.mxu0
        %s1891 = scalar_lea.vmem %s3, 1024
        %v1892 = vld [vmem:[%s1891] sm:$0xff]
        %v1893 = vld [vmem:[%s1891 + $0x8] sm:$0xff]
        %v1894 = vld [vmem:[%s1891 + $0x10] sm:$0xff]
        %v1895 = vld [vmem:[%s1891 + $0x18] sm:$0xff]
        %s1896 = scalar_lea.vmem %s4, 32
        %v1897 = vld [vmem:[%s1896] sm:$0x1]
        %v1899 = vperm.slane %v1897, 0
        %1901 = vmatpush.msra.mxu0 0.0
        %1902 = vmatpush.msra.mxu0 0.0
        %1903 = vmatpush.msra.mxu0 0.0
        %1904 = vmatpush.msra.mxu0 0.0
        %1905 = vmatpush.msra.mxu0 0.0
        %1906 = vmatpush.msra.mxu0 0.0
        %1907 = vmatpush.msra.mxu0 0.0
        %1908 = vmatpush.msra.mxu0 0.0
        %1909 = vmatpush.msra.mxu0 0.0
        %1910 = vmatpush.msra.mxu0 0.0
        %1911 = vmatpush.msra.mxu0 0.0
        %1912 = vmatpush.msra.mxu0 0.0
        %1913 = vmatpush.msra.mxu0 %v1895
        %1914 = vmatpush.msra.mxu0 %v1894
        %1915 = vmatpush.msra.mxu0 %v1893
        %1916 = vmatpush.msra.mxu0 %v1892
        %1917 = vmatmul.f32.gmra.mxu0 %v1632
        %v1918 = vpop.f32.mrf.mxu0
        %v1919 = vadd.f32 %v1899, %v1918
        %1920 = vmatmul.f32.gmra.mxu0 %v1635
        %v1921 = vpop.f32.mrf.mxu0
        %v1922 = vadd.f32 %v1899, %v1921
        %1923 = vdwg.mxu0
        %s1924 = scalar_lea.vmem %s3, 1056
        %v1925 = vld [vmem:[%s1924] sm:$0xff]
        %v1926 = vld [vmem:[%s1924 + $0x8] sm:$0xff]
        %v1927 = vld [vmem:[%s1924 + $0x10] sm:$0xff]
        %v1928 = vld [vmem:[%s1924 + $0x18] sm:$0xff]
        %s1929 = scalar_lea.vmem %s4, 33
        %v1930 = vld [vmem:[%s1929] sm:$0x1]
        %v1932 = vperm.slane %v1930, 0
        %1934 = vmatpush.msra.mxu0 0.0
        %1935 = vmatpush.msra.mxu0 0.0
        %1936 = vmatpush.msra.mxu0 0.0
        %1937 = vmatpush.msra.mxu0 0.0
        %1938 = vmatpush.msra.mxu0 0.0
        %1939 = vmatpush.msra.mxu0 0.0
        %1940 = vmatpush.msra.mxu0 0.0
        %1941 = vmatpush.msra.mxu0 0.0
        %1942 = vmatpush.msra.mxu0 0.0
        %1943 = vmatpush.msra.mxu0 0.0
        %1944 = vmatpush.msra.mxu0 0.0
        %1945 = vmatpush.msra.mxu0 0.0
        %1946 = vmatpush.msra.mxu0 %v1928
        %1947 = vmatpush.msra.mxu0 %v1927
        %1948 = vmatpush.msra.mxu0 %v1926
        %1949 = vmatpush.msra.mxu0 %v1925
        %1950 = vmatmul.f32.gmra.mxu0 %v1632
        %v1951 = vpop.f32.mrf.mxu0
        %v1952 = vadd.f32 %v1932, %v1951
        %1953 = vmatmul.f32.gmra.mxu0 %v1635
        %v1954 = vpop.f32.mrf.mxu0
        %v1955 = vadd.f32 %v1932, %v1954
        %1956 = vdwg.mxu0
        %s1957 = scalar_lea.vmem %s3, 1088
        %v1958 = vld [vmem:[%s1957] sm:$0xff]
        %v1959 = vld [vmem:[%s1957 + $0x8] sm:$0xff]
        %v1960 = vld [vmem:[%s1957 + $0x10] sm:$0xff]
        %v1961 = vld [vmem:[%s1957 + $0x18] sm:$0xff]
        %s1962 = scalar_lea.vmem %s4, 34
        %v1963 = vld [vmem:[%s1962] sm:$0x1]
        %v1965 = vperm.slane %v1963, 0
        %1967 = vmatpush.msra.mxu0 0.0
        %1968 = vmatpush.msra.mxu0 0.0
        %1969 = vmatpush.msra.mxu0 0.0
        %1970 = vmatpush.msra.mxu0 0.0
        %1971 = vmatpush.msra.mxu0 0.0
        %1972 = vmatpush.msra.mxu0 0.0
        %1973 = vmatpush.msra.mxu0 0.0
        %1974 = vmatpush.msra.mxu0 0.0
        %1975 = vmatpush.msra.mxu0 0.0
        %1976 = vmatpush.msra.mxu0 0.0
        %1977 = vmatpush.msra.mxu0 0.0
        %1978 = vmatpush.msra.mxu0 0.0
        %1979 = vmatpush.msra.mxu0 %v1961
        %1980 = vmatpush.msra.mxu0 %v1960
        %1981 = vmatpush.msra.mxu0 %v1959
        %1982 = vmatpush.msra.mxu0 %v1958
        %1983 = vmatmul.f32.gmra.mxu0 %v1632
        %v1984 = vpop.f32.mrf.mxu0
        %v1985 = vadd.f32 %v1965, %v1984
        %1986 = vmatmul.f32.gmra.mxu0 %v1635
        %v1987 = vpop.f32.mrf.mxu0
        %v1988 = vadd.f32 %v1965, %v1987
        %1989 = vdwg.mxu0
        %s1990 = scalar_lea.vmem %s3, 1120
        %v1991 = vld [vmem:[%s1990] sm:$0xff]
        %v1992 = vld [vmem:[%s1990 + $0x8] sm:$0xff]
        %v1993 = vld [vmem:[%s1990 + $0x10] sm:$0xff]
        %v1994 = vld [vmem:[%s1990 + $0x18] sm:$0xff]
        %s1995 = scalar_lea.vmem %s4, 35
        %v1996 = vld [vmem:[%s1995] sm:$0x1]
        %v1998 = vperm.slane %v1996, 0
        %2000 = vmatpush.msra.mxu0 0.0
        %2001 = vmatpush.msra.mxu0 0.0
        %2002 = vmatpush.msra.mxu0 0.0
        %2003 = vmatpush.msra.mxu0 0.0
        %2004 = vmatpush.msra.mxu0 0.0
        %2005 = vmatpush.msra.mxu0 0.0
        %2006 = vmatpush.msra.mxu0 0.0
        %2007 = vmatpush.msra.mxu0 0.0
        %2008 = vmatpush.msra.mxu0 0.0
        %2009 = vmatpush.msra.mxu0 0.0
        %2010 = vmatpush.msra.mxu0 0.0
        %2011 = vmatpush.msra.mxu0 0.0
        %2012 = vmatpush.msra.mxu0 %v1994
        %2013 = vmatpush.msra.mxu0 %v1993
        %2014 = vmatpush.msra.mxu0 %v1992
        %2015 = vmatpush.msra.mxu0 %v1991
        %2016 = vmatmul.f32.gmra.mxu0 %v1632
        %v2017 = vpop.f32.mrf.mxu0
        %v2018 = vadd.f32 %v1998, %v2017
        %2019 = vmatmul.f32.gmra.mxu0 %v1635
        %v2020 = vpop.f32.mrf.mxu0
        %v2021 = vadd.f32 %v1998, %v2020
        %2022 = vdwg.mxu0
        %s2023 = scalar_lea.vmem %s5, 64
        %v2024 = vld [vmem:[%s2023] sm:$0xff]
        %s2025 = scalar_lea.vmem %s5, 72
        %v2026 = vld [vmem:[%s2025] sm:$0xff]
        %s2027 = scalar_lea.vmem %s5, 80
        %v2028 = vld [vmem:[%s2027] sm:$0xff]
        %s2029 = scalar_lea.vmem %s5, 88
        %v2030 = vld [vmem:[%s2029] sm:$0xff]
        %v2032 = vsel %vm881, %v1655, 0
        %v2035 = vsel %vm881, %v1658, 0
        %v2038 = vsel %vm881, %v1787, 0
        %v2041 = vsel %vm881, %v1790, 0
        %2043 = vmatpush.xpose.msra.mxu0 0.0
        %2044 = vmatpush.xpose.msra.mxu0 0.0
        %2045 = vmatpush.xpose.msra.mxu0 0.0
        %2046 = vmatpush.xpose.msra.mxu0 0.0
        %2047 = vmatpush.xpose.msra.mxu0 0.0
        %2048 = vmatpush.xpose.msra.mxu0 0.0
        %2049 = vmatpush.xpose.msra.mxu0 0.0
        %2050 = vmatpush.xpose.msra.mxu0 0.0
        %2051 = vmatpush.xpose.msra.mxu0 0.0
        %2052 = vmatpush.xpose.msra.mxu0 0.0
        %2053 = vmatpush.xpose.msra.mxu0 0.0
        %2054 = vmatpush.xpose.msra.mxu0 0.0
        %2055 = vmatpush.xpose.msra.mxu0 0.0
        %2056 = vmatpush.xpose.msra.mxu0 0.0
        %2057 = vmatpush.xpose.msra.mxu0 %v2041
        %2058 = vmatpush.xpose.msra.mxu0 %v2038
        %2059 = vmatmul.f32.gmra.mxu0 %v2032
        %v2060 = vpop.f32.mrf.mxu0
        %v2061 = vadd.f32 0.0, %v2060
        %2062 = vmatmul.f32.gmra.mxu0 %v2035
        %v2063 = vpop.f32.mrf.mxu0
        %v2064 = vadd.f32 0.0, %v2063
        %2065 = vdwg.mxu0
        %v2067 = vsel %vm881, %v1688, 0
        %v2070 = vsel %vm881, %v1691, 0
        %v2073 = vsel %vm881, %v1820, 0
        %v2076 = vsel %vm881, %v1823, 0
        %2078 = vmatpush.xpose.msra.mxu0 0.0
        %2079 = vmatpush.xpose.msra.mxu0 0.0
        %2080 = vmatpush.xpose.msra.mxu0 0.0
        %2081 = vmatpush.xpose.msra.mxu0 0.0
        %2082 = vmatpush.xpose.msra.mxu0 0.0
        %2083 = vmatpush.xpose.msra.mxu0 0.0
        %2084 = vmatpush.xpose.msra.mxu0 0.0
        %2085 = vmatpush.xpose.msra.mxu0 0.0
        %2086 = vmatpush.xpose.msra.mxu0 0.0
        %2087 = vmatpush.xpose.msra.mxu0 0.0
        %2088 = vmatpush.xpose.msra.mxu0 0.0
        %2089 = vmatpush.xpose.msra.mxu0 0.0
        %2090 = vmatpush.xpose.msra.mxu0 0.0
        %2091 = vmatpush.xpose.msra.mxu0 0.0
        %2092 = vmatpush.xpose.msra.mxu0 %v2076
        %2093 = vmatpush.xpose.msra.mxu0 %v2073
        %2094 = vmatmul.f32.gmra.mxu0 %v2067
        %v2095 = vpop.f32.mrf.mxu0
        %v2096 = vadd.f32 0.0, %v2095
        %2097 = vmatmul.f32.gmra.mxu0 %v2070
        %v2098 = vpop.f32.mrf.mxu0
        %v2099 = vadd.f32 0.0, %v2098
        %2100 = vdwg.mxu0
        %v2102 = vsel %vm881, %v1721, 0
        %v2105 = vsel %vm881, %v1724, 0
        %v2108 = vsel %vm881, %v1853, 0
        %v2111 = vsel %vm881, %v1856, 0
        %2113 = vmatpush.xpose.msra.mxu0 0.0
        %2114 = vmatpush.xpose.msra.mxu0 0.0
        %2115 = vmatpush.xpose.msra.mxu0 0.0
        %2116 = vmatpush.xpose.msra.mxu0 0.0
        %2117 = vmatpush.xpose.msra.mxu0 0.0
        %2118 = vmatpush.xpose.msra.mxu0 0.0
        %2119 = vmatpush.xpose.msra.mxu0 0.0
        %2120 = vmatpush.xpose.msra.mxu0 0.0
        %2121 = vmatpush.xpose.msra.mxu0 0.0
        %2122 = vmatpush.xpose.msra.mxu0 0.0
        %2123 = vmatpush.xpose.msra.mxu0 0.0
        %2124 = vmatpush.xpose.msra.mxu0 0.0
        %2125 = vmatpush.xpose.msra.mxu0 0.0
        %2126 = vmatpush.xpose.msra.mxu0 0.0
        %2127 = vmatpush.xpose.msra.mxu0 %v2111
        %2128 = vmatpush.xpose.msra.mxu0 %v2108
        %2129 = vmatmul.f32.gmra.mxu0 %v2102
        %v2130 = vpop.f32.mrf.mxu0
        %v2131 = vadd.f32 0.0, %v2130
        %2132 = vmatmul.f32.gmra.mxu0 %v2105
        %v2133 = vpop.f32.mrf.mxu0
        %v2134 = vadd.f32 0.0, %v2133
        %2135 = vdwg.mxu0
        %v2137 = vsel %vm881, %v1754, 0
        %v2140 = vsel %vm881, %v1757, 0
        %v2143 = vsel %vm881, %v1886, 0
        %v2146 = vsel %vm881, %v1889, 0
        %2148 = vmatpush.xpose.msra.mxu0 0.0
        %2149 = vmatpush.xpose.msra.mxu0 0.0
        %2150 = vmatpush.xpose.msra.mxu0 0.0
        %2151 = vmatpush.xpose.msra.mxu0 0.0
        %2152 = vmatpush.xpose.msra.mxu0 0.0
        %2153 = vmatpush.xpose.msra.mxu0 0.0
        %2154 = vmatpush.xpose.msra.mxu0 0.0
        %2155 = vmatpush.xpose.msra.mxu0 0.0
        %2156 = vmatpush.xpose.msra.mxu0 0.0
        %2157 = vmatpush.xpose.msra.mxu0 0.0
        %2158 = vmatpush.xpose.msra.mxu0 0.0
        %2159 = vmatpush.xpose.msra.mxu0 0.0
        %2160 = vmatpush.xpose.msra.mxu0 0.0
        %2161 = vmatpush.xpose.msra.mxu0 0.0
        %2162 = vmatpush.xpose.msra.mxu0 %v2146
        %2163 = vmatpush.xpose.msra.mxu0 %v2143
        %2164 = vmatmul.f32.gmra.mxu0 %v2137
        %v2165 = vpop.f32.mrf.mxu0
        %v2166 = vadd.f32 0.0, %v2165
        %2167 = vmatmul.f32.gmra.mxu0 %v2140
        %v2168 = vpop.f32.mrf.mxu0
        %v2169 = vadd.f32 0.0, %v2168
        %2170 = vdwg.mxu0
        %v2171 = vsel %vm383, %v2061, -inf
        %2172 = vmax.xlane.f32.xlu0 %v2171
        %v2173 = vpop.xlane.xlu0 %2172
        %v2174 = vsel %vm383, %v2064, -inf
        %2175 = vmax.xlane.f32.xlu0 %v2174
        %v2176 = vpop.xlane.xlu0 %2175
        %v2177 = vsel %vm383, %v2096, -inf
        %2178 = vmax.xlane.f32.xlu0 %v2177
        %v2179 = vpop.xlane.xlu0 %2178
        %v2180 = vsel %vm383, %v2099, -inf
        %2181 = vmax.xlane.f32.xlu0 %v2180
        %v2182 = vpop.xlane.xlu0 %2181
        %v2183 = vsel %vm383, %v2131, -inf
        %2184 = vmax.xlane.f32.xlu0 %v2183
        %v2185 = vpop.xlane.xlu0 %2184
        %v2186 = vsel %vm383, %v2134, -inf
        %2187 = vmax.xlane.f32.xlu0 %v2186
        %v2188 = vpop.xlane.xlu0 %2187
        %v2189 = vsel %vm383, %v2166, -inf
        %2190 = vmax.xlane.f32.xlu0 %v2189
        %v2191 = vpop.xlane.xlu0 %2190
        %v2192 = vsel %vm383, %v2169, -inf
        %2193 = vmax.xlane.f32.xlu0 %v2192
        %v2194 = vpop.xlane.xlu0 %2193
        %v2195 = vsub.f32 %v2061, %v2173
        %v2196 = vsub.f32 %v2064, %v2176
        %v2197 = vsub.f32 %v2096, %v2179
        %v2198 = vsub.f32 %v2099, %v2182
        %v2199 = vsub.f32 %v2131, %v2185
        %v2200 = vsub.f32 %v2134, %v2188
        %v2201 = vsub.f32 %v2166, %v2191
        %v2202 = vsub.f32 %v2169, %v2194
        %v2203 = vmul.f32 %v2195, 1.442695
        %v2204 = vpow.pop %v2203
        %v2205 = vmul.f32 %v2196, 1.442695
        %v2206 = vpow.pop %v2205
        %v2207 = vmul.f32 %v2197, 1.442695
        %v2208 = vpow.pop %v2207
        %v2209 = vmul.f32 %v2198, 1.442695
        %v2210 = vpow.pop %v2209
        %v2211 = vmul.f32 %v2199, 1.442695
        %v2212 = vpow.pop %v2211
        %v2213 = vmul.f32 %v2200, 1.442695
        %v2214 = vpow.pop %v2213
        %v2215 = vmul.f32 %v2201, 1.442695
        %v2216 = vpow.pop %v2215
        %v2217 = vmul.f32 %v2202, 1.442695
        %v2218 = vpow.pop %v2217
        %v2219 = vsel %vm383, %v2204, 0.0
        %2220 = vadd.xlane.f32.xlu0 %v2219
        %v2221 = vpop.xlane.xlu0 %2220
        %v2222 = vsel %vm383, %v2206, 0.0
        %2223 = vadd.xlane.f32.xlu0 %v2222
        %v2224 = vpop.xlane.xlu0 %2223
        %v2225 = vsel %vm383, %v2208, 0.0
        %2226 = vadd.xlane.f32.xlu0 %v2225
        %v2227 = vpop.xlane.xlu0 %2226
        %v2228 = vsel %vm383, %v2210, 0.0
        %2229 = vadd.xlane.f32.xlu0 %v2228
        %v2230 = vpop.xlane.xlu0 %2229
        %v2231 = vsel %vm383, %v2212, 0.0
        %2232 = vadd.xlane.f32.xlu0 %v2231
        %v2233 = vpop.xlane.xlu0 %2232
        %v2234 = vsel %vm383, %v2214, 0.0
        %2235 = vadd.xlane.f32.xlu0 %v2234
        %v2236 = vpop.xlane.xlu0 %2235
        %v2237 = vsel %vm383, %v2216, 0.0
        %2238 = vadd.xlane.f32.xlu0 %v2237
        %v2239 = vpop.xlane.xlu0 %2238
        %v2240 = vsel %vm383, %v2218, 0.0
        %2241 = vadd.xlane.f32.xlu0 %v2240
        %v2242 = vpop.xlane.xlu0 %2241
        %v2243 = vrcp.pop %v2221
        %v2244 = vrcp.pop %v2224
        %v2245 = vrcp.pop %v2227
        %v2246 = vrcp.pop %v2230
        %v2247 = vrcp.pop %v2233
        %v2248 = vrcp.pop %v2236
        %v2249 = vrcp.pop %v2239
        %v2250 = vrcp.pop %v2242
        %v2251 = vmul.f32 %v2204, %v2243
        %v2252 = vmul.f32 %v2206, %v2244
        %v2253 = vmul.f32 %v2208, %v2245
        %v2254 = vmul.f32 %v2210, %v2246
        %v2255 = vmul.f32 %v2212, %v2247
        %v2256 = vmul.f32 %v2214, %v2248
        %v2257 = vmul.f32 %v2216, %v2249
        %v2258 = vmul.f32 %v2218, %v2250
        %v2260 = vsel %vm383, %v2251, 0
        %v2263 = vsel %vm383, %v2252, 0
        %2265 = vmatpush.msra.mxu0 0.0
        %2266 = vmatpush.msra.mxu0 0.0
        %2267 = vmatpush.msra.mxu0 0.0
        %2268 = vmatpush.msra.mxu0 0.0
        %2269 = vmatpush.msra.mxu0 0.0
        %2270 = vmatpush.msra.mxu0 0.0
        %2271 = vmatpush.msra.mxu0 0.0
        %2272 = vmatpush.msra.mxu0 0.0
        %2273 = vmatpush.msra.mxu0 0.0
        %2274 = vmatpush.msra.mxu0 0.0
        %2275 = vmatpush.msra.mxu0 0.0
        %2276 = vmatpush.msra.mxu0 0.0
        %2277 = vmatpush.msra.mxu0 0.0
        %2278 = vmatpush.msra.mxu0 0.0
        %2279 = vmatpush.msra.mxu0 %v1922
        %2280 = vmatpush.msra.mxu0 %v1919
        %2281 = vmatmul.f32.gmra.mxu0 %v2260
        %v2282 = vpop.f32.mrf.mxu0
        %v2283 = vadd.f32 0.0, %v2282
        %2284 = vmatmul.f32.gmra.mxu0 %v2263
        %v2285 = vpop.f32.mrf.mxu0
        %v2286 = vadd.f32 0.0, %v2285
        %2287 = vdwg.mxu0
        %v2289 = vsel %vm383, %v2253, 0
        %v2292 = vsel %vm383, %v2254, 0
        %2294 = vmatpush.msra.mxu0 0.0
        %2295 = vmatpush.msra.mxu0 0.0
        %2296 = vmatpush.msra.mxu0 0.0
        %2297 = vmatpush.msra.mxu0 0.0
        %2298 = vmatpush.msra.mxu0 0.0
        %2299 = vmatpush.msra.mxu0 0.0
        %2300 = vmatpush.msra.mxu0 0.0
        %2301 = vmatpush.msra.mxu0 0.0
        %2302 = vmatpush.msra.mxu0 0.0
        %2303 = vmatpush.msra.mxu0 0.0
        %2304 = vmatpush.msra.mxu0 0.0
        %2305 = vmatpush.msra.mxu0 0.0
        %2306 = vmatpush.msra.mxu0 0.0
        %2307 = vmatpush.msra.mxu0 0.0
        %2308 = vmatpush.msra.mxu0 %v1955
        %2309 = vmatpush.msra.mxu0 %v1952
        %2310 = vmatmul.f32.gmra.mxu0 %v2289
        %v2311 = vpop.f32.mrf.mxu0
        %v2312 = vadd.f32 0.0, %v2311
        %2313 = vmatmul.f32.gmra.mxu0 %v2292
        %v2314 = vpop.f32.mrf.mxu0
        %v2315 = vadd.f32 0.0, %v2314
        %2316 = vdwg.mxu0
        %v2318 = vsel %vm383, %v2255, 0
        %v2321 = vsel %vm383, %v2256, 0
        %2323 = vmatpush.msra.mxu0 0.0
        %2324 = vmatpush.msra.mxu0 0.0
        %2325 = vmatpush.msra.mxu0 0.0
        %2326 = vmatpush.msra.mxu0 0.0
        %2327 = vmatpush.msra.mxu0 0.0
        %2328 = vmatpush.msra.mxu0 0.0
        %2329 = vmatpush.msra.mxu0 0.0
        %2330 = vmatpush.msra.mxu0 0.0
        %2331 = vmatpush.msra.mxu0 0.0
        %2332 = vmatpush.msra.mxu0 0.0
        %2333 = vmatpush.msra.mxu0 0.0
        %2334 = vmatpush.msra.mxu0 0.0
        %2335 = vmatpush.msra.mxu0 0.0
        %2336 = vmatpush.msra.mxu0 0.0
        %2337 = vmatpush.msra.mxu0 %v1988
        %2338 = vmatpush.msra.mxu0 %v1985
        %2339 = vmatmul.f32.gmra.mxu0 %v2318
        %v2340 = vpop.f32.mrf.mxu0
        %v2341 = vadd.f32 0.0, %v2340
        %2342 = vmatmul.f32.gmra.mxu0 %v2321
        %v2343 = vpop.f32.mrf.mxu0
        %v2344 = vadd.f32 0.0, %v2343
        %2345 = vdwg.mxu0
        %v2347 = vsel %vm383, %v2257, 0
        %v2350 = vsel %vm383, %v2258, 0
        %2352 = vmatpush.msra.mxu0 0.0
        %2353 = vmatpush.msra.mxu0 0.0
        %2354 = vmatpush.msra.mxu0 0.0
        %2355 = vmatpush.msra.mxu0 0.0
        %2356 = vmatpush.msra.mxu0 0.0
        %2357 = vmatpush.msra.mxu0 0.0
        %2358 = vmatpush.msra.mxu0 0.0
        %2359 = vmatpush.msra.mxu0 0.0
        %2360 = vmatpush.msra.mxu0 0.0
        %2361 = vmatpush.msra.mxu0 0.0
        %2362 = vmatpush.msra.mxu0 0.0
        %2363 = vmatpush.msra.mxu0 0.0
        %2364 = vmatpush.msra.mxu0 0.0
        %2365 = vmatpush.msra.mxu0 0.0
        %2366 = vmatpush.msra.mxu0 %v2021
        %2367 = vmatpush.msra.mxu0 %v2018
        %2368 = vmatmul.f32.gmra.mxu0 %v2347
        %v2369 = vpop.f32.mrf.mxu0
        %v2370 = vadd.f32 0.0, %v2369
        %2371 = vmatmul.f32.gmra.mxu0 %v2350
        %v2372 = vpop.f32.mrf.mxu0
        %v2373 = vadd.f32 0.0, %v2372
        %2374 = vdwg.mxu0
        %v2376 = vsel %vm881, %v2312, 0
        %v2379 = vsel %vm881, %v2315, 0
        %2381 = vmatpush.msra.mxu0 0.0
        %2382 = vmatpush.msra.mxu0 0.0
        %2383 = vmatpush.msra.mxu0 0.0
        %2384 = vmatpush.msra.mxu0 0.0
        %2385 = vmatpush.msra.mxu0 0.0
        %2386 = vmatpush.msra.mxu0 0.0
        %2387 = vmatpush.msra.mxu0 0.0
        %2388 = vmatpush.msra.mxu0 0.0
        %2389 = vmatpush.msra.mxu0 0.0
        %2390 = vmatpush.msra.mxu0 0.0
        %2391 = vmatpush.msra.mxu0 0.0
        %2392 = vmatpush.msra.mxu0 0.0
        %2393 = vmatpush.msra.mxu0 0.0
        %2394 = vmatpush.msra.mxu0 0.0
        %2395 = vmatpush.msra.mxu0 0.0
        %2396 = vmatpush.msra.mxu0 %v2026
        %2397 = vmatmul.f32.gmra.mxu0 %v2376
        %v2398 = vpop.f32.mrf.mxu0
        %v2399 = vadd.f32 0.0, %v2398
        %2400 = vmatmul.f32.gmra.mxu0 %v2379
        %v2401 = vpop.f32.mrf.mxu0
        %v2402 = vadd.f32 0.0, %v2401
        %2403 = vdwg.mxu0
        %v2405 = vsel %vm881, %v2283, 0
        %v2408 = vsel %vm881, %v2286, 0
        %2410 = vmatpush.msra.mxu0 0.0
        %2411 = vmatpush.msra.mxu0 0.0
        %2412 = vmatpush.msra.mxu0 0.0
        %2413 = vmatpush.msra.mxu0 0.0
        %2414 = vmatpush.msra.mxu0 0.0
        %2415 = vmatpush.msra.mxu0 0.0
        %2416 = vmatpush.msra.mxu0 0.0
        %2417 = vmatpush.msra.mxu0 0.0
        %2418 = vmatpush.msra.mxu0 0.0
        %2419 = vmatpush.msra.mxu0 0.0
        %2420 = vmatpush.msra.mxu0 0.0
        %2421 = vmatpush.msra.mxu0 0.0
        %2422 = vmatpush.msra.mxu0 0.0
        %2423 = vmatpush.msra.mxu0 0.0
        %2424 = vmatpush.msra.mxu0 0.0
        %2425 = vmatpush.msra.mxu0 %v2024
        %2426 = vmatmul.f32.gmra.mxu0 %v2405
        %v2427 = vpop.f32.mrf.mxu0
        %v2428 = vadd.f32 %v2399, %v2427
        %2429 = vmatmul.f32.gmra.mxu0 %v2408
        %v2430 = vpop.f32.mrf.mxu0
        %v2431 = vadd.f32 %v2402, %v2430
        %2432 = vdwg.mxu0
        %v2434 = vsel %vm881, %v2341, 0
        %v2437 = vsel %vm881, %v2344, 0
        %2439 = vmatpush.msra.mxu0 0.0
        %2440 = vmatpush.msra.mxu0 0.0
        %2441 = vmatpush.msra.mxu0 0.0
        %2442 = vmatpush.msra.mxu0 0.0
        %2443 = vmatpush.msra.mxu0 0.0
        %2444 = vmatpush.msra.mxu0 0.0
        %2445 = vmatpush.msra.mxu0 0.0
        %2446 = vmatpush.msra.mxu0 0.0
        %2447 = vmatpush.msra.mxu0 0.0
        %2448 = vmatpush.msra.mxu0 0.0
        %2449 = vmatpush.msra.mxu0 0.0
        %2450 = vmatpush.msra.mxu0 0.0
        %2451 = vmatpush.msra.mxu0 0.0
        %2452 = vmatpush.msra.mxu0 0.0
        %2453 = vmatpush.msra.mxu0 0.0
        %2454 = vmatpush.msra.mxu0 %v2028
        %2455 = vmatmul.f32.gmra.mxu0 %v2434
        %v2456 = vpop.f32.mrf.mxu0
        %v2457 = vadd.f32 0.0, %v2456
        %2458 = vmatmul.f32.gmra.mxu0 %v2437
        %v2459 = vpop.f32.mrf.mxu0
        %v2460 = vadd.f32 0.0, %v2459
        %2461 = vdwg.mxu0
        %v2462 = vadd.f32 %v2428, %v2457
        %v2463 = vadd.f32 %v2431, %v2460
        %v2465 = vsel %vm881, %v2370, 0
        %v2468 = vsel %vm881, %v2373, 0
        %2470 = vmatpush.msra.mxu0 0.0
        %2471 = vmatpush.msra.mxu0 0.0
        %2472 = vmatpush.msra.mxu0 0.0
        %2473 = vmatpush.msra.mxu0 0.0
        %2474 = vmatpush.msra.mxu0 0.0
        %2475 = vmatpush.msra.mxu0 0.0
        %2476 = vmatpush.msra.mxu0 0.0
        %2477 = vmatpush.msra.mxu0 0.0
        %2478 = vmatpush.msra.mxu0 0.0
        %2479 = vmatpush.msra.mxu0 0.0
        %2480 = vmatpush.msra.mxu0 0.0
        %2481 = vmatpush.msra.mxu0 0.0
        %2482 = vmatpush.msra.mxu0 0.0
        %2483 = vmatpush.msra.mxu0 0.0
        %2484 = vmatpush.msra.mxu0 0.0
        %2485 = vmatpush.msra.mxu0 %v2030
        %2486 = vmatmul.f32.gmra.mxu0 %v2465
        %v2487 = vpop.f32.mrf.mxu0
        %v2488 = vadd.f32 0.0, %v2487
        %2489 = vmatmul.f32.gmra.mxu0 %v2468
        %v2490 = vpop.f32.mrf.mxu0
        %v2491 = vadd.f32 0.0, %v2490
        %2492 = vdwg.mxu0
        %v2493 = vadd.f32 %v2462, %v2488
        %v2494 = vadd.f32 %v2463, %v2491
        %v2495 = vadd.f32 %v1561, %v2493
        %v2496 = vadd.f32 %v1562, %v2494
        %s2497 = scalar_lea.vmem %s10, 14
        %v2498 = vld [vmem:[%s2497] sm:$0x1]
        %v2500 = vperm.slane %v2498, 0
        %v2502 = vadd.f32 %v2495, %v2500
        %v2503 = vadd.f32 %v2496, %v2500
        %s2504 = scalar_lea.vmem %s9, 40
        %v2505 = vld [vmem:[%s2504] sm:$0xff]
        %v2506 = vld [vmem:[%s2504 + $0x8] sm:$0xff]
        %v2507 = vld [vmem:[%s2504 + $0x10] sm:$0xff]
        %v2508 = vld [vmem:[%s2504 + $0x18] sm:$0xff]
        %v2509 = vld [vmem:[%s2504 + $0x20] sm:$0x1]
        %2510 = vmatpush.msra.mxu0 0.0
        %2511 = vmatpush.msra.mxu0 0.0
        %2512 = vmatpush.msra.mxu0 0.0
        %2513 = vmatpush.msra.mxu0 0.0
        %2514 = vmatpush.msra.mxu0 0.0
        %2515 = vmatpush.msra.mxu0 0.0
        %2516 = vmatpush.msra.mxu0 0.0
        %2517 = vmatpush.msra.mxu0 0.0
        %2518 = vmatpush.msra.mxu0 0.0
        %2519 = vmatpush.msra.mxu0 0.0
        %2520 = vmatpush.msra.mxu0 0.0
        %2521 = vmatpush.msra.mxu0 0.0
        %2522 = vmatpush.msra.mxu0 %v2508
        %2523 = vmatpush.msra.mxu0 %v2507
        %2524 = vmatpush.msra.mxu0 %v2506
        %2525 = vmatpush.msra.mxu0 %v2505
        %2526 = vmatmul.f32.gmra.mxu0 %v1361
        %v2527 = vpop.f32.mrf.mxu0
        %v2528 = vadd.f32 %v2509, %v2527
        %2529 = vdwg.mxu0
        %v2530 = vperm.slane %v2528, 0
        %v2531 = vadd.f32 %v2502, %v2530
        %v2532 = vadd.f32 %v2503, %v2530
        %s2533 = scalar_lea.vmem %s10, 12
        %v2534 = vld [vmem:[%s2533] sm:$0x1]
        %s2535 = scalar_lea.vmem %s10, 13
        %v2536 = vld [vmem:[%s2535] sm:$0x1]
        %v2537 = vsel %vm412, %v2531, 0.0
        %2538 = vadd.xlane.f32.xlu0 %v2537
        %v2539 = vpop.xlane.xlu0 %2538
        %v2540 = vsel %vm412, %v2532, 0.0
        %2541 = vadd.xlane.f32.xlu0 %v2540
        %v2542 = vpop.xlane.xlu0 %2541
        %v2543 = vmul.f32 %v2539, %v425
        %v2544 = vmul.f32 %v2542, %v425
        %v2545 = vsub.f32 %v2531, %v2543
        %v2546 = vsub.f32 %v2532, %v2544
        %v2547 = vmul.f32 %v2545, %v2545
        %v2548 = vmul.f32 %v2546, %v2546
        %v2549 = vsel %vm412, %v2547, 0.0
        %2550 = vadd.xlane.f32.xlu0 %v2549
        %v2551 = vpop.xlane.xlu0 %2550
        %v2552 = vsel %vm412, %v2548, 0.0
        %2553 = vadd.xlane.f32.xlu0 %v2552
        %v2554 = vpop.xlane.xlu0 %2553
        %v2555 = vmul.f32 %v2551, %v425
        %v2556 = vmul.f32 %v2554, %v425
        %v2557 = vadd.f32 %v2555, 1e-05
        %v2558 = vadd.f32 %v2556, 1e-05
        %v2559 = vrsqrt.pop %v2557
        %v2560 = vmul.f32 %v2559, %v2557
        %v2561 = vmul.f32 %v2560, %v2559
        %v2562 = vmul.f32 0.5, %v2561
        %v2563 = vsub.f32 1.5, %v2562
        %v2564 = vmul.f32 %v2559, %v2563
        %vm2565 = vweird.f32 %v2557
        %vm2566 = vweird.f32 %v2559
        %vm2567 = vmor %vm2565, %vm2566
        %v2568 = vsel %vm2567, %v2559, %v2564
        %v2569 = vrsqrt.pop %v2558
        %v2570 = vmul.f32 %v2569, %v2558
        %v2571 = vmul.f32 %v2570, %v2569
        %v2572 = vmul.f32 0.5, %v2571
        %v2573 = vsub.f32 1.5, %v2572
        %v2574 = vmul.f32 %v2569, %v2573
        %vm2575 = vweird.f32 %v2558
        %vm2576 = vweird.f32 %v2569
        %vm2577 = vmor %vm2575, %vm2576
        %v2578 = vsel %vm2577, %v2569, %v2574
        %v2579 = vmul.f32 %v2545, %v2568
        %v2580 = vmul.f32 %v2546, %v2578
        %v2582 = vperm.slane %v2534, 0
        %v2584 = vmul.f32 %v2579, %v2582
        %v2585 = vmul.f32 %v2580, %v2582
        %v2587 = vperm.slane %v2536, 0
        %v2589 = vadd.f32 %v2584, %v2587
        %v2590 = vadd.f32 %v2585, %v2587
        %s2591 = scalar_lea.vmem %s6, 40
        %v2592 = vld [vmem:[%s2591] sm:$0xff]
        %v2593 = vld [vmem:[%s2591 + $0x8] sm:$0xff]
        %v2594 = vld [vmem:[%s2591 + $0x10] sm:$0xff]
        %v2595 = vld [vmem:[%s2591 + $0x18] sm:$0xff]
        %v2596 = vld [vmem:[%s2591 + $0x20] sm:$0x1]
        %v2597 = vperm.slane %v2596, 0
        %v2599 = vsel %vm412, %v2589, 0
        %v2602 = vsel %vm412, %v2590, 0
        %2604 = vmatpush.msra.mxu0 0.0
        %2605 = vmatpush.msra.mxu0 0.0
        %2606 = vmatpush.msra.mxu0 0.0
        %2607 = vmatpush.msra.mxu0 0.0
        %2608 = vmatpush.msra.mxu0 0.0
        %2609 = vmatpush.msra.mxu0 0.0
        %2610 = vmatpush.msra.mxu0 0.0
        %2611 = vmatpush.msra.mxu0 0.0
        %2612 = vmatpush.msra.mxu0 0.0
        %2613 = vmatpush.msra.mxu0 0.0
        %2614 = vmatpush.msra.mxu0 0.0
        %2615 = vmatpush.msra.mxu0 0.0
        %2616 = vmatpush.msra.mxu0 %v2595
        %2617 = vmatpush.msra.mxu0 %v2594
        %2618 = vmatpush.msra.mxu0 %v2593
        %2619 = vmatpush.msra.mxu0 %v2592
        %2620 = vmatmul.f32.gmra.mxu0 %v2599
        %v2621 = vpop.f32.mrf.mxu0
        %v2622 = vadd.f32 %v2597, %v2621
        %2623 = vmatmul.f32.gmra.mxu0 %v2602
        %v2624 = vpop.f32.mrf.mxu0
        %v2625 = vadd.f32 %v2597, %v2624
        %2626 = vdwg.mxu0
        %v2627 = vxor.u32 %v2622, 2147483648
        %v2628 = vxor.u32 %v2625, 2147483648
        %v2629 = vmul.f32 %v2627, 1.442695
        %v2630 = vpow.pop %v2629
        %v2631 = vmul.f32 %v2628, 1.442695
        %v2632 = vpow.pop %v2631
        %v2633 = vadd.f32 %v2630, 1.0
        %v2634 = vadd.f32 %v2632, 1.0
        %v2635 = vrcp.pop %v2633
        %v2636 = vmul.f32 %v2633, %v2635
        %v2637 = vsub.f32 1.0, %v2636
        %v2638 = vmul.f32 %v2635, %v2637
        %v2639 = vadd.f32 %v2635, %v2638
        %vm2640 = vweird.f32 %v2633
        %vm2641 = vweird.f32 %v2635
        %vm2642 = vmor %vm2640, %vm2641
        %v2643 = vsel %vm2642, %v2635, %v2639
        %v2644 = vand.u32 2147483647, %v2633
        %vm2645 = vcmp.eq.f32.partialorder %v2644, 8.507059e+37
        %v2646 = vand.u32 %v2633, 2147483648
        %v2647 = vor.u32 1.1754944e-38, %v2646
        %v2648 = vsel %vm2645, %v2647, %v2643
        %v2649 = vmul.f32 1.0, %v2648
        %v2650 = vrcp.pop %v2634
        %v2651 = vmul.f32 %v2634, %v2650
        %v2652 = vsub.f32 1.0, %v2651
        %v2653 = vmul.f32 %v2650, %v2652
        %v2654 = vadd.f32 %v2650, %v2653
        %vm2655 = vweird.f32 %v2634
        %vm2656 = vweird.f32 %v2650
        %vm2657 = vmor %vm2655, %vm2656
        %v2658 = vsel %vm2657, %v2650, %v2654
        %v2659 = vand.u32 2147483647, %v2634
        %vm2660 = vcmp.eq.f32.partialorder %v2659, 8.507059e+37
        %v2661 = vand.u32 %v2634, 2147483648
        %v2662 = vor.u32 1.1754944e-38, %v2661
        %v2663 = vsel %vm2660, %v2662, %v2658
        %v2664 = vmul.f32 1.0, %v2663
        %v2665 = vmul.f32 %v2622, %v2649
        %v2666 = vmul.f32 %v2625, %v2664
        %s2667 = scalar_lea.vmem %s7, 72
        %v2668 = vld [vmem:[%s2667] sm:$0xff]
        %v2669 = vld [vmem:[%s2667 + $0x8] sm:$0xff]
        %v2670 = vld [vmem:[%s2667 + $0x10] sm:$0xff]
        %v2671 = vld [vmem:[%s2667 + $0x18] sm:$0xff]
        %v2672 = vld [vmem:[%s2667 + $0x20] sm:$0xff]
        %v2673 = vld [vmem:[%s2667 + $0x28] sm:$0xff]
        %v2674 = vld [vmem:[%s2667 + $0x30] sm:$0xff]
        %v2675 = vld [vmem:[%s2667 + $0x38] sm:$0xff]
        %v2676 = vld [vmem:[%s2667 + $0x40] sm:$0x1]
        %v2678 = vsel %vm1528, %v2665, 0
        %v2681 = vsel %vm1528, %v2666, 0
        %2683 = vmatpush.msra.mxu0 0.0
        %2684 = vmatpush.msra.mxu0 0.0
        %2685 = vmatpush.msra.mxu0 0.0
        %2686 = vmatpush.msra.mxu0 0.0
        %2687 = vmatpush.msra.mxu0 0.0
        %2688 = vmatpush.msra.mxu0 0.0
        %2689 = vmatpush.msra.mxu0 0.0
        %2690 = vmatpush.msra.mxu0 0.0
        %2691 = vmatpush.msra.mxu0 %v2675
        %2692 = vmatpush.msra.mxu0 %v2674
        %2693 = vmatpush.msra.mxu0 %v2673
        %2694 = vmatpush.msra.mxu0 %v2672
        %2695 = vmatpush.msra.mxu0 %v2671
        %2696 = vmatpush.msra.mxu0 %v2670
        %2697 = vmatpush.msra.mxu0 %v2669
        %2698 = vmatpush.msra.mxu0 %v2668
        %2699 = vmatmul.f32.gmra.mxu0 %v2678
        %v2700 = vpop.f32.mrf.mxu0
        %v2701 = vadd.f32 0.0, %v2700
        %2702 = vmatmul.f32.gmra.mxu0 %v2681
        %v2703 = vpop.f32.mrf.mxu0
        %v2704 = vadd.f32 0.0, %v2703
        %2705 = vdwg.mxu0
        %v2706 = vadd.f32 %v2531, %v2701
        %v2707 = vadd.f32 %v2532, %v2704
        %v2708 = vperm.slane %v2676, 0
        %v2709 = vadd.f32 %v2706, %v2708
        %v2710 = vadd.f32 %v2707, %v2708
        %v2711 = vld [vmem:[%s8] sm:$0xff]
        %v2712 = vld [vmem:[%s8 + $0x8] sm:$0xff]
        %v2713 = vld [vmem:[%s8 + $0x10] sm:$0xff]
        %v2714 = vld [vmem:[%s8 + $0x18] sm:$0xff]
        %v2715 = vld [vmem:[%s8 + $0x20] sm:$0x1]
        %v2716 = vperm.slane %v2715, 0
        %v2718 = vsel %vm412, %v2709, 0
        %v2721 = vsel %vm412, %v2710, 0
        %2723 = vmatpush.msra.mxu0 0.0
        %2724 = vmatpush.msra.mxu0 0.0
        %2725 = vmatpush.msra.mxu0 0.0
        %2726 = vmatpush.msra.mxu0 0.0
        %2727 = vmatpush.msra.mxu0 0.0
        %2728 = vmatpush.msra.mxu0 0.0
        %2729 = vmatpush.msra.mxu0 0.0
        %2730 = vmatpush.msra.mxu0 0.0
        %2731 = vmatpush.msra.mxu0 0.0
        %2732 = vmatpush.msra.mxu0 0.0
        %2733 = vmatpush.msra.mxu0 0.0
        %2734 = vmatpush.msra.mxu0 0.0
        %2735 = vmatpush.msra.mxu0 %v2714
        %2736 = vmatpush.msra.mxu0 %v2713
        %2737 = vmatpush.msra.mxu0 %v2712
        %2738 = vmatpush.msra.mxu0 %v2711
        %2739 = vmatmul.f32.gmra.mxu0 %v2718
        %v2740 = vpop.f32.mrf.mxu0
        %v2741 = vadd.f32 %v2716, %v2740
        %2742 = vmatmul.f32.gmra.mxu0 %v2721
        %v2743 = vpop.f32.mrf.mxu0
        %v2744 = vadd.f32 %v2716, %v2743
        %2745 = vdwg.mxu0
        %2746 = vst [vmem:[%s375] sm:$0xff] %v2741
        %2747 = vst [vmem:[%s375 + $0x8] sm:$0xff] %v2744
        %s2748 = sand.u32 %s269, 1
        %s2749 = scalar_lea.sflag [#allocation3], %s2748
        %s2750 = sand.u32 %s269, 1
        %s2751 = smul.addr %s2750, 16
        %s2752 = scalar_lea.vmem [#allocation2], %s2751
        // Predicated region
        $region65: #{tpu_custom_call.1} parent=63 // pred_check
          %p2753 = pneg %p279
        $region66: #{tpu_custom_call.1} parent=63 // pred_check_branch
          %2755 = sbr.rel (%p2753) target = $region68
        $region67: #{tpu_custom_call.1} parent=63 // pred_region
          %2757 = vsyncadd %s2749, 0
          %s2758 = smul.addr %s25, 2
          %s2759 = smul.addr %s2758, 8
          %s2760 = scalar_lea.hbm %s11, %s2759
          %s2761 = sshll.u32 %s2752, 4
          %s2762 = int_to_ptr.vmem [resolvable:$true] %s2761
          %s2763 = sshll.u32 %s2760, 4
          %s2764 = int_to_ptr.hbm [resolvable:$true] %s2763
          %2769 = dma.vmem_to_hbm [thread:$0]  %s2762, 256, %s2764, %s2749, 128, 128, 8
        $region68: #{tpu_custom_call.1} parent=63 // pred_fallthru
          _
      $region64: #{tpu_custom_call.1} parent=5 // pred_fallthru
        _
      %p2770 = scmp.le.s32.totalorder 2, %s20
      // Predicated region
      $region69: #{tpu_custom_call.1} parent=5 // pred_check
        %p2771 = pneg %p2770
      $region70: #{tpu_custom_call.1} parent=5 // pred_check_branch
        %2773 = sbr.rel (%p2771) target = $region72
      $region71: #{tpu_custom_call.1} parent=5 // pred_region
        %s2774 = ssub.s32 %s20, 2
        // Predicated region
        $region73: #{tpu_custom_call.1} parent=71 // pred_check
          %p2775 = pneg %p285
        $region74: #{tpu_custom_call.1} parent=71 // pred_check_branch
          %2777 = sbr.rel (%p2775) target = $region76
        $region75: #{tpu_custom_call.1} parent=71 // pred_region
          %s2778 = sand.u32 %s270, 1
          %s2779 = scalar_lea.sflag [#allocation3], %s2778
          %s2780 = sand.u32 %s270, 1
          %s2781 = smul.addr %s2780, 16
          %s2782 = scalar_lea.vmem [#allocation2], %s2781
          %2784 = dma.done %s2779, 256
        $region76: #{tpu_custom_call.1} parent=71 // pred_fallthru
          _
      $region72: #{tpu_custom_call.1} parent=5 // pred_fallthru
        _
    $region6: #{tpu_custom_call.1} parent=1 // loop_footer
      %s24 = sadd.s32 1, %s20
    $region7: #{tpu_custom_call.1} parent=1 // loop_footer_branch
      %19 = sbr.rel target = $region3
    $region8: #{tpu_custom_call.1} parent=1 // loop_exit
      _
    %2785 = vsyncpa [#allocation3], 1
    %s2786 = scalar_lea.sflag [#allocation3], 1
    %2787 = vsyncpa %s2786, 1

</llo_original>
